<compile_context>
chip_gen: v5e
topology: v5e:2x2
jax: 0.10.0
libtpu: 0.0.40
codegen_flags: <defaults>
</compile_context>

<pallas_src>
import functools

import jax
import jax.numpy as jnp
from jax.experimental import pallas as pl
from jax.experimental.pallas import tpu as pltpu

_VMEM_LIMIT = 32 * 1024 * 1024  # safe on v5e / v6e / v7x


def _row_tile(m, cap=1024):
    """Largest row tile <= cap that divides m (multiple of 8 unless it is m)."""
    if m <= cap:
        return m
    t = cap - (cap % 8)
    while t >= 8 and m % t:
        t -= 8
    if t < 8 or m % t:
        # TODO(synk): ragged M — fall back to a single block instead of masking.
        return m
    return t


# ----------------------------------------------------------------------------
# Gridded matmul + bias (used for the 1x1 aux classifier)
# ----------------------------------------------------------------------------
def _matmul_bias_kernel(x_ref, w_ref, b_ref, o_ref, *, relu):
    acc = jnp.dot(x_ref[...], w_ref[...], preferred_element_type=jnp.float32)
    acc = acc + b_ref[...]
    if relu:
        acc = jnp.maximum(acc, 0.0)
    o_ref[...] = acc.astype(o_ref.dtype)


def matmul_bias(x, w, b, relu=False, out_dtype=None, row_tile=1024):
    """y = x @ w + b (optional ReLU). Row-tiled grid, weights resident in VMEM."""
    M, K = x.shape
    K2, N = w.shape
    assert K == K2
    tm = _row_tile(M, row_tile)
    out_dtype = out_dtype or x.dtype
    return pl.pallas_call(
        functools.partial(_matmul_bias_kernel, relu=relu),
        out_shape=jax.ShapeDtypeStruct((M, N), out_dtype),
        grid=(M // tm,),
        in_specs=[
            pl.BlockSpec((tm, K), lambda i: (i, 0)),
            pl.BlockSpec((K, N), lambda i: (0, 0)),   # resident
            pl.BlockSpec((1, N), lambda i: (0, 0)),   # resident
        ],
        out_specs=pl.BlockSpec((tm, N), lambda i: (i, 0)),
        compiler_params=pltpu.CompilerParams(
            dimension_semantics=("parallel",),
            vmem_limit_bytes=_VMEM_LIMIT),
    )(x, w, b.reshape(1, N).astype(jnp.float32))


# ----------------------------------------------------------------------------
# 3x3 conv: per-output-row grid, in-kernel 3x3 gather (no HBM im2col)
# ----------------------------------------------------------------------------
def _conv3x3_row_kernel(r0_ref, r1_ref, r2_ref, w_ref, b_ref, o_ref, *, out_w, relu):
    rows = (r0_ref[0, 0], r1_ref[0, 0], r2_ref[0, 0])     # each (W+2, Cin) bf16
    acc = None
    for t, (dy, dx) in enumerate((dy, dx) for dy in range(3) for dx in range(3)):
        part = jnp.dot(rows[dy][dx:dx + out_w, :], w_ref[t],
                       preferred_element_type=jnp.float32)
        acc = part if acc is None else acc + part
    acc = acc + b_ref[...]
    if relu:
        acc = jnp.maximum(acc, 0.0)
    o_ref[0, 0] = acc.astype(o_ref.dtype)


def conv3x3(x_nhwc, w_oihw, b, relu=False, out_dtype=jnp.bfloat16):
    """3x3 conv, stride 1, padding 1. PyTorch weight layout (Cout, Cin, 3, 3).

    The three vertically-shifted views of the padded input are delivered by
    three BlockSpecs on the same array; weights/bias stay resident in VMEM.
    """
    N, H, W, C = x_nhwc.shape
    Cout = w_oihw.shape[0]
    xp = jnp.pad(x_nhwc, ((0, 0), (1, 1), (1, 1), (0, 0))).astype(jnp.bfloat16)
    # (Cout,Cin,3,3) -> (3,3,Cin,Cout) -> (9,Cin,Cout), tap index t = dy*3+dx
    w9 = jnp.transpose(w_oihw, (2, 3, 1, 0)).reshape(9, C, Cout).astype(jnp.bfloat16)
    b2 = b.reshape(1, Cout).astype(jnp.float32)

    def row_spec(dy):
        return pl.BlockSpec((1, 1, W + 2, C), lambda n, y: (n, y + dy, 0, 0))

    kernel = functools.partial(_conv3x3_row_kernel, out_w=W, relu=relu)
    return pl.pallas_call(
        kernel,
        out_shape=jax.ShapeDtypeStruct((N, H, W, Cout), out_dtype),
        grid=(N, H),
        in_specs=[
            row_spec(0), row_spec(1), row_spec(2),
            pl.BlockSpec((9, C, Cout), lambda n, y: (0, 0, 0)),   # resident
            pl.BlockSpec((1, Cout), lambda n, y: (0, 0)),         # resident
        ],
        out_specs=pl.BlockSpec((1, 1, W, Cout), lambda n, y: (n, y, 0, 0)),
        compiler_params=pltpu.CompilerParams(
            dimension_semantics=("parallel", "parallel"),
            vmem_limit_bytes=_VMEM_LIMIT),
    )(xp, xp, xp, w9, b2)


# ----------------------------------------------------------------------------
# Fused head: (channel_reducer∘classifier) matmul + softmax + avg-pool + lane FC
# ----------------------------------------------------------------------------
def _head_kernel(x_ref, w_ref, b_ref, lw_ref, lb_ref,
                 logits_ref, lane_ref, pool_ref, *, hw_total):
    j = pl.program_id(1)

    @pl.when(j == 0)
    def _():
        pool_ref[...] = jnp.zeros_like(pool_ref)

    # fused channel_reducer + classifier (one precomposed 1x1 conv)
    acc = jnp.dot(x_ref[0], w_ref[...], preferred_element_type=jnp.float32)
    acc = acc + b_ref[...]                               # (tm, n_cls) f32 logits
    logits_ref[0] = acc.astype(logits_ref.dtype)

    # softmax over the channel dim + running spatial sum for the lane head
    m = jnp.max(acc, axis=-1, keepdims=True)
    e = jnp.exp(acc - m)
    s = jnp.sum(e, axis=-1, keepdims=True)
    p = e * pl.reciprocal(s, approx=True)
    pool_ref[...] += jnp.sum(p, axis=0, keepdims=True)   # (1, n_cls)

    @pl.when(j == pl.num_programs(1) - 1)
    def _():
        pooled = pool_ref[...] * (1.0 / hw_total)        # global average pool
        lane = jnp.dot(pooled, lw_ref[...], preferred_element_type=jnp.float32)
        lane_ref[0] = (lane + lb_ref[...]).astype(lane_ref.dtype)


def fused_head(out_feat_nhwc, w_comb, b_comb, lane_w, lane_b, row_tile=1024):
    N, H, W, C = out_feat_nhwc.shape
    n_cls = w_comb.shape[1]
    n_lane = lane_w.shape[1]
    HW = H * W
    tm = _row_tile(HW, row_tile)
    x = out_feat_nhwc.reshape(N, HW, C)
    kernel = functools.partial(_head_kernel, hw_total=float(HW))
    logits, lane = pl.pallas_call(
        kernel,
        out_shape=(jax.ShapeDtypeStruct((N, HW, n_cls), jnp.float32),
                   jax.ShapeDtypeStruct((N, 1, n_lane), jnp.float32)),
        grid=(N, HW // tm),
        in_specs=[
            pl.BlockSpec((1, tm, C), lambda i, j: (i, j, 0)),
            pl.BlockSpec((C, n_cls), lambda i, j: (0, 0)),       # resident
            pl.BlockSpec((1, n_cls), lambda i, j: (0, 0)),       # resident
            pl.BlockSpec((n_cls, n_lane), lambda i, j: (0, 0)),  # resident
            pl.BlockSpec((1, n_lane), lambda i, j: (0, 0)),      # resident
        ],
        out_specs=(
            pl.BlockSpec((1, tm, n_cls), lambda i, j: (i, j, 0)),
            pl.BlockSpec((1, 1, n_lane), lambda i, j: (i, 0, 0)),  # accumulator-resident
        ),
        scratch_shapes=[pltpu.VMEM((1, n_cls), jnp.float32)],
        compiler_params=pltpu.CompilerParams(
            dimension_semantics=("parallel", "arbitrary"),
            vmem_limit_bytes=_VMEM_LIMIT),
    )(x, w_comb, b_comb, lane_w, lane_b)
    return logits.reshape(N, H, W, n_cls), lane.reshape(N, n_lane)


# ----------------------------------------------------------------------------
# _SimpleSegmentationModel.forward
# ----------------------------------------------------------------------------
def simple_segmentation_forward(x_nchw, params):
    x = jnp.transpose(x_nchw, (0, 2, 3, 1))                      # NCHW -> NHWC

    # backbone -> OrderedDict features {'out', 'aux'}
    aux_feat = conv3x3(x, params["bb1_w"], params["bb1_b"], relu=True)         # bf16 [N,H,W,16]
    out_feat = conv3x3(aux_feat, params["bb2_w"], params["bb2_b"], relu=True)  # bf16 [N,H,W,32]
    features = {"out": out_feat, "aux": aux_feat}

    # channel_reducer (1x1, 32->16) and classifier (1x1, 16->8) have no
    # nonlinearity between them -> precompose into a single 32->8 matmul.
    cr_mat = params["cr_w"].reshape(params["cr_w"].shape[0], -1).T             # [32,16]
    cls_mat = params["cls_w"].reshape(params["cls_w"].shape[0], -1).T          # [16,8]
    w_comb = (cr_mat @ cls_mat).astype(jnp.bfloat16)                           # [32,8]
    b_comb = (params["cr_b"] @ cls_mat + params["cls_b"]).reshape(1, -1)       # [1,8] f32
    # TODO(synk): scnn_layer (spatial message passing) is None in this instantiation.

    lane_w = params["lane_w"].T                 # PyTorch (out,in) -> (in,out) [8,4]
    lane_b = params["lane_b"].reshape(1, -1)

    # fused: classifier matmul + softmax(dim=channel) + global avg pool + lane linear
    logits_nhwc, lane = fused_head(features["out"], w_comb, b_comb, lane_w, lane_b)

    result = {}
    # TODO(synk): emit NCHW heads directly via lane-dense transposed stores
    # instead of the XLA transpose below.
    result["out"] = jnp.transpose(logits_nhwc, (0, 3, 1, 2))
    result["lane"] = lane

    # aux_classifier: 1x1 conv 16->8 on features['aux']
    N, H, W, Ca = features["aux"].shape
    aux_wmat = params["aux_w"].reshape(params["aux_w"].shape[0], -1).T.astype(jnp.bfloat16)
    a = matmul_bias(features["aux"].reshape(N * H * W, Ca), aux_wmat, params["aux_b"],
                    relu=False, out_dtype=jnp.float32)
    result["aux"] = jnp.transpose(a.reshape(N, H, W, -1), (0, 3, 1, 2))
    return result


def init_params(key):
    C_in, C_aux, C_out, C_red, n_cls, n_lane = 4, 16, 32, 16, 8, 4
    ks = jax.random.split(key, 6)

    def w(k, shape, fan_in):
        return jax.random.normal(k, shape, jnp.float32) * (1.0 / fan_in) ** 0.5

    return {
        "bb1_w": w(ks[0], (C_aux, C_in, 3, 3), 9 * C_in),
        "bb1_b": jnp.zeros((C_aux,), jnp.float32),
        "bb2_w": w(ks[1], (C_out, C_aux, 3, 3), 9 * C_aux),
        "bb2_b": jnp.zeros((C_out,), jnp.float32),
        "cr_w": w(ks[2], (C_red, C_out, 1, 1), C_out),
        "cr_b": jnp.zeros((C_red,), jnp.float32),
        "cls_w": w(ks[3], (n_cls, C_red, 1, 1), C_red),
        "cls_b": jnp.zeros((n_cls,), jnp.float32),
        # PyTorch nn.Linear convention: (out_features, in_features)
        "lane_w": w(ks[4], (n_lane, n_cls), n_cls),
        "lane_b": jnp.zeros((n_lane,), jnp.float32),
        "aux_w": w(ks[5], (n_cls, C_aux, 1, 1), C_aux),
        "aux_b": jnp.zeros((n_cls,), jnp.float32),
    }


if __name__ == "__main__":
    key = jax.random.PRNGKey(0)
    k_x, k_p = jax.random.split(key)
    x = jax.random.normal(k_x, (2, 4, 16, 16), jnp.float32)  # NCHW, like PyTorch
    params = init_params(k_p)

    fwd = jax.jit(simple_segmentation_forward)
    result = fwd(x, params)
    jax.block_until_ready(result)

    assert result["out"].shape == (2, 8, 16, 16)
    assert result["lane"].shape == (2, 4)
    assert result["aux"].shape == (2, 8, 16, 16)
    print("KERNEL_OK")
</pallas_src>

<mosaic_0001>
module attributes {stable_mosaic.version = 11 : i64} {
  func.func @_conv3x3_row_kernel(%arg0: i32, %arg1: i32, %arg2: memref<1x1x18x4xbf16, #tpu.memory_space<vmem>>, %arg3: memref<1x1x18x4xbf16, #tpu.memory_space<vmem>>, %arg4: memref<1x1x18x4xbf16, #tpu.memory_space<vmem>>, %arg5: memref<9x4x16xbf16, #tpu.memory_space<vmem>>, %arg6: memref<1x16xf32, #tpu.memory_space<vmem>>, %arg7: memref<1x1x16x16xbf16, #tpu.memory_space<vmem>>) attributes {dimension_semantics = [#tpu.dimension_semantics<parallel>, #tpu.dimension_semantics<parallel>], iteration_bounds = array<i64: 2, 16>, scalar_prefetch = 0 : i64, scratch_operands = 0 : i64, tpu.core_type = #tpu.core_type<tc>, window_params = [{transform_indices = @transform_0, window_bounds = array<i64: 1, 1, 18, 4>}, {transform_indices = @transform_1, window_bounds = array<i64: 1, 1, 18, 4>}, {transform_indices = @transform_2, window_bounds = array<i64: 1, 1, 18, 4>}, {pipeline_mode = #tpu.pipeline_mode<synchronous>, transform_indices = @transform_3, window_bounds = array<i64: 9, 4, 16>}, {pipeline_mode = #tpu.pipeline_mode<synchronous>, transform_indices = @transform_4, window_bounds = array<i64: 1, 16>}, {transform_indices = @transform_5, window_bounds = array<i64: 1, 1, 16, 16>}]} {
    %c0 = arith.constant 0 : index
    %c0_0 = arith.constant 0 : index
    %c0_1 = arith.constant 0 : index
    %c0_2 = arith.constant 0 : index
    %0 = vector.load %arg2[%c0, %c0_0, %c0_1, %c0_2] : memref<1x1x18x4xbf16, #tpu.memory_space<vmem>>, vector<1x1x18x4xbf16>
    %1 = vector.shape_cast %0 : vector<1x1x18x4xbf16> to vector<18x4xbf16>
    %c0_3 = arith.constant 0 : index
    %c0_4 = arith.constant 0 : index
    %c0_5 = arith.constant 0 : index
    %c0_6 = arith.constant 0 : index
    %2 = vector.load %arg3[%c0_3, %c0_4, %c0_5, %c0_6] : memref<1x1x18x4xbf16, #tpu.memory_space<vmem>>, vector<1x1x18x4xbf16>
    %3 = vector.shape_cast %2 : vector<1x1x18x4xbf16> to vector<18x4xbf16>
    %c0_7 = arith.constant 0 : index
    %c0_8 = arith.constant 0 : index
    %c0_9 = arith.constant 0 : index
    %c0_10 = arith.constant 0 : index
    %4 = vector.load %arg4[%c0_7, %c0_8, %c0_9, %c0_10] : memref<1x1x18x4xbf16, #tpu.memory_space<vmem>>, vector<1x1x18x4xbf16>
    %5 = vector.shape_cast %4 : vector<1x1x18x4xbf16> to vector<18x4xbf16>
    %6 = vector.extract_strided_slice %1 {offsets = [0, 0], sizes = [16, 4], strides = [1, 1]} : vector<18x4xbf16> to vector<16x4xbf16>
    %c0_11 = arith.constant 0 : index
    %c0_12 = arith.constant 0 : index
    %c0_13 = arith.constant 0 : index
    %7 = vector.load %arg5[%c0_11, %c0_12, %c0_13] : memref<9x4x16xbf16, #tpu.memory_space<vmem>>, vector<1x4x16xbf16>
    %8 = vector.shape_cast %7 : vector<1x4x16xbf16> to vector<4x16xbf16>
    %cst = arith.constant dense<0.000000e+00> : vector<16x16xf32>
    %9 = tpu.matmul %6, %8, %cst {dimension_numbers = #tpu.dot_dimension_numbers<[1], [0], [0], [1], [0, 0, 1, 1], [], []>} : vector<16x4xbf16>, vector<4x16xbf16>, vector<16x16xf32> -> vector<16x16xf32>
    %10 = vector.extract_strided_slice %1 {offsets = [1, 0], sizes = [16, 4], strides = [1, 1]} : vector<18x4xbf16> to vector<16x4xbf16>
    %c1 = arith.constant 1 : index
    %c0_14 = arith.constant 0 : index
    %c0_15 = arith.constant 0 : index
    %11 = vector.load %arg5[%c1, %c0_14, %c0_15] : memref<9x4x16xbf16, #tpu.memory_space<vmem>>, vector<1x4x16xbf16>
    %12 = vector.shape_cast %11 : vector<1x4x16xbf16> to vector<4x16xbf16>
    %cst_16 = arith.constant dense<0.000000e+00> : vector<16x16xf32>
    %13 = tpu.matmul %10, %12, %cst_16 {dimension_numbers = #tpu.dot_dimension_numbers<[1], [0], [0], [1], [0, 0, 1, 1], [], []>} : vector<16x4xbf16>, vector<4x16xbf16>, vector<16x16xf32> -> vector<16x16xf32>
    %14 = arith.addf %9, %13 : vector<16x16xf32>
    %15 = vector.extract_strided_slice %1 {offsets = [2, 0], sizes = [16, 4], strides = [1, 1]} : vector<18x4xbf16> to vector<16x4xbf16>
    %c2 = arith.constant 2 : index
    %c0_17 = arith.constant 0 : index
    %c0_18 = arith.constant 0 : index
    %16 = vector.load %arg5[%c2, %c0_17, %c0_18] : memref<9x4x16xbf16, #tpu.memory_space<vmem>>, vector<1x4x16xbf16>
    %17 = vector.shape_cast %16 : vector<1x4x16xbf16> to vector<4x16xbf16>
    %cst_19 = arith.constant dense<0.000000e+00> : vector<16x16xf32>
    %18 = tpu.matmul %15, %17, %cst_19 {dimension_numbers = #tpu.dot_dimension_numbers<[1], [0], [0], [1], [0, 0, 1, 1], [], []>} : vector<16x4xbf16>, vector<4x16xbf16>, vector<16x16xf32> -> vector<16x16xf32>
    %19 = arith.addf %14, %18 : vector<16x16xf32>
    %20 = vector.extract_strided_slice %3 {offsets = [0, 0], sizes = [16, 4], strides = [1, 1]} : vector<18x4xbf16> to vector<16x4xbf16>
    %c3 = arith.constant 3 : index
    %c0_20 = arith.constant 0 : index
    %c0_21 = arith.constant 0 : index
    %21 = vector.load %arg5[%c3, %c0_20, %c0_21] : memref<9x4x16xbf16, #tpu.memory_space<vmem>>, vector<1x4x16xbf16>
    %22 = vector.shape_cast %21 : vector<1x4x16xbf16> to vector<4x16xbf16>
    %cst_22 = arith.constant dense<0.000000e+00> : vector<16x16xf32>
    %23 = tpu.matmul %20, %22, %cst_22 {dimension_numbers = #tpu.dot_dimension_numbers<[1], [0], [0], [1], [0, 0, 1, 1], [], []>} : vector<16x4xbf16>, vector<4x16xbf16>, vector<16x16xf32> -> vector<16x16xf32>
    %24 = arith.addf %19, %23 : vector<16x16xf32>
    %25 = vector.extract_strided_slice %3 {offsets = [1, 0], sizes = [16, 4], strides = [1, 1]} : vector<18x4xbf16> to vector<16x4xbf16>
    %c4 = arith.constant 4 : index
    %c0_23 = arith.constant 0 : index
    %c0_24 = arith.constant 0 : index
    %26 = vector.load %arg5[%c4, %c0_23, %c0_24] : memref<9x4x16xbf16, #tpu.memory_space<vmem>>, vector<1x4x16xbf16>
    %27 = vector.shape_cast %26 : vector<1x4x16xbf16> to vector<4x16xbf16>
    %cst_25 = arith.constant dense<0.000000e+00> : vector<16x16xf32>
    %28 = tpu.matmul %25, %27, %cst_25 {dimension_numbers = #tpu.dot_dimension_numbers<[1], [0], [0], [1], [0, 0, 1, 1], [], []>} : vector<16x4xbf16>, vector<4x16xbf16>, vector<16x16xf32> -> vector<16x16xf32>
    %29 = arith.addf %24, %28 : vector<16x16xf32>
    %30 = vector.extract_strided_slice %3 {offsets = [2, 0], sizes = [16, 4], strides = [1, 1]} : vector<18x4xbf16> to vector<16x4xbf16>
    %c5 = arith.constant 5 : index
    %c0_26 = arith.constant 0 : index
    %c0_27 = arith.constant 0 : index
    %31 = vector.load %arg5[%c5, %c0_26, %c0_27] : memref<9x4x16xbf16, #tpu.memory_space<vmem>>, vector<1x4x16xbf16>
    %32 = vector.shape_cast %31 : vector<1x4x16xbf16> to vector<4x16xbf16>
    %cst_28 = arith.constant dense<0.000000e+00> : vector<16x16xf32>
    %33 = tpu.matmul %30, %32, %cst_28 {dimension_numbers = #tpu.dot_dimension_numbers<[1], [0], [0], [1], [0, 0, 1, 1], [], []>} : vector<16x4xbf16>, vector<4x16xbf16>, vector<16x16xf32> -> vector<16x16xf32>
    %34 = arith.addf %29, %33 : vector<16x16xf32>
    %35 = vector.extract_strided_slice %5 {offsets = [0, 0], sizes = [16, 4], strides = [1, 1]} : vector<18x4xbf16> to vector<16x4xbf16>
    %c6 = arith.constant 6 : index
    %c0_29 = arith.constant 0 : index
    %c0_30 = arith.constant 0 : index
    %36 = vector.load %arg5[%c6, %c0_29, %c0_30] : memref<9x4x16xbf16, #tpu.memory_space<vmem>>, vector<1x4x16xbf16>
    %37 = vector.shape_cast %36 : vector<1x4x16xbf16> to vector<4x16xbf16>
    %cst_31 = arith.constant dense<0.000000e+00> : vector<16x16xf32>
    %38 = tpu.matmul %35, %37, %cst_31 {dimension_numbers = #tpu.dot_dimension_numbers<[1], [0], [0], [1], [0, 0, 1, 1], [], []>} : vector<16x4xbf16>, vector<4x16xbf16>, vector<16x16xf32> -> vector<16x16xf32>
    %39 = arith.addf %34, %38 : vector<16x16xf32>
    %40 = vector.extract_strided_slice %5 {offsets = [1, 0], sizes = [16, 4], strides = [1, 1]} : vector<18x4xbf16> to vector<16x4xbf16>
    %c7 = arith.constant 7 : index
    %c0_32 = arith.constant 0 : index
    %c0_33 = arith.constant 0 : index
    %41 = vector.load %arg5[%c7, %c0_32, %c0_33] : memref<9x4x16xbf16, #tpu.memory_space<vmem>>, vector<1x4x16xbf16>
    %42 = vector.shape_cast %41 : vector<1x4x16xbf16> to vector<4x16xbf16>
    %cst_34 = arith.constant dense<0.000000e+00> : vector<16x16xf32>
    %43 = tpu.matmul %40, %42, %cst_34 {dimension_numbers = #tpu.dot_dimension_numbers<[1], [0], [0], [1], [0, 0, 1, 1], [], []>} : vector<16x4xbf16>, vector<4x16xbf16>, vector<16x16xf32> -> vector<16x16xf32>
    %44 = arith.addf %39, %43 : vector<16x16xf32>
    %45 = vector.extract_strided_slice %5 {offsets = [2, 0], sizes = [16, 4], strides = [1, 1]} : vector<18x4xbf16> to vector<16x4xbf16>
    %c8 = arith.constant 8 : index
    %c0_35 = arith.constant 0 : index
    %c0_36 = arith.constant 0 : index
    %46 = vector.load %arg5[%c8, %c0_35, %c0_36] : memref<9x4x16xbf16, #tpu.memory_space<vmem>>, vector<1x4x16xbf16>
    %47 = vector.shape_cast %46 : vector<1x4x16xbf16> to vector<4x16xbf16>
    %cst_37 = arith.constant dense<0.000000e+00> : vector<16x16xf32>
    %48 = tpu.matmul %45, %47, %cst_37 {dimension_numbers = #tpu.dot_dimension_numbers<[1], [0], [0], [1], [0, 0, 1, 1], [], []>} : vector<16x4xbf16>, vector<4x16xbf16>, vector<16x16xf32> -> vector<16x16xf32>
    %49 = arith.addf %44, %48 : vector<16x16xf32>
    %c0_38 = arith.constant 0 : index
    %c0_39 = arith.constant 0 : index
    %50 = vector.load %arg6[%c0_38, %c0_39] : memref<1x16xf32, #tpu.memory_space<vmem>>, vector<1x16xf32>
    %51 = vector.broadcast %50 : vector<1x16xf32> to vector<16x16xf32>
    %52 = arith.addf %49, %51 : vector<16x16xf32>
    %cst_40 = arith.constant 0.000000e+00 : f32
    %53 = vector.broadcast %cst_40 : f32 to vector<16x16xf32>
    %54 = arith.maximumf %52, %53 : vector<16x16xf32>
    %55 = arith.truncf %54 : vector<16x16xf32> to vector<16x16xbf16>
    %c0_41 = arith.constant 0 : index
    %c0_42 = arith.constant 0 : index
    %c0_43 = arith.constant 0 : index
    %c0_44 = arith.constant 0 : index
    %56 = vector.load %arg7[%c0_41, %c0_42, %c0_43, %c0_44] : memref<1x1x16x16xbf16, #tpu.memory_space<vmem>>, vector<1x1x16x16xbf16>
    %57 = vector.shape_cast %56 : vector<1x1x16x16xbf16> to vector<16x16xbf16>
    %58 = vector.shape_cast %55 : vector<16x16xbf16> to vector<1x1x16x16xbf16>
    tpu.vector_store %arg7[%c0_41, %c0_42, %c0_43, %c0_44], %58 {strides = array<i32>} : memref<1x1x16x16xbf16, #tpu.memory_space<vmem>>, vector<1x1x16x16xbf16>,
    return
  }
  func.func @transform_0(%arg0: i32, %arg1: i32) -> (i32, i32, i32, i32) {
    %c0_i32 = arith.constant 0 : i32
    %0 = arith.addi %arg1, %c0_i32 : i32
    %c0_i32_0 = arith.constant 0 : i32
    %c0_i32_1 = arith.constant 0 : i32
    %c0_i32_2 = arith.constant 0 : i32
    return %arg0, %0, %c0_i32_0, %c0_i32_1 : i32, i32, i32, i32
  }
  func.func @transform_1(%arg0: i32, %arg1: i32) -> (i32, i32, i32, i32) {
    %c1_i32 = arith.constant 1 : i32
    %0 = arith.addi %arg1, %c1_i32 : i32
    %c0_i32 = arith.constant 0 : i32
    %c0_i32_0 = arith.constant 0 : i32
    %c0_i32_1 = arith.constant 0 : i32
    return %arg0, %0, %c0_i32, %c0_i32_0 : i32, i32, i32, i32
  }
  func.func @transform_2(%arg0: i32, %arg1: i32) -> (i32, i32, i32, i32) {
    %c2_i32 = arith.constant 2 : i32
    %0 = arith.addi %arg1, %c2_i32 : i32
    %c0_i32 = arith.constant 0 : i32
    %c0_i32_0 = arith.constant 0 : i32
    %c0_i32_1 = arith.constant 0 : i32
    return %arg0, %0, %c0_i32, %c0_i32_0 : i32, i32, i32, i32
  }
  func.func @transform_3(%arg0: i32, %arg1: i32) -> (i32, i32, i32) {
    %c0_i32 = arith.constant 0 : i32
    %c0_i32_0 = arith.constant 0 : i32
    %c0_i32_1 = arith.constant 0 : i32
    %c0_i32_2 = arith.constant 0 : i32
    return %c0_i32, %c0_i32_0, %c0_i32_1 : i32, i32, i32
  }
  func.func @transform_4(%arg0: i32, %arg1: i32) -> (i32, i32) {
    %c0_i32 = arith.constant 0 : i32
    %c0_i32_0 = arith.constant 0 : i32
    %c0_i32_1 = arith.constant 0 : i32
    return %c0_i32, %c0_i32_0 : i32, i32
  }
  func.func @transform_5(%arg0: i32, %arg1: i32) -> (i32, i32, i32, i32) {
    %c0_i32 = arith.constant 0 : i32
    %c0_i32_0 = arith.constant 0 : i32
    %c0_i32_1 = arith.constant 0 : i32
    return %arg0, %arg1, %c0_i32, %c0_i32_0 : i32, i32, i32, i32
  }
}

module attributes {stable_mosaic.version = 11 : i64} {
  func.func @_conv3x3_row_kernel(%arg0: i32, %arg1: i32, %arg2: memref<1x1x18x16xbf16, #tpu.memory_space<vmem>>, %arg3: memref<1x1x18x16xbf16, #tpu.memory_space<vmem>>, %arg4: memref<1x1x18x16xbf16, #tpu.memory_space<vmem>>, %arg5: memref<9x16x32xbf16, #tpu.memory_space<vmem>>, %arg6: memref<1x32xf32, #tpu.memory_space<vmem>>, %arg7: memref<1x1x16x32xbf16, #tpu.memory_space<vmem>>) attributes {dimension_semantics = [#tpu.dimension_semantics<parallel>, #tpu.dimension_semantics<parallel>], iteration_bounds = array<i64: 2, 16>, scalar_prefetch = 0 : i64, scratch_operands = 0 : i64, tpu.core_type = #tpu.core_type<tc>, window_params = [{transform_indices = @transform_0, window_bounds = array<i64: 1, 1, 18, 16>}, {transform_indices = @transform_1, window_bounds = array<i64: 1, 1, 18, 16>}, {transform_indices = @transform_2, window_bounds = array<i64: 1, 1, 18, 16>}, {pipeline_mode = #tpu.pipeline_mode<synchronous>, transform_indices = @transform_3, window_bounds = array<i64: 9, 16, 32>}, {pipeline_mode = #tpu.pipeline_mode<synchronous>, transform_indices = @transform_4, window_bounds = array<i64: 1, 32>}, {transform_indices = @transform_5, window_bounds = array<i64: 1, 1, 16, 32>}]} {
    %c0 = arith.constant 0 : index
    %c0_0 = arith.constant 0 : index
    %c0_1 = arith.constant 0 : index
    %c0_2 = arith.constant 0 : index
    %0 = vector.load %arg2[%c0, %c0_0, %c0_1, %c0_2] : memref<1x1x18x16xbf16, #tpu.memory_space<vmem>>, vector<1x1x18x16xbf16>
    %1 = vector.shape_cast %0 : vector<1x1x18x16xbf16> to vector<18x16xbf16>
    %c0_3 = arith.constant 0 : index
    %c0_4 = arith.constant 0 : index
    %c0_5 = arith.constant 0 : index
    %c0_6 = arith.constant 0 : index
    %2 = vector.load %arg3[%c0_3, %c0_4, %c0_5, %c0_6] : memref<1x1x18x16xbf16, #tpu.memory_space<vmem>>, vector<1x1x18x16xbf16>
    %3 = vector.shape_cast %2 : vector<1x1x18x16xbf16> to vector<18x16xbf16>
    %c0_7 = arith.constant 0 : index
    %c0_8 = arith.constant 0 : index
    %c0_9 = arith.constant 0 : index
    %c0_10 = arith.constant 0 : index
    %4 = vector.load %arg4[%c0_7, %c0_8, %c0_9, %c0_10] : memref<1x1x18x16xbf16, #tpu.memory_space<vmem>>, vector<1x1x18x16xbf16>
    %5 = vector.shape_cast %4 : vector<1x1x18x16xbf16> to vector<18x16xbf16>
    %6 = vector.extract_strided_slice %1 {offsets = [0, 0], sizes = [16, 16], strides = [1, 1]} : vector<18x16xbf16> to vector<16x16xbf16>
    %c0_11 = arith.constant 0 : index
    %c0_12 = arith.constant 0 : index
    %c0_13 = arith.constant 0 : index
    %7 = vector.load %arg5[%c0_11, %c0_12, %c0_13] : memref<9x16x32xbf16, #tpu.memory_space<vmem>>, vector<1x16x32xbf16>
    %8 = vector.shape_cast %7 : vector<1x16x32xbf16> to vector<16x32xbf16>
    %cst = arith.constant dense<0.000000e+00> : vector<16x32xf32>
    %9 = tpu.matmul %6, %8, %cst {dimension_numbers = #tpu.dot_dimension_numbers<[1], [0], [0], [1], [0, 0, 1, 1], [], []>} : vector<16x16xbf16>, vector<16x32xbf16>, vector<16x32xf32> -> vector<16x32xf32>
    %10 = vector.extract_strided_slice %1 {offsets = [1, 0], sizes = [16, 16], strides = [1, 1]} : vector<18x16xbf16> to vector<16x16xbf16>
    %c1 = arith.constant 1 : index
    %c0_14 = arith.constant 0 : index
    %c0_15 = arith.constant 0 : index
    %11 = vector.load %arg5[%c1, %c0_14, %c0_15] : memref<9x16x32xbf16, #tpu.memory_space<vmem>>, vector<1x16x32xbf16>
    %12 = vector.shape_cast %11 : vector<1x16x32xbf16> to vector<16x32xbf16>
    %cst_16 = arith.constant dense<0.000000e+00> : vector<16x32xf32>
    %13 = tpu.matmul %10, %12, %cst_16 {dimension_numbers = #tpu.dot_dimension_numbers<[1], [0], [0], [1], [0, 0, 1, 1], [], []>} : vector<16x16xbf16>, vector<16x32xbf16>, vector<16x32xf32> -> vector<16x32xf32>
    %14 = arith.addf %9, %13 : vector<16x32xf32>
    %15 = vector.extract_strided_slice %1 {offsets = [2, 0], sizes = [16, 16], strides = [1, 1]} : vector<18x16xbf16> to vector<16x16xbf16>
    %c2 = arith.constant 2 : index
    %c0_17 = arith.constant 0 : index
    %c0_18 = arith.constant 0 : index
    %16 = vector.load %arg5[%c2, %c0_17, %c0_18] : memref<9x16x32xbf16, #tpu.memory_space<vmem>>, vector<1x16x32xbf16>
    %17 = vector.shape_cast %16 : vector<1x16x32xbf16> to vector<16x32xbf16>
    %cst_19 = arith.constant dense<0.000000e+00> : vector<16x32xf32>
    %18 = tpu.matmul %15, %17, %cst_19 {dimension_numbers = #tpu.dot_dimension_numbers<[1], [0], [0], [1], [0, 0, 1, 1], [], []>} : vector<16x16xbf16>, vector<16x32xbf16>, vector<16x32xf32> -> vector<16x32xf32>
    %19 = arith.addf %14, %18 : vector<16x32xf32>
    %20 = vector.extract_strided_slice %3 {offsets = [0, 0], sizes = [16, 16], strides = [1, 1]} : vector<18x16xbf16> to vector<16x16xbf16>
    %c3 = arith.constant 3 : index
    %c0_20 = arith.constant 0 : index
    %c0_21 = arith.constant 0 : index
    %21 = vector.load %arg5[%c3, %c0_20, %c0_21] : memref<9x16x32xbf16, #tpu.memory_space<vmem>>, vector<1x16x32xbf16>
    %22 = vector.shape_cast %21 : vector<1x16x32xbf16> to vector<16x32xbf16>
    %cst_22 = arith.constant dense<0.000000e+00> : vector<16x32xf32>
    %23 = tpu.matmul %20, %22, %cst_22 {dimension_numbers = #tpu.dot_dimension_numbers<[1], [0], [0], [1], [0, 0, 1, 1], [], []>} : vector<16x16xbf16>, vector<16x32xbf16>, vector<16x32xf32> -> vector<16x32xf32>
    %24 = arith.addf %19, %23 : vector<16x32xf32>
    %25 = vector.extract_strided_slice %3 {offsets = [1, 0], sizes = [16, 16], strides = [1, 1]} : vector<18x16xbf16> to vector<16x16xbf16>
    %c4 = arith.constant 4 : index
    %c0_23 = arith.constant 0 : index
    %c0_24 = arith.constant 0 : index
    %26 = vector.load %arg5[%c4, %c0_23, %c0_24] : memref<9x16x32xbf16, #tpu.memory_space<vmem>>, vector<1x16x32xbf16>
    %27 = vector.shape_cast %26 : vector<1x16x32xbf16> to vector<16x32xbf16>
    %cst_25 = arith.constant dense<0.000000e+00> : vector<16x32xf32>
    %28 = tpu.matmul %25, %27, %cst_25 {dimension_numbers = #tpu.dot_dimension_numbers<[1], [0], [0], [1], [0, 0, 1, 1], [], []>} : vector<16x16xbf16>, vector<16x32xbf16>, vector<16x32xf32> -> vector<16x32xf32>
    %29 = arith.addf %24, %28 : vector<16x32xf32>
    %30 = vector.extract_strided_slice %3 {offsets = [2, 0], sizes = [16, 16], strides = [1, 1]} : vector<18x16xbf16> to vector<16x16xbf16>
    %c5 = arith.constant 5 : index
    %c0_26 = arith.constant 0 : index
    %c0_27 = arith.constant 0 : index
    %31 = vector.load %arg5[%c5, %c0_26, %c0_27] : memref<9x16x32xbf16, #tpu.memory_space<vmem>>, vector<1x16x32xbf16>
    %32 = vector.shape_cast %31 : vector<1x16x32xbf16> to vector<16x32xbf16>
    %cst_28 = arith.constant dense<0.000000e+00> : vector<16x32xf32>
    %33 = tpu.matmul %30, %32, %cst_28 {dimension_numbers = #tpu.dot_dimension_numbers<[1], [0], [0], [1], [0, 0, 1, 1], [], []>} : vector<16x16xbf16>, vector<16x32xbf16>, vector<16x32xf32> -> vector<16x32xf32>
    %34 = arith.addf %29, %33 : vector<16x32xf32>
    %35 = vector.extract_strided_slice %5 {offsets = [0, 0], sizes = [16, 16], strides = [1, 1]} : vector<18x16xbf16> to vector<16x16xbf16>
    %c6 = arith.constant 6 : index
    %c0_29 = arith.constant 0 : index
    %c0_30 = arith.constant 0 : index
    %36 = vector.load %arg5[%c6, %c0_29, %c0_30] : memref<9x16x32xbf16, #tpu.memory_space<vmem>>, vector<1x16x32xbf16>
    %37 = vector.shape_cast %36 : vector<1x16x32xbf16> to vector<16x32xbf16>
    %cst_31 = arith.constant dense<0.000000e+00> : vector<16x32xf32>
    %38 = tpu.matmul %35, %37, %cst_31 {dimension_numbers = #tpu.dot_dimension_numbers<[1], [0], [0], [1], [0, 0, 1, 1], [], []>} : vector<16x16xbf16>, vector<16x32xbf16>, vector<16x32xf32> -> vector<16x32xf32>
    %39 = arith.addf %34, %38 : vector<16x32xf32>
    %40 = vector.extract_strided_slice %5 {offsets = [1, 0], sizes = [16, 16], strides = [1, 1]} : vector<18x16xbf16> to vector<16x16xbf16>
    %c7 = arith.constant 7 : index
    %c0_32 = arith.constant 0 : index
    %c0_33 = arith.constant 0 : index
    %41 = vector.load %arg5[%c7, %c0_32, %c0_33] : memref<9x16x32xbf16, #tpu.memory_space<vmem>>, vector<1x16x32xbf16>
    %42 = vector.shape_cast %41 : vector<1x16x32xbf16> to vector<16x32xbf16>
    %cst_34 = arith.constant dense<0.000000e+00> : vector<16x32xf32>
    %43 = tpu.matmul %40, %42, %cst_34 {dimension_numbers = #tpu.dot_dimension_numbers<[1], [0], [0], [1], [0, 0, 1, 1], [], []>} : vector<16x16xbf16>, vector<16x32xbf16>, vector<16x32xf32> -> vector<16x32xf32>
    %44 = arith.addf %39, %43 : vector<16x32xf32>
    %45 = vector.extract_strided_slice %5 {offsets = [2, 0], sizes = [16, 16], strides = [1, 1]} : vector<18x16xbf16> to vector<16x16xbf16>
    %c8 = arith.constant 8 : index
    %c0_35 = arith.constant 0 : index
    %c0_36 = arith.constant 0 : index
    %46 = vector.load %arg5[%c8, %c0_35, %c0_36] : memref<9x16x32xbf16, #tpu.memory_space<vmem>>, vector<1x16x32xbf16>
    %47 = vector.shape_cast %46 : vector<1x16x32xbf16> to vector<16x32xbf16>
    %cst_37 = arith.constant dense<0.000000e+00> : vector<16x32xf32>
    %48 = tpu.matmul %45, %47, %cst_37 {dimension_numbers = #tpu.dot_dimension_numbers<[1], [0], [0], [1], [0, 0, 1, 1], [], []>} : vector<16x16xbf16>, vector<16x32xbf16>, vector<16x32xf32> -> vector<16x32xf32>
    %49 = arith.addf %44, %48 : vector<16x32xf32>
    %c0_38 = arith.constant 0 : index
    %c0_39 = arith.constant 0 : index
    %50 = vector.load %arg6[%c0_38, %c0_39] : memref<1x32xf32, #tpu.memory_space<vmem>>, vector<1x32xf32>
    %51 = vector.broadcast %50 : vector<1x32xf32> to vector<16x32xf32>
    %52 = arith.addf %49, %51 : vector<16x32xf32>
    %cst_40 = arith.constant 0.000000e+00 : f32
    %53 = vector.broadcast %cst_40 : f32 to vector<16x32xf32>
    %54 = arith.maximumf %52, %53 : vector<16x32xf32>
    %55 = arith.truncf %54 : vector<16x32xf32> to vector<16x32xbf16>
    %c0_41 = arith.constant 0 : index
    %c0_42 = arith.constant 0 : index
    %c0_43 = arith.constant 0 : index
    %c0_44 = arith.constant 0 : index
    %56 = vector.load %arg7[%c0_41, %c0_42, %c0_43, %c0_44] : memref<1x1x16x32xbf16, #tpu.memory_space<vmem>>, vector<1x1x16x32xbf16>
    %57 = vector.shape_cast %56 : vector<1x1x16x32xbf16> to vector<16x32xbf16>
    %58 = vector.shape_cast %55 : vector<16x32xbf16> to vector<1x1x16x32xbf16>
    tpu.vector_store %arg7[%c0_41, %c0_42, %c0_43, %c0_44], %58 {strides = array<i32>} : memref<1x1x16x32xbf16, #tpu.memory_space<vmem>>, vector<1x1x16x32xbf16>,
    return
  }
  func.func @transform_0(%arg0: i32, %arg1: i32) -> (i32, i32, i32, i32) {
    %c0_i32 = arith.constant 0 : i32
    %0 = arith.addi %arg1, %c0_i32 : i32
    %c0_i32_0 = arith.constant 0 : i32
    %c0_i32_1 = arith.constant 0 : i32
    %c0_i32_2 = arith.constant 0 : i32
    return %arg0, %0, %c0_i32_0, %c0_i32_1 : i32, i32, i32, i32
  }
  func.func @transform_1(%arg0: i32, %arg1: i32) -> (i32, i32, i32, i32) {
    %c1_i32 = arith.constant 1 : i32
    %0 = arith.addi %arg1, %c1_i32 : i32
    %c0_i32 = arith.constant 0 : i32
    %c0_i32_0 = arith.constant 0 : i32
    %c0_i32_1 = arith.constant 0 : i32
    return %arg0, %0, %c0_i32, %c0_i32_0 : i32, i32, i32, i32
  }
  func.func @transform_2(%arg0: i32, %arg1: i32) -> (i32, i32, i32, i32) {
    %c2_i32 = arith.constant 2 : i32
    %0 = arith.addi %arg1, %c2_i32 : i32
    %c0_i32 = arith.constant 0 : i32
    %c0_i32_0 = arith.constant 0 : i32
    %c0_i32_1 = arith.constant 0 : i32
    return %arg0, %0, %c0_i32, %c0_i32_0 : i32, i32, i32, i32
  }
  func.func @transform_3(%arg0: i32, %arg1: i32) -> (i32, i32, i32) {
    %c0_i32 = arith.constant 0 : i32
    %c0_i32_0 = arith.constant 0 : i32
    %c0_i32_1 = arith.constant 0 : i32
    %c0_i32_2 = arith.constant 0 : i32
    return %c0_i32, %c0_i32_0, %c0_i32_1 : i32, i32, i32
  }
  func.func @transform_4(%arg0: i32, %arg1: i32) -> (i32, i32) {
    %c0_i32 = arith.constant 0 : i32
    %c0_i32_0 = arith.constant 0 : i32
    %c0_i32_1 = arith.constant 0 : i32
    return %c0_i32, %c0_i32_0 : i32, i32
  }
  func.func @transform_5(%arg0: i32, %arg1: i32) -> (i32, i32, i32, i32) {
    %c0_i32 = arith.constant 0 : i32
    %c0_i32_0 = arith.constant 0 : i32
    %c0_i32_1 = arith.constant 0 : i32
    return %arg0, %arg1, %c0_i32, %c0_i32_0 : i32, i32, i32, i32
  }
}

module attributes {stable_mosaic.version = 11 : i64} {
  func.func @_head_kernel(%arg0: i32, %arg1: i32, %arg2: memref<1x256x32xbf16, #tpu.memory_space<vmem>>, %arg3: memref<32x8xbf16, #tpu.memory_space<vmem>>, %arg4: memref<1x8xf32, #tpu.memory_space<vmem>>, %arg5: memref<8x4xf32, #tpu.memory_space<vmem>>, %arg6: memref<1x4xf32, #tpu.memory_space<vmem>>, %arg7: memref<1x256x8xf32, #tpu.memory_space<vmem>>, %arg8: memref<1x1x4xf32, #tpu.memory_space<vmem>>, %arg9: memref<1x8xf32, #tpu.memory_space<vmem>>) attributes {dimension_semantics = [#tpu.dimension_semantics<parallel>, #tpu.dimension_semantics<arbitrary>], iteration_bounds = array<i64: 2, 1>, scalar_prefetch = 0 : i64, scratch_operands = 1 : i64, tpu.core_type = #tpu.core_type<tc>, window_params = [{transform_indices = @transform_0, window_bounds = array<i64: 1, 256, 32>}, {pipeline_mode = #tpu.pipeline_mode<synchronous>, transform_indices = @transform_1, window_bounds = array<i64: 32, 8>}, {pipeline_mode = #tpu.pipeline_mode<synchronous>, transform_indices = @transform_2, window_bounds = array<i64: 1, 8>}, {pipeline_mode = #tpu.pipeline_mode<synchronous>, transform_indices = @transform_3, window_bounds = array<i64: 8, 4>}, {pipeline_mode = #tpu.pipeline_mode<synchronous>, transform_indices = @transform_4, window_bounds = array<i64: 1, 4>}, {transform_indices = @transform_5, window_bounds = array<i64: 1, 256, 8>}, {transform_indices = @transform_6, window_bounds = array<i64: 1, 1, 4>}]} {
    %c0_i32 = arith.constant 0 : i32
    %0 = arith.cmpi eq, %arg1, %c0_i32 : i32
    %1 = arith.extui %0 : i1 to i32
    %c0_i32_0 = arith.constant 0 : i32
    %2 = arith.cmpi ne, %1, %c0_i32_0 : i32
    scf.if %2 {
      %cst_19 = arith.constant 0.000000e+00 : f32
      %31 = vector.broadcast %cst_19 : f32 to vector<1x8xf32>
      %c0_20 = arith.constant 0 : index
      %c0_21 = arith.constant 0 : index
      %32 = vector.load %arg9[%c0_20, %c0_21] : memref<1x8xf32, #tpu.memory_space<vmem>>, vector<1x8xf32>
      tpu.vector_store %arg9[%c0_20, %c0_21], %31 {strides = array<i32>} : memref<1x8xf32, #tpu.memory_space<vmem>>, vector<1x8xf32>,
    } else {
    }
    %c0 = arith.constant 0 : index
    %c0_1 = arith.constant 0 : index
    %c0_2 = arith.constant 0 : index
    %3 = vector.load %arg2[%c0, %c0_1, %c0_2] : memref<1x256x32xbf16, #tpu.memory_space<vmem>>, vector<1x256x32xbf16>
    %4 = vector.shape_cast %3 : vector<1x256x32xbf16> to vector<256x32xbf16>
    %c0_3 = arith.constant 0 : index
    %c0_4 = arith.constant 0 : index
    %5 = vector.load %arg3[%c0_3, %c0_4] : memref<32x8xbf16, #tpu.memory_space<vmem>>, vector<32x8xbf16>
    %cst = arith.constant dense<0.000000e+00> : vector<256x8xf32>
    %6 = tpu.matmul %4, %5, %cst {dimension_numbers = #tpu.dot_dimension_numbers<[1], [0], [0], [1], [0, 0, 1, 1], [], []>} : vector<256x32xbf16>, vector<32x8xbf16>, vector<256x8xf32> -> vector<256x8xf32>
    %c0_5 = arith.constant 0 : index
    %c0_6 = arith.constant 0 : index
    %7 = vector.load %arg4[%c0_5, %c0_6] : memref<1x8xf32, #tpu.memory_space<vmem>>, vector<1x8xf32>
    %8 = vector.broadcast %7 : vector<1x8xf32> to vector<256x8xf32>
    %9 = arith.addf %6, %8 : vector<256x8xf32>
    %c0_7 = arith.constant 0 : index
    %c0_8 = arith.constant 0 : index
    %c0_9 = arith.constant 0 : index
    %10 = vector.load %arg7[%c0_7, %c0_8, %c0_9] : memref<1x256x8xf32, #tpu.memory_space<vmem>>, vector<1x256x8xf32>
    %11 = vector.shape_cast %10 : vector<1x256x8xf32> to vector<256x8xf32>
    %12 = vector.shape_cast %9 : vector<256x8xf32> to vector<1x256x8xf32>
    tpu.vector_store %arg7[%c0_7, %c0_8, %c0_9], %12 {strides = array<i32>} : memref<1x256x8xf32, #tpu.memory_space<vmem>>, vector<1x256x8xf32>,
    %cst_10 = arith.constant dense<0xFF800000> : vector<256xf32>
    %13 = vector.multi_reduction <maximumf>, %9, %cst_10 [1] : vector<256x8xf32> to vector<256xf32>
    %14 = vector.shape_cast %13 : vector<256xf32> to vector<256x1xf32>
    %15 = vector.broadcast %14 : vector<256x1xf32> to vector<256x8xf32>
    %16 = arith.subf %9, %15 : vector<256x8xf32>
    %17 = math.exp %16 : vector<256x8xf32>
    %cst_11 = arith.constant dense<0.000000e+00> : vector<256xf32>
    %18 = vector.multi_reduction <add>, %17, %cst_11 [1] : vector<256x8xf32> to vector<256xf32>
    %19 = vector.shape_cast %18 : vector<256xf32> to vector<256x1xf32>
    %20 = tpu.reciprocal %19 {approx = true} : vector<256x1xf32> -> vector<256x1xf32>
    %21 = vector.broadcast %20 : vector<256x1xf32> to vector<256x8xf32>
    %22 = arith.mulf %17, %21 : vector<256x8xf32>
    %c0_12 = arith.constant 0 : index
    %c0_13 = arith.constant 0 : index
    %23 = vector.load %arg9[%c0_12, %c0_13] : memref<1x8xf32, #tpu.memory_space<vmem>>, vector<1x8xf32>
    %cst_14 = arith.constant dense<0.000000e+00> : vector<8xf32>
    %24 = vector.multi_reduction <add>, %22, %cst_14 [0] : vector<256x8xf32> to vector<8xf32>
    %25 = vector.shape_cast %24 : vector<8xf32> to vector<1x8xf32>
    %26 = arith.addf %23, %25 : vector<1x8xf32>
    %c0_15 = arith.constant 0 : index
    %c0_16 = arith.constant 0 : index
    %27 = vector.load %arg9[%c0_15, %c0_16] : memref<1x8xf32, #tpu.memory_space<vmem>>, vector<1x8xf32>
    tpu.vector_store %arg9[%c0_15, %c0_16], %26 {strides = array<i32>} : memref<1x8xf32, #tpu.memory_space<vmem>>, vector<1x8xf32>,
    %c0_i32_17 = arith.constant 0 : i32
    %28 = arith.cmpi eq, %arg1, %c0_i32_17 : i32
    %29 = arith.extui %28 : i1 to i32
    %c0_i32_18 = arith.constant 0 : i32
    %30 = arith.cmpi ne, %29, %c0_i32_18 : i32
    scf.if %30 {
      %c0_19 = arith.constant 0 : index
      %c0_20 = arith.constant 0 : index
      %31 = vector.load %arg9[%c0_19, %c0_20] : memref<1x8xf32, #tpu.memory_space<vmem>>, vector<1x8xf32>
      %cst_21 = arith.constant 3.906250e-03 : f32
      %32 = vector.broadcast %cst_21 : f32 to vector<1x8xf32>
      %33 = arith.mulf %31, %32 : vector<1x8xf32>
      %c0_22 = arith.constant 0 : index
      %c0_23 = arith.constant 0 : index
      %34 = vector.load %arg5[%c0_22, %c0_23] : memref<8x4xf32, #tpu.memory_space<vmem>>, vector<8x4xf32>
      %cst_24 = arith.constant dense<0.000000e+00> : vector<1x4xf32>
      %35 = tpu.matmul %33, %34, %cst_24 {dimension_numbers = #tpu.dot_dimension_numbers<[1], [0], [0], [1], [0, 0, 1, 1], [], []>} : vector<1x8xf32>, vector<8x4xf32>, vector<1x4xf32> -> vector<1x4xf32>
      %c0_25 = arith.constant 0 : index
      %c0_26 = arith.constant 0 : index
      %36 = vector.load %arg6[%c0_25, %c0_26] : memref<1x4xf32, #tpu.memory_space<vmem>>, vector<1x4xf32>
      %37 = arith.addf %35, %36 : vector<1x4xf32>
      %c0_27 = arith.constant 0 : index
      %c0_28 = arith.constant 0 : index
      %c0_29 = arith.constant 0 : index
      %38 = vector.load %arg8[%c0_27, %c0_28, %c0_29] : memref<1x1x4xf32, #tpu.memory_space<vmem>>, vector<1x1x4xf32>
      %39 = vector.shape_cast %38 : vector<1x1x4xf32> to vector<1x4xf32>
      %40 = vector.shape_cast %37 : vector<1x4xf32> to vector<1x1x4xf32>
      tpu.vector_store %arg8[%c0_27, %c0_28, %c0_29], %40 {strides = array<i32>} : memref<1x1x4xf32, #tpu.memory_space<vmem>>, vector<1x1x4xf32>,
    } else {
    }
    return
  }
  func.func @transform_0(%arg0: i32, %arg1: i32) -> (i32, i32, i32) {
    %c0_i32 = arith.constant 0 : i32
    %c0_i32_0 = arith.constant 0 : i32
    return %arg0, %arg1, %c0_i32 : i32, i32, i32
  }
  func.func @transform_1(%arg0: i32, %arg1: i32) -> (i32, i32) {
    %c0_i32 = arith.constant 0 : i32
    %c0_i32_0 = arith.constant 0 : i32
    %c0_i32_1 = arith.constant 0 : i32
    return %c0_i32, %c0_i32_0 : i32, i32
  }
  func.func @transform_2(%arg0: i32, %arg1: i32) -> (i32, i32) {
    %c0_i32 = arith.constant 0 : i32
    %c0_i32_0 = arith.constant 0 : i32
    %c0_i32_1 = arith.constant 0 : i32
    return %c0_i32, %c0_i32_0 : i32, i32
  }
  func.func @transform_3(%arg0: i32, %arg1: i32) -> (i32, i32) {
    %c0_i32 = arith.constant 0 : i32
    %c0_i32_0 = arith.constant 0 : i32
    %c0_i32_1 = arith.constant 0 : i32
    return %c0_i32, %c0_i32_0 : i32, i32
  }
  func.func @transform_4(%arg0: i32, %arg1: i32) -> (i32, i32) {
    %c0_i32 = arith.constant 0 : i32
    %c0_i32_0 = arith.constant 0 : i32
    %c0_i32_1 = arith.constant 0 : i32
    return %c0_i32, %c0_i32_0 : i32, i32
  }
  func.func @transform_5(%arg0: i32, %arg1: i32) -> (i32, i32, i32) {
    %c0_i32 = arith.constant 0 : i32
    %c0_i32_0 = arith.constant 0 : i32
    return %arg0, %arg1, %c0_i32 : i32, i32, i32
  }
  func.func @transform_6(%arg0: i32, %arg1: i32) -> (i32, i32, i32) {
    %c0_i32 = arith.constant 0 : i32
    %c0_i32_0 = arith.constant 0 : i32
    %c0_i32_1 = arith.constant 0 : i32
    return %arg0, %c0_i32, %c0_i32_0 : i32, i32, i32
  }
}

module attributes {stable_mosaic.version = 11 : i64} {
  func.func @_matmul_bias_kernel(%arg0: i32, %arg1: memref<512x16xbf16, #tpu.memory_space<vmem>>, %arg2: memref<16x8xbf16, #tpu.memory_space<vmem>>, %arg3: memref<1x8xf32, #tpu.memory_space<vmem>>, %arg4: memref<512x8xf32, #tpu.memory_space<vmem>>) attributes {dimension_semantics = [#tpu.dimension_semantics<parallel>], iteration_bounds = array<i64: 1>, scalar_prefetch = 0 : i64, scratch_operands = 0 : i64, tpu.core_type = #tpu.core_type<tc>, window_params = [{transform_indices = @transform_0, window_bounds = array<i64: 512, 16>}, {pipeline_mode = #tpu.pipeline_mode<synchronous>, transform_indices = @transform_1, window_bounds = array<i64: 16, 8>}, {pipeline_mode = #tpu.pipeline_mode<synchronous>, transform_indices = @transform_2, window_bounds = array<i64: 1, 8>}, {transform_indices = @transform_3, window_bounds = array<i64: 512, 8>}]} {
    %c0 = arith.constant 0 : index
    %c0_0 = arith.constant 0 : index
    %0 = vector.load %arg1[%c0, %c0_0] : memref<512x16xbf16, #tpu.memory_space<vmem>>, vector<512x16xbf16>
    %c0_1 = arith.constant 0 : index
    %c0_2 = arith.constant 0 : index
    %1 = vector.load %arg2[%c0_1, %c0_2] : memref<16x8xbf16, #tpu.memory_space<vmem>>, vector<16x8xbf16>
    %cst = arith.constant dense<0.000000e+00> : vector<512x8xf32>
    %2 = tpu.matmul %0, %1, %cst {dimension_numbers = #tpu.dot_dimension_numbers<[1], [0], [0], [1], [0, 0, 1, 1], [], []>} : vector<512x16xbf16>, vector<16x8xbf16>, vector<512x8xf32> -> vector<512x8xf32>
    %c0_3 = arith.constant 0 : index
    %c0_4 = arith.constant 0 : index
    %3 = vector.load %arg3[%c0_3, %c0_4] : memref<1x8xf32, #tpu.memory_space<vmem>>, vector<1x8xf32>
    %4 = vector.broadcast %3 : vector<1x8xf32> to vector<512x8xf32>
    %5 = arith.addf %2, %4 : vector<512x8xf32>
    %c0_5 = arith.constant 0 : index
    %c0_6 = arith.constant 0 : index
    %6 = vector.load %arg4[%c0_5, %c0_6] : memref<512x8xf32, #tpu.memory_space<vmem>>, vector<512x8xf32>
    tpu.vector_store %arg4[%c0_5, %c0_6], %5 {strides = array<i32>} : memref<512x8xf32, #tpu.memory_space<vmem>>, vector<512x8xf32>,
    return
  }
  func.func @transform_0(%arg0: i32) -> (i32, i32) {
    %c0_i32 = arith.constant 0 : i32
    %c0_i32_0 = arith.constant 0 : i32
    return %arg0, %c0_i32 : i32, i32
  }
  func.func @transform_1(%arg0: i32) -> (i32, i32) {
    %c0_i32 = arith.constant 0 : i32
    %c0_i32_0 = arith.constant 0 : i32
    %c0_i32_1 = arith.constant 0 : i32
    return %c0_i32, %c0_i32_0 : i32, i32
  }
  func.func @transform_2(%arg0: i32) -> (i32, i32) {
    %c0_i32 = arith.constant 0 : i32
    %c0_i32_0 = arith.constant 0 : i32
    %c0_i32_1 = arith.constant 0 : i32
    return %c0_i32, %c0_i32_0 : i32, i32
  }
  func.func @transform_3(%arg0: i32) -> (i32, i32) {
    %c0_i32 = arith.constant 0 : i32
    %c0_i32_0 = arith.constant 0 : i32
    return %arg0, %c0_i32 : i32, i32
  }
}

</mosaic_0001>

<llo_original>
// kernel: simple_segmentation_forward.4
$region0: #{simple_segmentation_forward.4}
  #allocation0 [shape = 'u32[]', space=smem, size = 0x4, offset = 0x4, fixed_abs, tag = 'smem constant byte address 0x4 - core index']
  #allocation1 [shape = 'u32[72,128]{1,0:T(1,128)}', space=vmem, size = 0x9000, scoped, tag = 'internal scratch']
  %s0 = inlined_call_operand.vmem [shape: bf16[2,18,18,4], index: 0, kind: input, shape index: {}, may-alias: {0,1,2}]
  %s1 = inlined_call_operand.vmem [shape: bf16[2,18,18,4], index: 1, kind: input, shape index: {}, may-alias: {0,1,2}]
  %s2 = inlined_call_operand.vmem [shape: bf16[2,18,18,4], index: 2, kind: input, shape index: {}, may-alias: {0,1,2}]
  %s3 = inlined_call_operand.vmem [shape: bf16[9,4,16], index: 3, kind: input, shape index: {}]
  %s4 = inlined_call_operand.vmem [shape: f32[1,16], index: 4, kind: input, shape index: {}]
  %s5 = inlined_call_operand.vmem [shape: bf16[2,16,16,16], index: 5, kind: output, shape index: {}]
  %s6 = sld [smem:[#allocation0]]
  $region53: #{simple_segmentation_forward.4} parent=0
    _
  %s8 = ssub.s32 1, %s6
  %s9 = scalar_select 0, %s8, %s6
  loop: start=0, step=1, limit=34
  $region2: #{simple_segmentation_forward.4} parent=0 // loop_pre_header
    _
  $region3: #{simple_segmentation_forward.4} parent=0 // loop_header
    %s11 = sphi 0, %s15
    %p12 = scmp.ge.s32.totalorder %s11, 34
    %s18 = sphi 0, %s30
    %s19 = sphi 0, %s26
    %s20 = sphi 0, %s18
    %s21 = sphi 0, %s19
    %s22 = sphi 0, %s20
    %s23 = sphi 0, %s21
    %s35 = sphi 0, %s37
    %s38 = sphi 0, %s35
    %s39 = sphi 0, %s38
    %s55 = sphi 0, %s39
    %s65 = sphi 0, %s67
    %s68 = sphi 0, %s65
    %s69 = sphi 0, %s68
    %s85 = sphi 0, %s69
    %s95 = sphi 0, %s97
    %s98 = sphi 0, %s95
    %s99 = sphi 0, %s98
    %s115 = sphi 0, %s99
    %s119 = sphi 0, %s119
    %s121 = sphi 0, %s119
    %s122 = sphi 0, %s121
    %s136 = sphi 0, %s122
    %s140 = sphi 0, %s140
    %s142 = sphi 0, %s140
    %s143 = sphi 0, %s142
    %s157 = sphi 0, %s143
    %s165 = sphi 0, %s167
    %s168 = sphi 0, %s165
    %s169 = sphi 0, %s168
    %s185 = sphi 0, %s169
  $region4: #{simple_segmentation_forward.4} parent=0 // loop_header_branch
    %14 = sbr.rel (%p12) target = $region8
  $region5: #{simple_segmentation_forward.4} parent=0 // loop_body
    %s16 = ssub.s32 %s11, 1
    %s17 = ssub.s32 %s11, 2
    %s24 = sadd.s32 1, %s19
    %p25 = scmp.ge.s32.totalorder %s24, 16
    %s26 = scalar_select %p25, 0, %s24
    %s27 = sadd.s32 1, %s18
    %s28 = scalar_select %p25, %s27, %s18
    %p29 = scmp.ge.s32.totalorder %s28, 2
    %s30 = scalar_select %p29, 0, %s28
    %s31 = ssub.s32 %s18, %s30
    %s32 = ssub.s32 %s19, %s26
    %s33 = sor.u32 %s31, %s32
    %p34 = scmp.eq.s32.totalorder %s33, 0
    %s36 = sadd.s32 %s35, 1
    %s37 = scalar_select %p34, %s35, %s36
    %p40 = pneg %p34
    %p41 = scmp.eq.s32.totalorder %s11, 31
    %p42 = por %p40, %p41
    %p43 = scmp.ne.s32.totalorder %s35, %s38
    %p44 = scmp.eq.s32.totalorder %s11, 0
    %p45 = por %p43, %p44
    %p46 = scmp.ne.s32.totalorder %s35, %s38
    %p47 = scmp.eq.s32.totalorder %s16, 31
    %p48 = por %p46, %p47
    %p49 = scmp.ne.s32.totalorder %s38, %s39
    %p50 = scmp.eq.s32.totalorder %s16, 0
    %p51 = por %p49, %p50
    %p52 = scmp.ne.s32.totalorder %s38, %s39
    %p53 = scmp.eq.s32.totalorder %s17, 31
    %p54 = por %p52, %p53
    %p56 = scmp.ne.s32.totalorder %s39, %s55
    %p57 = scmp.eq.s32.totalorder %s17, 0
    %p58 = por %p56, %p57
    %s59 = sadd.s32 %s19, 1
    %s60 = sadd.s32 %s26, 1
    %s61 = ssub.s32 %s18, %s30
    %s62 = ssub.s32 %s59, %s60
    %s63 = sor.u32 %s61, %s62
    %p64 = scmp.eq.s32.totalorder %s63, 0
    %s66 = sadd.s32 %s65, 1
    %s67 = scalar_select %p64, %s65, %s66
    %p70 = pneg %p64
    %p71 = scmp.eq.s32.totalorder %s11, 31
    %p72 = por %p70, %p71
    %p73 = scmp.ne.s32.totalorder %s65, %s68
    %p74 = scmp.eq.s32.totalorder %s11, 0
    %p75 = por %p73, %p74
    %p76 = scmp.ne.s32.totalorder %s65, %s68
    %p77 = scmp.eq.s32.totalorder %s16, 31
    %p78 = por %p76, %p77
    %p79 = scmp.ne.s32.totalorder %s68, %s69
    %p80 = scmp.eq.s32.totalorder %s16, 0
    %p81 = por %p79, %p80
    %p82 = scmp.ne.s32.totalorder %s68, %s69
    %p83 = scmp.eq.s32.totalorder %s17, 31
    %p84 = por %p82, %p83
    %p86 = scmp.ne.s32.totalorder %s69, %s85
    %p87 = scmp.eq.s32.totalorder %s17, 0
    %p88 = por %p86, %p87
    %s89 = sadd.s32 %s19, 2
    %s90 = sadd.s32 %s26, 2
    %s91 = ssub.s32 %s18, %s30
    %s92 = ssub.s32 %s89, %s90
    %s93 = sor.u32 %s91, %s92
    %p94 = scmp.eq.s32.totalorder %s93, 0
    %s96 = sadd.s32 %s95, 1
    %s97 = scalar_select %p94, %s95, %s96
    %p100 = pneg %p94
    %p101 = scmp.eq.s32.totalorder %s11, 31
    %p102 = por %p100, %p101
    %p103 = scmp.ne.s32.totalorder %s95, %s98
    %p104 = scmp.eq.s32.totalorder %s11, 0
    %p105 = por %p103, %p104
    %p106 = scmp.ne.s32.totalorder %s95, %s98
    %p107 = scmp.eq.s32.totalorder %s16, 31
    %p108 = por %p106, %p107
    %p109 = scmp.ne.s32.totalorder %s98, %s99
    %p110 = scmp.eq.s32.totalorder %s16, 0
    %p111 = por %p109, %p110
    %p112 = scmp.ne.s32.totalorder %s98, %s99
    %p113 = scmp.eq.s32.totalorder %s17, 31
    %p114 = por %p112, %p113
    %p116 = scmp.ne.s32.totalorder %s99, %s115
    %p117 = scmp.eq.s32.totalorder %s17, 0
    %p118 = por %p116, %p117
    %s120 = sadd.s32 %s119, 1
    %p123 = scmp.eq.s32.totalorder %s11, 31
    %p124 = scmp.ne.s32.totalorder %s119, %s121
    %p125 = scmp.eq.s32.totalorder %s11, 0
    %p126 = por %p124, %p125
    %p127 = scmp.ne.s32.totalorder %s119, %s121
    %p128 = scmp.eq.s32.totalorder %s16, 31
    %p129 = por %p127, %p128
    %p130 = scmp.ne.s32.totalorder %s121, %s122
    %p131 = scmp.eq.s32.totalorder %s16, 0
    %p132 = por %p130, %p131
    %p133 = scmp.ne.s32.totalorder %s121, %s122
    %p134 = scmp.eq.s32.totalorder %s17, 31
    %p135 = por %p133, %p134
    %p137 = scmp.ne.s32.totalorder %s122, %s136
    %p138 = scmp.eq.s32.totalorder %s17, 0
    %p139 = por %p137, %p138
    %s141 = sadd.s32 %s140, 1
    %p144 = scmp.eq.s32.totalorder %s11, 31
    %p145 = scmp.ne.s32.totalorder %s140, %s142
    %p146 = scmp.eq.s32.totalorder %s11, 0
    %p147 = por %p145, %p146
    %p148 = scmp.ne.s32.totalorder %s140, %s142
    %p149 = scmp.eq.s32.totalorder %s16, 31
    %p150 = por %p148, %p149
    %p151 = scmp.ne.s32.totalorder %s142, %s143
    %p152 = scmp.eq.s32.totalorder %s16, 0
    %p153 = por %p151, %p152
    %p154 = scmp.ne.s32.totalorder %s142, %s143
    %p155 = scmp.eq.s32.totalorder %s17, 31
    %p156 = por %p154, %p155
    %p158 = scmp.ne.s32.totalorder %s143, %s157
    %p159 = scmp.eq.s32.totalorder %s17, 0
    %p160 = por %p158, %p159
    %s161 = ssub.s32 %s18, %s30
    %s162 = ssub.s32 %s19, %s26
    %s163 = sor.u32 %s161, %s162
    %p164 = scmp.eq.s32.totalorder %s163, 0
    %s166 = sadd.s32 %s165, 1
    %s167 = scalar_select %p164, %s165, %s166
    %p170 = pneg %p164
    %p171 = scmp.eq.s32.totalorder %s11, 31
    %p172 = por %p170, %p171
    %p173 = scmp.ne.s32.totalorder %s165, %s168
    %p174 = scmp.eq.s32.totalorder %s11, 0
    %p175 = por %p173, %p174
    %p176 = scmp.ne.s32.totalorder %s165, %s168
    %p177 = scmp.eq.s32.totalorder %s16, 31
    %p178 = por %p176, %p177
    %p179 = scmp.ne.s32.totalorder %s168, %s169
    %p180 = scmp.eq.s32.totalorder %s16, 0
    %p181 = por %p179, %p180
    %p182 = scmp.ne.s32.totalorder %s168, %s169
    %p183 = scmp.eq.s32.totalorder %s17, 31
    %p184 = por %p182, %p183
    %p186 = scmp.ne.s32.totalorder %s169, %s185
    %p187 = scmp.eq.s32.totalorder %s17, 0
    %p188 = por %p186, %p187
    %p189 = scmp.le.s32.totalorder 1, %s11
    %p190 = scmp.lt.s32.totalorder %s11, 33
    %p191 = pnand %p189, %p190
    %p192 = pneg %p191
    // Predicated region
    $region9: #{simple_segmentation_forward.4} parent=5 // pred_check
      _
    $region10: #{simple_segmentation_forward.4} parent=5 // pred_check_branch
      %194 = sbr.rel (%p191) target = $region12
    $region11: #{simple_segmentation_forward.4} parent=5 // pred_region
      %s195 = ssub.s32 %s11, 1
      // Predicated region
      $region13: #{simple_segmentation_forward.4} parent=11 // pred_check
        %p196 = pneg %p132
      $region14: #{simple_segmentation_forward.4} parent=11 // pred_check_branch
        %198 = sbr.rel (%p196) target = $region16
      $region15: #{simple_segmentation_forward.4} parent=11 // pred_region
        _
      $region16: #{simple_segmentation_forward.4} parent=11 // pred_fallthru
        _
      // Predicated region
      $region17: #{simple_segmentation_forward.4} parent=11 // pred_check
        %p199 = pneg %p153
      $region18: #{simple_segmentation_forward.4} parent=11 // pred_check_branch
        %201 = sbr.rel (%p199) target = $region20
      $region19: #{simple_segmentation_forward.4} parent=11 // pred_region
        _
      $region20: #{simple_segmentation_forward.4} parent=11 // pred_fallthru
        _
    $region12: #{simple_segmentation_forward.4} parent=5 // pred_fallthru
      _
    %p202 = scmp.lt.s32.totalorder %s11, 32
    // Predicated region
    $region21: #{simple_segmentation_forward.4} parent=5 // pred_check
      %p203 = pneg %p202
    $region22: #{simple_segmentation_forward.4} parent=5 // pred_check_branch
      %205 = sbr.rel (%p203) target = $region24
    $region23: #{simple_segmentation_forward.4} parent=5 // pred_region
      // Predicated region
      $region25: #{simple_segmentation_forward.4} parent=23 // pred_check
        %p206 = pneg %p45
      $region26: #{simple_segmentation_forward.4} parent=23 // pred_check_branch
        %208 = sbr.rel (%p206) target = $region28
      $region27: #{simple_segmentation_forward.4} parent=23 // pred_region
        %p209 = scmp.lt.s32.totalorder %s18, 1
        %s210 = scalar_select %p209, %s18, 1
        %p211 = scmp.lt.s32.totalorder %s19, 17
        %s212 = scalar_select %p211, %s19, 17
        %s213 = smul.addr %s212, 3
        %s214 = smul.addr %s210, 54
        %s215 = sadd.s32 %s213, %s214
        %s216 = smul.addr %s215, 4
        %s217 = scalar_lea.vmem %s0, %s216
      $region28: #{simple_segmentation_forward.4} parent=23 // pred_fallthru
        _
      // Predicated region
      $region29: #{simple_segmentation_forward.4} parent=23 // pred_check
        %p218 = pneg %p75
      $region30: #{simple_segmentation_forward.4} parent=23 // pred_check_branch
        %220 = sbr.rel (%p218) target = $region32
      $region31: #{simple_segmentation_forward.4} parent=23 // pred_region
        %s221 = sadd.s32 %s19, 1
        %p222 = scmp.lt.s32.totalorder %s18, 1
        %s223 = scalar_select %p222, %s18, 1
        %p224 = scmp.lt.s32.totalorder %s221, 17
        %s225 = scalar_select %p224, %s221, 17
        %s226 = smul.addr %s225, 3
        %s227 = smul.addr %s223, 54
        %s228 = sadd.s32 %s226, %s227
        %s229 = smul.addr %s228, 4
        %s230 = scalar_lea.vmem %s1, %s229
        %s231 = sadd.s32 %s19, 1
      $region32: #{simple_segmentation_forward.4} parent=23 // pred_fallthru
        _
      // Predicated region
      $region33: #{simple_segmentation_forward.4} parent=23 // pred_check
        %p232 = pneg %p105
      $region34: #{simple_segmentation_forward.4} parent=23 // pred_check_branch
        %234 = sbr.rel (%p232) target = $region36
      $region35: #{simple_segmentation_forward.4} parent=23 // pred_region
        %s235 = sadd.s32 %s19, 2
        %p236 = scmp.lt.s32.totalorder %s18, 1
        %s237 = scalar_select %p236, %s18, 1
        %p238 = scmp.lt.s32.totalorder %s235, 17
        %s239 = scalar_select %p238, %s235, 17
        %s240 = smul.addr %s239, 3
        %s241 = smul.addr %s237, 54
        %s242 = sadd.s32 %s240, %s241
        %s243 = smul.addr %s242, 4
        %s244 = scalar_lea.vmem %s2, %s243
        %s245 = sadd.s32 %s19, 2
      $region36: #{simple_segmentation_forward.4} parent=23 // pred_fallthru
        _
    $region24: #{simple_segmentation_forward.4} parent=5 // pred_fallthru
      _
    %p246 = scmp.le.s32.totalorder 1, %s11
    %p247 = scmp.lt.s32.totalorder %s11, 33
    %p248 = pnand %p246, %p247
    %p249 = pneg %p248
    // Predicated region
    $region37: #{simple_segmentation_forward.4} parent=5 // pred_check
      _
    $region38: #{simple_segmentation_forward.4} parent=5 // pred_check_branch
      %251 = sbr.rel (%p248) target = $region40
    $region39: #{simple_segmentation_forward.4} parent=5 // pred_region
      %s252 = ssub.s32 %s11, 1
      %p253 = scmp.lt.s32.totalorder %s20, 1
      %s254 = scalar_select %p253, %s20, 1
      %p255 = scmp.lt.s32.totalorder %s21, 17
      %s256 = scalar_select %p255, %s21, 17
      %s257 = smul.addr %s256, 3
      %s258 = smul.addr %s254, 54
      %s259 = sadd.s32 %s257, %s258
      %s260 = smul.addr %s259, 4
      %s261 = scalar_lea.vmem %s0, %s260
      %p262 = pneg %p51
      %p263 = pneg %p48
      %s264 = sadd.s32 %s21, 1
      %p265 = scmp.lt.s32.totalorder %s20, 1
      %s266 = scalar_select %p265, %s20, 1
      %p267 = scmp.lt.s32.totalorder %s264, 17
      %s268 = scalar_select %p267, %s264, 17
      %s269 = smul.addr %s268, 3
      %s270 = smul.addr %s266, 54
      %s271 = sadd.s32 %s269, %s270
      %s272 = smul.addr %s271, 4
      %s273 = scalar_lea.vmem %s1, %s272
      %p274 = pneg %p81
      %p275 = pneg %p78
      %s276 = sadd.s32 %s21, 2
      %p277 = scmp.lt.s32.totalorder %s20, 1
      %s278 = scalar_select %p277, %s20, 1
      %p279 = scmp.lt.s32.totalorder %s276, 17
      %s280 = scalar_select %p279, %s276, 17
      %s281 = smul.addr %s280, 3
      %s282 = smul.addr %s278, 54
      %s283 = sadd.s32 %s281, %s282
      %s284 = smul.addr %s283, 4
      %s285 = scalar_lea.vmem %s2, %s284
      %p286 = pneg %p111
      %p287 = pneg %p108
      %p288 = pneg %p132
      %p289 = pneg %p129
      %p290 = pneg %p153
      %p291 = pneg %p150
      %p292 = pneg %p181
      %p293 = pneg %p178
      %p294 = scmp.lt.s32.totalorder %s20, 1
      %s295 = scalar_select %p294, %s20, 1
      %p296 = scmp.lt.s32.totalorder %s21, 15
      %s297 = scalar_select %p296, %s21, 15
      %s298 = smul.addr %s297, 2
      %s299 = smul.addr %s295, 32
      %s300 = sadd.s32 %s298, %s299
      %s301 = smul.addr %s300, 4
      %s302 = scalar_lea.vmem %s5, %s301
      %p303 = scmp.lt.s32.totalorder %s20, 1
      %s304 = scalar_select %p303, %s20, 1
      %p305 = scmp.lt.s32.totalorder %s21, 17
      %s306 = scalar_select %p305, %s21, 17
      %s307 = smul.addr %s306, 3
      %s308 = smul.addr %s304, 54
      %s309 = sadd.s32 %s307, %s308
      %s310 = smul.addr %s309, 4
      %s311 = scalar_lea.vmem %s0, %s310
      %s312 = sadd.s32 %s21, 1
      %p313 = scmp.lt.s32.totalorder %s20, 1
      %s314 = scalar_select %p313, %s20, 1
      %p315 = scmp.lt.s32.totalorder %s312, 17
      %s316 = scalar_select %p315, %s312, 17
      %s317 = smul.addr %s316, 3
      %s318 = smul.addr %s314, 54
      %s319 = sadd.s32 %s317, %s318
      %s320 = smul.addr %s319, 4
      %s321 = scalar_lea.vmem %s1, %s320
      %s322 = sadd.s32 %s21, 1
      %s323 = sadd.s32 %s21, 2
      %p324 = scmp.lt.s32.totalorder %s20, 1
      %s325 = scalar_select %p324, %s20, 1
      %p326 = scmp.lt.s32.totalorder %s323, 17
      %s327 = scalar_select %p326, %s323, 17
      %s328 = smul.addr %s327, 3
      %s329 = smul.addr %s325, 54
      %s330 = sadd.s32 %s328, %s329
      %s331 = smul.addr %s330, 4
      %s332 = scalar_lea.vmem %s2, %s331
      %s333 = sadd.s32 %s21, 2
      %p334 = scmp.lt.s32.totalorder %s20, 1
      %s335 = scalar_select %p334, %s20, 1
      %p336 = scmp.lt.s32.totalorder %s21, 15
      %s337 = scalar_select %p336, %s21, 15
      %s338 = smul.addr %s337, 2
      %s339 = smul.addr %s335, 32
      %s340 = sadd.s32 %s338, %s339
      %s341 = smul.addr %s340, 4
      %s342 = scalar_lea.vmem %s5, %s341
      %v344 = vld [vmem:[%s311] sm:$0xf]
      %v345 = vld [vmem:[%s311 + $0x4] sm:$0xf]
      %v346 = vld [vmem:[%s311 + $0x8] sm:$0x1]
      %v347 = vld [vmem:[%s321] sm:$0xf]
      %v348 = vld [vmem:[%s321 + $0x4] sm:$0xf]
      %v349 = vld [vmem:[%s321 + $0x8] sm:$0x1]
      %v350 = vld [vmem:[%s332] sm:$0xf]
      %v351 = vld [vmem:[%s332 + $0x4] sm:$0xf]
      %v352 = vld [vmem:[%s332 + $0x8] sm:$0x1]
      %v353 = vld [vmem:[%s3] sm:$0x3]
      %s354 = scalar_lea.vmem %s3, 2
      %v355 = vld [vmem:[%s354] sm:$0x3]
      %v359 = vunpack.c.l.b16 %v344
      %v360 = vunpack.c.l.b16 %v345
      %v361 = vunpack.c.l.b16 %v346
      %v362 = vpack.c.b16 %v360, %v359
      %v363 = vpack.c.b16 %v361, %v361
      %vm364 = vsmask.f32 7424
      %v366 = vshrl.u32 %v362, 16
      %v368 = vshll.u32 %v362, 16
      %v370 = vrot.slane %v368, 1
      %v371 = vor.u32 %v366, %v370
      %v373 = vshll.u32 %v363, 16
      %v375 = vrot.slane %v373, 1
      %v376 = vsel %vm364, %v371, %v375
      %vm377 = vcmask 31744
      %v379 = vsel %vm377, %v376, 0
      %vm381 = vcmask 1041408
      %v383 = vsel %vm381, %v355, 0
      %385 = vmatpush.bf16.msra.mxu0 0
      %386 = vmatpush.bf16.msra.mxu0 0
      %387 = vmatpush.bf16.msra.mxu0 0
      %388 = vmatpush.bf16.msra.mxu0 0
      %389 = vmatpush.bf16.msra.mxu0 0
      %390 = vmatpush.bf16.msra.mxu0 0
      %391 = vmatpush.bf16.msra.mxu0 0
      %392 = vmatpush.bf16.msra.mxu0 %v383
      %393 = vmatmul.bf16.gmra.mxu0 %v379
      %v394 = vpop.f32.mrf.mxu0
      %v395 = vadd.f32 0.0, %v394
      %v396 = vpop.f32.mrf.mxu0
      %v397 = vadd.f32 0.0, %v396
      %398 = vdwg.mxu0
      %v399 = vsel %vm377, %v362, 0
      %v402 = vsel %vm381, %v353, 0
      %404 = vmatpush.bf16.msra.mxu0 0
      %405 = vmatpush.bf16.msra.mxu0 0
      %406 = vmatpush.bf16.msra.mxu0 0
      %407 = vmatpush.bf16.msra.mxu0 0
      %408 = vmatpush.bf16.msra.mxu0 0
      %409 = vmatpush.bf16.msra.mxu0 0
      %410 = vmatpush.bf16.msra.mxu0 0
      %411 = vmatpush.bf16.msra.mxu0 %v402
      %412 = vmatmul.bf16.gmra.mxu0 %v399
      %v413 = vpop.f32.mrf.mxu0
      %v414 = vadd.f32 %v395, %v413
      %v415 = vpop.f32.mrf.mxu0
      %v416 = vadd.f32 %v397, %v415
      %417 = vdwg.mxu0
      %s418 = scalar_lea.vmem %s3, 4
      %v419 = vld [vmem:[%s418] sm:$0x3]
      %vm420 = vcmask 1046528
      %v421 = vrot.slane %v362, 1
      %v422 = vrot.slane %v363, 1
      %v423 = vsel %vm420, %v421, %v422
      %v425 = vsel %vm377, %v423, 0
      %v428 = vsel %vm381, %v419, 0
      %430 = vmatpush.bf16.msra.mxu0 0
      %431 = vmatpush.bf16.msra.mxu0 0
      %432 = vmatpush.bf16.msra.mxu0 0
      %433 = vmatpush.bf16.msra.mxu0 0
      %434 = vmatpush.bf16.msra.mxu0 0
      %435 = vmatpush.bf16.msra.mxu0 0
      %436 = vmatpush.bf16.msra.mxu0 0
      %437 = vmatpush.bf16.msra.mxu0 %v428
      %438 = vmatmul.bf16.gmra.mxu0 %v425
      %v439 = vpop.f32.mrf.mxu0
      %v440 = vadd.f32 0.0, %v439
      %v441 = vpop.f32.mrf.mxu0
      %v442 = vadd.f32 0.0, %v441
      %443 = vdwg.mxu0
      %v444 = vadd.f32 %v414, %v440
      %v445 = vadd.f32 %v416, %v442
      %s446 = scalar_lea.vmem %s3, 6
      %v447 = vld [vmem:[%s446] sm:$0x3]
      %v450 = vunpack.c.l.b16 %v347
      %v451 = vunpack.c.l.b16 %v348
      %v452 = vpack.c.b16 %v451, %v450
      %v454 = vsel %vm377, %v452, 0
      %v457 = vsel %vm381, %v447, 0
      %459 = vmatpush.bf16.msra.mxu0 0
      %460 = vmatpush.bf16.msra.mxu0 0
      %461 = vmatpush.bf16.msra.mxu0 0
      %462 = vmatpush.bf16.msra.mxu0 0
      %463 = vmatpush.bf16.msra.mxu0 0
      %464 = vmatpush.bf16.msra.mxu0 0
      %465 = vmatpush.bf16.msra.mxu0 0
      %466 = vmatpush.bf16.msra.mxu0 %v457
      %467 = vmatmul.bf16.gmra.mxu0 %v454
      %v468 = vpop.f32.mrf.mxu0
      %v469 = vadd.f32 0.0, %v468
      %v470 = vpop.f32.mrf.mxu0
      %v471 = vadd.f32 0.0, %v470
      %472 = vdwg.mxu0
      %v473 = vadd.f32 %v444, %v469
      %v474 = vadd.f32 %v445, %v471
      %s475 = scalar_lea.vmem %s3, 8
      %v476 = vld [vmem:[%s475] sm:$0x3]
      %v478 = vunpack.c.l.b16 %v349
      %v479 = vpack.c.b16 %v478, %v478
      %v480 = vshrl.u32 %v452, 16
      %v482 = vshll.u32 %v452, 16
      %v484 = vrot.slane %v482, 1
      %v485 = vor.u32 %v480, %v484
      %v487 = vshll.u32 %v479, 16
      %v489 = vrot.slane %v487, 1
      %v490 = vsel %vm364, %v485, %v489
      %v492 = vsel %vm377, %v490, 0
      %v495 = vsel %vm381, %v476, 0
      %497 = vmatpush.bf16.msra.mxu0 0
      %498 = vmatpush.bf16.msra.mxu0 0
      %499 = vmatpush.bf16.msra.mxu0 0
      %500 = vmatpush.bf16.msra.mxu0 0
      %501 = vmatpush.bf16.msra.mxu0 0
      %502 = vmatpush.bf16.msra.mxu0 0
      %503 = vmatpush.bf16.msra.mxu0 0
      %504 = vmatpush.bf16.msra.mxu0 %v495
      %505 = vmatmul.bf16.gmra.mxu0 %v492
      %v506 = vpop.f32.mrf.mxu0
      %v507 = vadd.f32 0.0, %v506
      %v508 = vpop.f32.mrf.mxu0
      %v509 = vadd.f32 0.0, %v508
      %510 = vdwg.mxu0
      %v511 = vadd.f32 %v473, %v507
      %v512 = vadd.f32 %v474, %v509
      %s513 = scalar_lea.vmem %s3, 10
      %v514 = vld [vmem:[%s513] sm:$0x3]
      %v515 = vrot.slane %v452, 1
      %v516 = vrot.slane %v479, 1
      %v517 = vsel %vm420, %v515, %v516
      %v519 = vsel %vm377, %v517, 0
      %v522 = vsel %vm381, %v514, 0
      %524 = vmatpush.bf16.msra.mxu0 0
      %525 = vmatpush.bf16.msra.mxu0 0
      %526 = vmatpush.bf16.msra.mxu0 0
      %527 = vmatpush.bf16.msra.mxu0 0
      %528 = vmatpush.bf16.msra.mxu0 0
      %529 = vmatpush.bf16.msra.mxu0 0
      %530 = vmatpush.bf16.msra.mxu0 0
      %531 = vmatpush.bf16.msra.mxu0 %v522
      %532 = vmatmul.bf16.gmra.mxu0 %v519
      %v533 = vpop.f32.mrf.mxu0
      %v534 = vadd.f32 0.0, %v533
      %v535 = vpop.f32.mrf.mxu0
      %v536 = vadd.f32 0.0, %v535
      %537 = vdwg.mxu0
      %v538 = vadd.f32 %v511, %v534
      %v539 = vadd.f32 %v512, %v536
      %s540 = scalar_lea.vmem %s3, 12
      %v541 = vld [vmem:[%s540] sm:$0x3]
      %v544 = vunpack.c.l.b16 %v350
      %v545 = vunpack.c.l.b16 %v351
      %v546 = vpack.c.b16 %v545, %v544
      %v548 = vsel %vm377, %v546, 0
      %v551 = vsel %vm381, %v541, 0
      %553 = vmatpush.bf16.msra.mxu0 0
      %554 = vmatpush.bf16.msra.mxu0 0
      %555 = vmatpush.bf16.msra.mxu0 0
      %556 = vmatpush.bf16.msra.mxu0 0
      %557 = vmatpush.bf16.msra.mxu0 0
      %558 = vmatpush.bf16.msra.mxu0 0
      %559 = vmatpush.bf16.msra.mxu0 0
      %560 = vmatpush.bf16.msra.mxu0 %v551
      %561 = vmatmul.bf16.gmra.mxu0 %v548
      %v562 = vpop.f32.mrf.mxu0
      %v563 = vadd.f32 0.0, %v562
      %v564 = vpop.f32.mrf.mxu0
      %v565 = vadd.f32 0.0, %v564
      %566 = vdwg.mxu0
      %v567 = vadd.f32 %v538, %v563
      %v568 = vadd.f32 %v539, %v565
      %s569 = scalar_lea.vmem %s3, 14
      %v570 = vld [vmem:[%s569] sm:$0x3]
      %v572 = vunpack.c.l.b16 %v352
      %v573 = vpack.c.b16 %v572, %v572
      %v574 = vshrl.u32 %v546, 16
      %v576 = vshll.u32 %v546, 16
      %v578 = vrot.slane %v576, 1
      %v579 = vor.u32 %v574, %v578
      %v581 = vshll.u32 %v573, 16
      %v583 = vrot.slane %v581, 1
      %v584 = vsel %vm364, %v579, %v583
      %v586 = vsel %vm377, %v584, 0
      %v589 = vsel %vm381, %v570, 0
      %591 = vmatpush.bf16.msra.mxu0 0
      %592 = vmatpush.bf16.msra.mxu0 0
      %593 = vmatpush.bf16.msra.mxu0 0
      %594 = vmatpush.bf16.msra.mxu0 0
      %595 = vmatpush.bf16.msra.mxu0 0
      %596 = vmatpush.bf16.msra.mxu0 0
      %597 = vmatpush.bf16.msra.mxu0 0
      %598 = vmatpush.bf16.msra.mxu0 %v589
      %599 = vmatmul.bf16.gmra.mxu0 %v586
      %v600 = vpop.f32.mrf.mxu0
      %v601 = vadd.f32 0.0, %v600
      %v602 = vpop.f32.mrf.mxu0
      %v603 = vadd.f32 0.0, %v602
      %604 = vdwg.mxu0
      %v605 = vadd.f32 %v567, %v601
      %v606 = vadd.f32 %v568, %v603
      %s607 = scalar_lea.vmem %s3, 16
      %v608 = vld [vmem:[%s607] sm:$0x3]
      %v609 = vrot.slane %v546, 1
      %v610 = vrot.slane %v573, 1
      %v611 = vsel %vm420, %v609, %v610
      %v613 = vsel %vm377, %v611, 0
      %v616 = vsel %vm381, %v608, 0
      %618 = vmatpush.bf16.msra.mxu0 0
      %619 = vmatpush.bf16.msra.mxu0 0
      %620 = vmatpush.bf16.msra.mxu0 0
      %621 = vmatpush.bf16.msra.mxu0 0
      %622 = vmatpush.bf16.msra.mxu0 0
      %623 = vmatpush.bf16.msra.mxu0 0
      %624 = vmatpush.bf16.msra.mxu0 0
      %625 = vmatpush.bf16.msra.mxu0 %v616
      %626 = vmatmul.bf16.gmra.mxu0 %v613
      %v627 = vpop.f32.mrf.mxu0
      %v628 = vadd.f32 0.0, %v627
      %v629 = vpop.f32.mrf.mxu0
      %v630 = vadd.f32 0.0, %v629
      %631 = vdwg.mxu0
      %v632 = vadd.f32 %v605, %v628
      %v633 = vadd.f32 %v606, %v630
      %v634 = vld [vmem:[%s4] sm:$0x1]
      %v636 = vperm.slane %v634, 0
      %v638 = vadd.f32 %v632, %v636
      %v639 = vadd.f32 %v633, %v636
      %v640 = vmax.f32 %v638, 0.0
      %v641 = vmax.f32 %v639, 0.0
      %v642 = vpack.c.bf16 %v640, %v640
      %v643 = vpack.c.bf16 %v641, %v641
      %vm644 = vcmask 125952
      %645 = vst.msk [vmem:[%s342] sm:$0xf] %vm644, %v642
      %646 = vst.msk [vmem:[%s342 + $0x4] sm:$0xf] %vm644, %v643
      %p647 = scmp.lt.s32.totalorder %s20, 1
      %s648 = scalar_select %p647, %s20, 1
      %p649 = scmp.lt.s32.totalorder %s21, 15
      %s650 = scalar_select %p649, %s21, 15
      %s651 = smul.addr %s650, 2
      %s652 = smul.addr %s648, 32
      %s653 = sadd.s32 %s651, %s652
      %s654 = smul.addr %s653, 4
      %s655 = scalar_lea.vmem %s5, %s654
      // Predicated region
      $region41: #{simple_segmentation_forward.4} parent=39 // pred_check
        %p656 = pneg %p178
      $region42: #{simple_segmentation_forward.4} parent=39 // pred_check_branch
        %658 = sbr.rel (%p656) target = $region44
      $region43: #{simple_segmentation_forward.4} parent=39 // pred_region
        _
      $region44: #{simple_segmentation_forward.4} parent=39 // pred_fallthru
        _
    $region40: #{simple_segmentation_forward.4} parent=5 // pred_fallthru
      _
    %p659 = scmp.le.s32.totalorder 2, %s11
    // Predicated region
    $region45: #{simple_segmentation_forward.4} parent=5 // pred_check
      %p660 = pneg %p659
    $region46: #{simple_segmentation_forward.4} parent=5 // pred_check_branch
      %662 = sbr.rel (%p660) target = $region48
    $region47: #{simple_segmentation_forward.4} parent=5 // pred_region
      %s663 = ssub.s32 %s11, 2
      // Predicated region
      $region49: #{simple_segmentation_forward.4} parent=47 // pred_check
        %p664 = pneg %p184
      $region50: #{simple_segmentation_forward.4} parent=47 // pred_check_branch
        %666 = sbr.rel (%p664) target = $region52
      $region51: #{simple_segmentation_forward.4} parent=47 // pred_region
        %p667 = scmp.lt.s32.totalorder %s22, 1
        %s668 = scalar_select %p667, %s22, 1
        %p669 = scmp.lt.s32.totalorder %s23, 15
        %s670 = scalar_select %p669, %s23, 15
        %s671 = smul.addr %s670, 2
        %s672 = smul.addr %s668, 32
        %s673 = sadd.s32 %s671, %s672
        %s674 = smul.addr %s673, 4
        %s675 = scalar_lea.vmem %s5, %s674
      $region52: #{simple_segmentation_forward.4} parent=47 // pred_fallthru
        _
    $region48: #{simple_segmentation_forward.4} parent=5 // pred_fallthru
      _
  $region6: #{simple_segmentation_forward.4} parent=0 // loop_footer
    %s15 = sadd.s32 1, %s11
  $region7: #{simple_segmentation_forward.4} parent=0 // loop_footer_branch
    %10 = sbr.rel target = $region3
  $region8: #{simple_segmentation_forward.4} parent=0 // loop_exit
    _

// kernel: simple_segmentation_forward.5
$region0: #{simple_segmentation_forward.5}
  #allocation0 [shape = 'u32[]', space=smem, size = 0x4, offset = 0x4, fixed_abs, tag = 'smem constant byte address 0x4 - core index']
  #allocation1 [shape = 'u32[72,128]{1,0:T(1,128)}', space=vmem, size = 0x9000, scoped, tag = 'internal scratch']
  %s0 = inlined_call_operand.vmem [shape: bf16[2,18,18,16], index: 0, kind: input, shape index: {}, may-alias: {0,1,2}]
  %s1 = inlined_call_operand.vmem [shape: bf16[2,18,18,16], index: 1, kind: input, shape index: {}, may-alias: {0,1,2}]
  %s2 = inlined_call_operand.vmem [shape: bf16[2,18,18,16], index: 2, kind: input, shape index: {}, may-alias: {0,1,2}]
  %s3 = inlined_call_operand.vmem [shape: bf16[9,16,32], index: 3, kind: input, shape index: {}]
  %s4 = inlined_call_operand.vmem [shape: f32[1,32], index: 4, kind: input, shape index: {}]
  %s5 = inlined_call_operand.vmem [shape: bf16[2,16,16,32], index: 5, kind: output, shape index: {}]
  %s6 = sld [smem:[#allocation0]]
  $region53: #{simple_segmentation_forward.5} parent=0
    _
  %s8 = ssub.s32 1, %s6
  %s9 = scalar_select 0, %s8, %s6
  loop: start=0, step=1, limit=34
  $region2: #{simple_segmentation_forward.5} parent=0 // loop_pre_header
    _
  $region3: #{simple_segmentation_forward.5} parent=0 // loop_header
    %s11 = sphi 0, %s15
    %p12 = scmp.ge.s32.totalorder %s11, 34
    %s18 = sphi 0, %s30
    %s19 = sphi 0, %s26
    %s20 = sphi 0, %s18
    %s21 = sphi 0, %s19
    %s22 = sphi 0, %s20
    %s23 = sphi 0, %s21
    %s35 = sphi 0, %s37
    %s38 = sphi 0, %s35
    %s39 = sphi 0, %s38
    %s55 = sphi 0, %s39
    %s65 = sphi 0, %s67
    %s68 = sphi 0, %s65
    %s69 = sphi 0, %s68
    %s85 = sphi 0, %s69
    %s95 = sphi 0, %s97
    %s98 = sphi 0, %s95
    %s99 = sphi 0, %s98
    %s115 = sphi 0, %s99
    %s119 = sphi 0, %s119
    %s121 = sphi 0, %s119
    %s122 = sphi 0, %s121
    %s136 = sphi 0, %s122
    %s140 = sphi 0, %s140
    %s142 = sphi 0, %s140
    %s143 = sphi 0, %s142
    %s157 = sphi 0, %s143
    %s165 = sphi 0, %s167
    %s168 = sphi 0, %s165
    %s169 = sphi 0, %s168
    %s185 = sphi 0, %s169
  $region4: #{simple_segmentation_forward.5} parent=0 // loop_header_branch
    %14 = sbr.rel (%p12) target = $region8
  $region5: #{simple_segmentation_forward.5} parent=0 // loop_body
    %s16 = ssub.s32 %s11, 1
    %s17 = ssub.s32 %s11, 2
    %s24 = sadd.s32 1, %s19
    %p25 = scmp.ge.s32.totalorder %s24, 16
    %s26 = scalar_select %p25, 0, %s24
    %s27 = sadd.s32 1, %s18
    %s28 = scalar_select %p25, %s27, %s18
    %p29 = scmp.ge.s32.totalorder %s28, 2
    %s30 = scalar_select %p29, 0, %s28
    %s31 = ssub.s32 %s18, %s30
    %s32 = ssub.s32 %s19, %s26
    %s33 = sor.u32 %s31, %s32
    %p34 = scmp.eq.s32.totalorder %s33, 0
    %s36 = sadd.s32 %s35, 1
    %s37 = scalar_select %p34, %s35, %s36
    %p40 = pneg %p34
    %p41 = scmp.eq.s32.totalorder %s11, 31
    %p42 = por %p40, %p41
    %p43 = scmp.ne.s32.totalorder %s35, %s38
    %p44 = scmp.eq.s32.totalorder %s11, 0
    %p45 = por %p43, %p44
    %p46 = scmp.ne.s32.totalorder %s35, %s38
    %p47 = scmp.eq.s32.totalorder %s16, 31
    %p48 = por %p46, %p47
    %p49 = scmp.ne.s32.totalorder %s38, %s39
    %p50 = scmp.eq.s32.totalorder %s16, 0
    %p51 = por %p49, %p50
    %p52 = scmp.ne.s32.totalorder %s38, %s39
    %p53 = scmp.eq.s32.totalorder %s17, 31
    %p54 = por %p52, %p53
    %p56 = scmp.ne.s32.totalorder %s39, %s55
    %p57 = scmp.eq.s32.totalorder %s17, 0
    %p58 = por %p56, %p57
    %s59 = sadd.s32 %s19, 1
    %s60 = sadd.s32 %s26, 1
    %s61 = ssub.s32 %s18, %s30
    %s62 = ssub.s32 %s59, %s60
    %s63 = sor.u32 %s61, %s62
    %p64 = scmp.eq.s32.totalorder %s63, 0
    %s66 = sadd.s32 %s65, 1
    %s67 = scalar_select %p64, %s65, %s66
    %p70 = pneg %p64
    %p71 = scmp.eq.s32.totalorder %s11, 31
    %p72 = por %p70, %p71
    %p73 = scmp.ne.s32.totalorder %s65, %s68
    %p74 = scmp.eq.s32.totalorder %s11, 0
    %p75 = por %p73, %p74
    %p76 = scmp.ne.s32.totalorder %s65, %s68
    %p77 = scmp.eq.s32.totalorder %s16, 31
    %p78 = por %p76, %p77
    %p79 = scmp.ne.s32.totalorder %s68, %s69
    %p80 = scmp.eq.s32.totalorder %s16, 0
    %p81 = por %p79, %p80
    %p82 = scmp.ne.s32.totalorder %s68, %s69
    %p83 = scmp.eq.s32.totalorder %s17, 31
    %p84 = por %p82, %p83
    %p86 = scmp.ne.s32.totalorder %s69, %s85
    %p87 = scmp.eq.s32.totalorder %s17, 0
    %p88 = por %p86, %p87
    %s89 = sadd.s32 %s19, 2
    %s90 = sadd.s32 %s26, 2
    %s91 = ssub.s32 %s18, %s30
    %s92 = ssub.s32 %s89, %s90
    %s93 = sor.u32 %s91, %s92
    %p94 = scmp.eq.s32.totalorder %s93, 0
    %s96 = sadd.s32 %s95, 1
    %s97 = scalar_select %p94, %s95, %s96
    %p100 = pneg %p94
    %p101 = scmp.eq.s32.totalorder %s11, 31
    %p102 = por %p100, %p101
    %p103 = scmp.ne.s32.totalorder %s95, %s98
    %p104 = scmp.eq.s32.totalorder %s11, 0
    %p105 = por %p103, %p104
    %p106 = scmp.ne.s32.totalorder %s95, %s98
    %p107 = scmp.eq.s32.totalorder %s16, 31
    %p108 = por %p106, %p107
    %p109 = scmp.ne.s32.totalorder %s98, %s99
    %p110 = scmp.eq.s32.totalorder %s16, 0
    %p111 = por %p109, %p110
    %p112 = scmp.ne.s32.totalorder %s98, %s99
    %p113 = scmp.eq.s32.totalorder %s17, 31
    %p114 = por %p112, %p113
    %p116 = scmp.ne.s32.totalorder %s99, %s115
    %p117 = scmp.eq.s32.totalorder %s17, 0
    %p118 = por %p116, %p117
    %s120 = sadd.s32 %s119, 1
    %p123 = scmp.eq.s32.totalorder %s11, 31
    %p124 = scmp.ne.s32.totalorder %s119, %s121
    %p125 = scmp.eq.s32.totalorder %s11, 0
    %p126 = por %p124, %p125
    %p127 = scmp.ne.s32.totalorder %s119, %s121
    %p128 = scmp.eq.s32.totalorder %s16, 31
    %p129 = por %p127, %p128
    %p130 = scmp.ne.s32.totalorder %s121, %s122
    %p131 = scmp.eq.s32.totalorder %s16, 0
    %p132 = por %p130, %p131
    %p133 = scmp.ne.s32.totalorder %s121, %s122
    %p134 = scmp.eq.s32.totalorder %s17, 31
    %p135 = por %p133, %p134
    %p137 = scmp.ne.s32.totalorder %s122, %s136
    %p138 = scmp.eq.s32.totalorder %s17, 0
    %p139 = por %p137, %p138
    %s141 = sadd.s32 %s140, 1
    %p144 = scmp.eq.s32.totalorder %s11, 31
    %p145 = scmp.ne.s32.totalorder %s140, %s142
    %p146 = scmp.eq.s32.totalorder %s11, 0
    %p147 = por %p145, %p146
    %p148 = scmp.ne.s32.totalorder %s140, %s142
    %p149 = scmp.eq.s32.totalorder %s16, 31
    %p150 = por %p148, %p149
    %p151 = scmp.ne.s32.totalorder %s142, %s143
    %p152 = scmp.eq.s32.totalorder %s16, 0
    %p153 = por %p151, %p152
    %p154 = scmp.ne.s32.totalorder %s142, %s143
    %p155 = scmp.eq.s32.totalorder %s17, 31
    %p156 = por %p154, %p155
    %p158 = scmp.ne.s32.totalorder %s143, %s157
    %p159 = scmp.eq.s32.totalorder %s17, 0
    %p160 = por %p158, %p159
    %s161 = ssub.s32 %s18, %s30
    %s162 = ssub.s32 %s19, %s26
    %s163 = sor.u32 %s161, %s162
    %p164 = scmp.eq.s32.totalorder %s163, 0
    %s166 = sadd.s32 %s165, 1
    %s167 = scalar_select %p164, %s165, %s166
    %p170 = pneg %p164
    %p171 = scmp.eq.s32.totalorder %s11, 31
    %p172 = por %p170, %p171
    %p173 = scmp.ne.s32.totalorder %s165, %s168
    %p174 = scmp.eq.s32.totalorder %s11, 0
    %p175 = por %p173, %p174
    %p176 = scmp.ne.s32.totalorder %s165, %s168
    %p177 = scmp.eq.s32.totalorder %s16, 31
    %p178 = por %p176, %p177
    %p179 = scmp.ne.s32.totalorder %s168, %s169
    %p180 = scmp.eq.s32.totalorder %s16, 0
    %p181 = por %p179, %p180
    %p182 = scmp.ne.s32.totalorder %s168, %s169
    %p183 = scmp.eq.s32.totalorder %s17, 31
    %p184 = por %p182, %p183
    %p186 = scmp.ne.s32.totalorder %s169, %s185
    %p187 = scmp.eq.s32.totalorder %s17, 0
    %p188 = por %p186, %p187
    %p189 = scmp.le.s32.totalorder 1, %s11
    %p190 = scmp.lt.s32.totalorder %s11, 33
    %p191 = pnand %p189, %p190
    %p192 = pneg %p191
    // Predicated region
    $region9: #{simple_segmentation_forward.5} parent=5 // pred_check
      _
    $region10: #{simple_segmentation_forward.5} parent=5 // pred_check_branch
      %194 = sbr.rel (%p191) target = $region12
    $region11: #{simple_segmentation_forward.5} parent=5 // pred_region
      %s195 = ssub.s32 %s11, 1
      // Predicated region
      $region13: #{simple_segmentation_forward.5} parent=11 // pred_check
        %p196 = pneg %p132
      $region14: #{simple_segmentation_forward.5} parent=11 // pred_check_branch
        %198 = sbr.rel (%p196) target = $region16
      $region15: #{simple_segmentation_forward.5} parent=11 // pred_region
        _
      $region16: #{simple_segmentation_forward.5} parent=11 // pred_fallthru
        _
      // Predicated region
      $region17: #{simple_segmentation_forward.5} parent=11 // pred_check
        %p199 = pneg %p153
      $region18: #{simple_segmentation_forward.5} parent=11 // pred_check_branch
        %201 = sbr.rel (%p199) target = $region20
      $region19: #{simple_segmentation_forward.5} parent=11 // pred_region
        _
      $region20: #{simple_segmentation_forward.5} parent=11 // pred_fallthru
        _
    $region12: #{simple_segmentation_forward.5} parent=5 // pred_fallthru
      _
    %p202 = scmp.lt.s32.totalorder %s11, 32
    // Predicated region
    $region21: #{simple_segmentation_forward.5} parent=5 // pred_check
      %p203 = pneg %p202
    $region22: #{simple_segmentation_forward.5} parent=5 // pred_check_branch
      %205 = sbr.rel (%p203) target = $region24
    $region23: #{simple_segmentation_forward.5} parent=5 // pred_region
      // Predicated region
      $region25: #{simple_segmentation_forward.5} parent=23 // pred_check
        %p206 = pneg %p45
      $region26: #{simple_segmentation_forward.5} parent=23 // pred_check_branch
        %208 = sbr.rel (%p206) target = $region28
      $region27: #{simple_segmentation_forward.5} parent=23 // pred_region
        %p209 = scmp.lt.s32.totalorder %s18, 1
        %s210 = scalar_select %p209, %s18, 1
        %p211 = scmp.lt.s32.totalorder %s19, 17
        %s212 = scalar_select %p211, %s19, 17
        %s213 = smul.addr %s212, 3
        %s214 = smul.addr %s210, 54
        %s215 = sadd.s32 %s213, %s214
        %s216 = smul.addr %s215, 4
        %s217 = scalar_lea.vmem %s0, %s216
      $region28: #{simple_segmentation_forward.5} parent=23 // pred_fallthru
        _
      // Predicated region
      $region29: #{simple_segmentation_forward.5} parent=23 // pred_check
        %p218 = pneg %p75
      $region30: #{simple_segmentation_forward.5} parent=23 // pred_check_branch
        %220 = sbr.rel (%p218) target = $region32
      $region31: #{simple_segmentation_forward.5} parent=23 // pred_region
        %s221 = sadd.s32 %s19, 1
        %p222 = scmp.lt.s32.totalorder %s18, 1
        %s223 = scalar_select %p222, %s18, 1
        %p224 = scmp.lt.s32.totalorder %s221, 17
        %s225 = scalar_select %p224, %s221, 17
        %s226 = smul.addr %s225, 3
        %s227 = smul.addr %s223, 54
        %s228 = sadd.s32 %s226, %s227
        %s229 = smul.addr %s228, 4
        %s230 = scalar_lea.vmem %s1, %s229
        %s231 = sadd.s32 %s19, 1
      $region32: #{simple_segmentation_forward.5} parent=23 // pred_fallthru
        _
      // Predicated region
      $region33: #{simple_segmentation_forward.5} parent=23 // pred_check
        %p232 = pneg %p105
      $region34: #{simple_segmentation_forward.5} parent=23 // pred_check_branch
        %234 = sbr.rel (%p232) target = $region36
      $region35: #{simple_segmentation_forward.5} parent=23 // pred_region
        %s235 = sadd.s32 %s19, 2
        %p236 = scmp.lt.s32.totalorder %s18, 1
        %s237 = scalar_select %p236, %s18, 1
        %p238 = scmp.lt.s32.totalorder %s235, 17
        %s239 = scalar_select %p238, %s235, 17
        %s240 = smul.addr %s239, 3
        %s241 = smul.addr %s237, 54
        %s242 = sadd.s32 %s240, %s241
        %s243 = smul.addr %s242, 4
        %s244 = scalar_lea.vmem %s2, %s243
        %s245 = sadd.s32 %s19, 2
      $region36: #{simple_segmentation_forward.5} parent=23 // pred_fallthru
        _
    $region24: #{simple_segmentation_forward.5} parent=5 // pred_fallthru
      _
    %p246 = scmp.le.s32.totalorder 1, %s11
    %p247 = scmp.lt.s32.totalorder %s11, 33
    %p248 = pnand %p246, %p247
    %p249 = pneg %p248
    // Predicated region
    $region37: #{simple_segmentation_forward.5} parent=5 // pred_check
      _
    $region38: #{simple_segmentation_forward.5} parent=5 // pred_check_branch
      %251 = sbr.rel (%p248) target = $region40
    $region39: #{simple_segmentation_forward.5} parent=5 // pred_region
      %s252 = ssub.s32 %s11, 1
      %p253 = scmp.lt.s32.totalorder %s20, 1
      %s254 = scalar_select %p253, %s20, 1
      %p255 = scmp.lt.s32.totalorder %s21, 17
      %s256 = scalar_select %p255, %s21, 17
      %s257 = smul.addr %s256, 3
      %s258 = smul.addr %s254, 54
      %s259 = sadd.s32 %s257, %s258
      %s260 = smul.addr %s259, 4
      %s261 = scalar_lea.vmem %s0, %s260
      %p262 = pneg %p51
      %p263 = pneg %p48
      %s264 = sadd.s32 %s21, 1
      %p265 = scmp.lt.s32.totalorder %s20, 1
      %s266 = scalar_select %p265, %s20, 1
      %p267 = scmp.lt.s32.totalorder %s264, 17
      %s268 = scalar_select %p267, %s264, 17
      %s269 = smul.addr %s268, 3
      %s270 = smul.addr %s266, 54
      %s271 = sadd.s32 %s269, %s270
      %s272 = smul.addr %s271, 4
      %s273 = scalar_lea.vmem %s1, %s272
      %p274 = pneg %p81
      %p275 = pneg %p78
      %s276 = sadd.s32 %s21, 2
      %p277 = scmp.lt.s32.totalorder %s20, 1
      %s278 = scalar_select %p277, %s20, 1
      %p279 = scmp.lt.s32.totalorder %s276, 17
      %s280 = scalar_select %p279, %s276, 17
      %s281 = smul.addr %s280, 3
      %s282 = smul.addr %s278, 54
      %s283 = sadd.s32 %s281, %s282
      %s284 = smul.addr %s283, 4
      %s285 = scalar_lea.vmem %s2, %s284
      %p286 = pneg %p111
      %p287 = pneg %p108
      %p288 = pneg %p132
      %p289 = pneg %p129
      %p290 = pneg %p153
      %p291 = pneg %p150
      %p292 = pneg %p181
      %p293 = pneg %p178
      %p294 = scmp.lt.s32.totalorder %s20, 1
      %s295 = scalar_select %p294, %s20, 1
      %p296 = scmp.lt.s32.totalorder %s21, 15
      %s297 = scalar_select %p296, %s21, 15
      %s298 = smul.addr %s297, 2
      %s299 = smul.addr %s295, 32
      %s300 = sadd.s32 %s298, %s299
      %s301 = smul.addr %s300, 4
      %s302 = scalar_lea.vmem %s5, %s301
      %p303 = scmp.lt.s32.totalorder %s20, 1
      %s304 = scalar_select %p303, %s20, 1
      %p305 = scmp.lt.s32.totalorder %s21, 17
      %s306 = scalar_select %p305, %s21, 17
      %s307 = smul.addr %s306, 3
      %s308 = smul.addr %s304, 54
      %s309 = sadd.s32 %s307, %s308
      %s310 = smul.addr %s309, 4
      %s311 = scalar_lea.vmem %s0, %s310
      %s312 = sadd.s32 %s21, 1
      %p313 = scmp.lt.s32.totalorder %s20, 1
      %s314 = scalar_select %p313, %s20, 1
      %p315 = scmp.lt.s32.totalorder %s312, 17
      %s316 = scalar_select %p315, %s312, 17
      %s317 = smul.addr %s316, 3
      %s318 = smul.addr %s314, 54
      %s319 = sadd.s32 %s317, %s318
      %s320 = smul.addr %s319, 4
      %s321 = scalar_lea.vmem %s1, %s320
      %s322 = sadd.s32 %s21, 1
      %s323 = sadd.s32 %s21, 2
      %p324 = scmp.lt.s32.totalorder %s20, 1
      %s325 = scalar_select %p324, %s20, 1
      %p326 = scmp.lt.s32.totalorder %s323, 17
      %s327 = scalar_select %p326, %s323, 17
      %s328 = smul.addr %s327, 3
      %s329 = smul.addr %s325, 54
      %s330 = sadd.s32 %s328, %s329
      %s331 = smul.addr %s330, 4
      %s332 = scalar_lea.vmem %s2, %s331
      %s333 = sadd.s32 %s21, 2
      %p334 = scmp.lt.s32.totalorder %s20, 1
      %s335 = scalar_select %p334, %s20, 1
      %p336 = scmp.lt.s32.totalorder %s21, 15
      %s337 = scalar_select %p336, %s21, 15
      %s338 = smul.addr %s337, 2
      %s339 = smul.addr %s335, 32
      %s340 = sadd.s32 %s338, %s339
      %s341 = smul.addr %s340, 4
      %s342 = scalar_lea.vmem %s5, %s341
      %v344 = vld [vmem:[%s311] sm:$0xf]
      %v345 = vld [vmem:[%s311 + $0x4] sm:$0xf]
      %v346 = vld [vmem:[%s311 + $0x8] sm:$0x1]
      %v347 = vld [vmem:[%s321] sm:$0xf]
      %v348 = vld [vmem:[%s321 + $0x4] sm:$0xf]
      %v349 = vld [vmem:[%s321 + $0x8] sm:$0x1]
      %v350 = vld [vmem:[%s332] sm:$0xf]
      %v351 = vld [vmem:[%s332 + $0x4] sm:$0xf]
      %v352 = vld [vmem:[%s332 + $0x8] sm:$0x1]
      %v353 = vld [vmem:[%s3] sm:$0xf]
      %v354 = vld [vmem:[%s3 + $0x4] sm:$0xf]
      %s355 = scalar_lea.vmem %s3, 8
      %v356 = vld [vmem:[%s355] sm:$0xf]
      %v357 = vld [vmem:[%s355 + $0x4] sm:$0xf]
      %v361 = vunpack.c.l.b16 %v344
      %v362 = vunpack.c.l.b16 %v345
      %v363 = vunpack.c.l.b16 %v346
      %v364 = vpack.c.b16 %v362, %v361
      %v365 = vpack.c.b16 %v363, %v363
      %vm366 = vsmask.f32 7424
      %v368 = vshrl.u32 %v364, 16
      %v370 = vshll.u32 %v364, 16
      %v372 = vrot.slane %v370, 1
      %v373 = vor.u32 %v368, %v372
      %v375 = vshll.u32 %v365, 16
      %v377 = vrot.slane %v375, 1
      %v378 = vsel %vm366, %v373, %v377
      %v381 = vunpack.c.l.b16 %v356
      %v382 = vunpack.c.l.b16 %v357
      %v383 = vpack.c.b16 %v382, %v381
      %vm385 = vcmask 130048
      %v387 = vsel %vm385, %v378, 0
      %389 = vmatpush.bf16.msra.mxu0 0
      %390 = vmatpush.bf16.msra.mxu0 0
      %391 = vmatpush.bf16.msra.mxu0 0
      %392 = vmatpush.bf16.msra.mxu0 0
      %393 = vmatpush.bf16.msra.mxu0 0
      %394 = vmatpush.bf16.msra.mxu0 0
      %395 = vmatpush.bf16.msra.mxu0 0
      %396 = vmatpush.bf16.msra.mxu0 %v383
      %397 = vmatmul.bf16.gmra.mxu0 %v387
      %v398 = vpop.f32.mrf.mxu0
      %v399 = vadd.f32 0.0, %v398
      %v400 = vpop.f32.mrf.mxu0
      %v401 = vadd.f32 0.0, %v400
      %402 = vdwg.mxu0
      %v405 = vunpack.c.l.b16 %v353
      %v406 = vunpack.c.l.b16 %v354
      %v407 = vpack.c.b16 %v406, %v405
      %v409 = vsel %vm385, %v364, 0
      %411 = vmatpush.bf16.msra.mxu0 0
      %412 = vmatpush.bf16.msra.mxu0 0
      %413 = vmatpush.bf16.msra.mxu0 0
      %414 = vmatpush.bf16.msra.mxu0 0
      %415 = vmatpush.bf16.msra.mxu0 0
      %416 = vmatpush.bf16.msra.mxu0 0
      %417 = vmatpush.bf16.msra.mxu0 0
      %418 = vmatpush.bf16.msra.mxu0 %v407
      %419 = vmatmul.bf16.gmra.mxu0 %v409
      %v420 = vpop.f32.mrf.mxu0
      %v421 = vadd.f32 %v399, %v420
      %v422 = vpop.f32.mrf.mxu0
      %v423 = vadd.f32 %v401, %v422
      %424 = vdwg.mxu0
      %s425 = scalar_lea.vmem %s3, 16
      %v426 = vld [vmem:[%s425] sm:$0xf]
      %v427 = vld [vmem:[%s425 + $0x4] sm:$0xf]
      %vm428 = vcmask 1046528
      %v429 = vrot.slane %v364, 1
      %v430 = vrot.slane %v365, 1
      %v431 = vsel %vm428, %v429, %v430
      %v434 = vunpack.c.l.b16 %v426
      %v435 = vunpack.c.l.b16 %v427
      %v436 = vpack.c.b16 %v435, %v434
      %v439 = vsel %vm385, %v431, 0
      %441 = vmatpush.bf16.msra.mxu0 0
      %442 = vmatpush.bf16.msra.mxu0 0
      %443 = vmatpush.bf16.msra.mxu0 0
      %444 = vmatpush.bf16.msra.mxu0 0
      %445 = vmatpush.bf16.msra.mxu0 0
      %446 = vmatpush.bf16.msra.mxu0 0
      %447 = vmatpush.bf16.msra.mxu0 0
      %448 = vmatpush.bf16.msra.mxu0 %v436
      %449 = vmatmul.bf16.gmra.mxu0 %v439
      %v450 = vpop.f32.mrf.mxu0
      %v451 = vadd.f32 0.0, %v450
      %v452 = vpop.f32.mrf.mxu0
      %v453 = vadd.f32 0.0, %v452
      %454 = vdwg.mxu0
      %v455 = vadd.f32 %v421, %v451
      %v456 = vadd.f32 %v423, %v453
      %s457 = scalar_lea.vmem %s3, 24
      %v458 = vld [vmem:[%s457] sm:$0xf]
      %v459 = vld [vmem:[%s457 + $0x4] sm:$0xf]
      %v462 = vunpack.c.l.b16 %v347
      %v463 = vunpack.c.l.b16 %v348
      %v464 = vpack.c.b16 %v463, %v462
      %v467 = vunpack.c.l.b16 %v458
      %v468 = vunpack.c.l.b16 %v459
      %v469 = vpack.c.b16 %v468, %v467
      %v472 = vsel %vm385, %v464, 0
      %474 = vmatpush.bf16.msra.mxu0 0
      %475 = vmatpush.bf16.msra.mxu0 0
      %476 = vmatpush.bf16.msra.mxu0 0
      %477 = vmatpush.bf16.msra.mxu0 0
      %478 = vmatpush.bf16.msra.mxu0 0
      %479 = vmatpush.bf16.msra.mxu0 0
      %480 = vmatpush.bf16.msra.mxu0 0
      %481 = vmatpush.bf16.msra.mxu0 %v469
      %482 = vmatmul.bf16.gmra.mxu0 %v472
      %v483 = vpop.f32.mrf.mxu0
      %v484 = vadd.f32 0.0, %v483
      %v485 = vpop.f32.mrf.mxu0
      %v486 = vadd.f32 0.0, %v485
      %487 = vdwg.mxu0
      %v488 = vadd.f32 %v455, %v484
      %v489 = vadd.f32 %v456, %v486
      %s490 = scalar_lea.vmem %s3, 32
      %v491 = vld [vmem:[%s490] sm:$0xf]
      %v492 = vld [vmem:[%s490 + $0x4] sm:$0xf]
      %v494 = vunpack.c.l.b16 %v349
      %v495 = vpack.c.b16 %v494, %v494
      %v496 = vshrl.u32 %v464, 16
      %v498 = vshll.u32 %v464, 16
      %v500 = vrot.slane %v498, 1
      %v501 = vor.u32 %v496, %v500
      %v503 = vshll.u32 %v495, 16
      %v505 = vrot.slane %v503, 1
      %v506 = vsel %vm366, %v501, %v505
      %v509 = vunpack.c.l.b16 %v491
      %v510 = vunpack.c.l.b16 %v492
      %v511 = vpack.c.b16 %v510, %v509
      %v514 = vsel %vm385, %v506, 0
      %516 = vmatpush.bf16.msra.mxu0 0
      %517 = vmatpush.bf16.msra.mxu0 0
      %518 = vmatpush.bf16.msra.mxu0 0
      %519 = vmatpush.bf16.msra.mxu0 0
      %520 = vmatpush.bf16.msra.mxu0 0
      %521 = vmatpush.bf16.msra.mxu0 0
      %522 = vmatpush.bf16.msra.mxu0 0
      %523 = vmatpush.bf16.msra.mxu0 %v511
      %524 = vmatmul.bf16.gmra.mxu0 %v514
      %v525 = vpop.f32.mrf.mxu0
      %v526 = vadd.f32 0.0, %v525
      %v527 = vpop.f32.mrf.mxu0
      %v528 = vadd.f32 0.0, %v527
      %529 = vdwg.mxu0
      %v530 = vadd.f32 %v488, %v526
      %v531 = vadd.f32 %v489, %v528
      %s532 = scalar_lea.vmem %s3, 40
      %v533 = vld [vmem:[%s532] sm:$0xf]
      %v534 = vld [vmem:[%s532 + $0x4] sm:$0xf]
      %v535 = vrot.slane %v464, 1
      %v536 = vrot.slane %v495, 1
      %v537 = vsel %vm428, %v535, %v536
      %v540 = vunpack.c.l.b16 %v533
      %v541 = vunpack.c.l.b16 %v534
      %v542 = vpack.c.b16 %v541, %v540
      %v545 = vsel %vm385, %v537, 0
      %547 = vmatpush.bf16.msra.mxu0 0
      %548 = vmatpush.bf16.msra.mxu0 0
      %549 = vmatpush.bf16.msra.mxu0 0
      %550 = vmatpush.bf16.msra.mxu0 0
      %551 = vmatpush.bf16.msra.mxu0 0
      %552 = vmatpush.bf16.msra.mxu0 0
      %553 = vmatpush.bf16.msra.mxu0 0
      %554 = vmatpush.bf16.msra.mxu0 %v542
      %555 = vmatmul.bf16.gmra.mxu0 %v545
      %v556 = vpop.f32.mrf.mxu0
      %v557 = vadd.f32 0.0, %v556
      %v558 = vpop.f32.mrf.mxu0
      %v559 = vadd.f32 0.0, %v558
      %560 = vdwg.mxu0
      %v561 = vadd.f32 %v530, %v557
      %v562 = vadd.f32 %v531, %v559
      %s563 = scalar_lea.vmem %s3, 48
      %v564 = vld [vmem:[%s563] sm:$0xf]
      %v565 = vld [vmem:[%s563 + $0x4] sm:$0xf]
      %v568 = vunpack.c.l.b16 %v350
      %v569 = vunpack.c.l.b16 %v351
      %v570 = vpack.c.b16 %v569, %v568
      %v573 = vunpack.c.l.b16 %v564
      %v574 = vunpack.c.l.b16 %v565
      %v575 = vpack.c.b16 %v574, %v573
      %v578 = vsel %vm385, %v570, 0
      %580 = vmatpush.bf16.msra.mxu0 0
      %581 = vmatpush.bf16.msra.mxu0 0
      %582 = vmatpush.bf16.msra.mxu0 0
      %583 = vmatpush.bf16.msra.mxu0 0
      %584 = vmatpush.bf16.msra.mxu0 0
      %585 = vmatpush.bf16.msra.mxu0 0
      %586 = vmatpush.bf16.msra.mxu0 0
      %587 = vmatpush.bf16.msra.mxu0 %v575
      %588 = vmatmul.bf16.gmra.mxu0 %v578
      %v589 = vpop.f32.mrf.mxu0
      %v590 = vadd.f32 0.0, %v589
      %v591 = vpop.f32.mrf.mxu0
      %v592 = vadd.f32 0.0, %v591
      %593 = vdwg.mxu0
      %v594 = vadd.f32 %v561, %v590
      %v595 = vadd.f32 %v562, %v592
      %s596 = scalar_lea.vmem %s3, 56
      %v597 = vld [vmem:[%s596] sm:$0xf]
      %v598 = vld [vmem:[%s596 + $0x4] sm:$0xf]
      %v600 = vunpack.c.l.b16 %v352
      %v601 = vpack.c.b16 %v600, %v600
      %v602 = vshrl.u32 %v570, 16
      %v604 = vshll.u32 %v570, 16
      %v606 = vrot.slane %v604, 1
      %v607 = vor.u32 %v602, %v606
      %v609 = vshll.u32 %v601, 16
      %v611 = vrot.slane %v609, 1
      %v612 = vsel %vm366, %v607, %v611
      %v615 = vunpack.c.l.b16 %v597
      %v616 = vunpack.c.l.b16 %v598
      %v617 = vpack.c.b16 %v616, %v615
      %v620 = vsel %vm385, %v612, 0
      %622 = vmatpush.bf16.msra.mxu0 0
      %623 = vmatpush.bf16.msra.mxu0 0
      %624 = vmatpush.bf16.msra.mxu0 0
      %625 = vmatpush.bf16.msra.mxu0 0
      %626 = vmatpush.bf16.msra.mxu0 0
      %627 = vmatpush.bf16.msra.mxu0 0
      %628 = vmatpush.bf16.msra.mxu0 0
      %629 = vmatpush.bf16.msra.mxu0 %v617
      %630 = vmatmul.bf16.gmra.mxu0 %v620
      %v631 = vpop.f32.mrf.mxu0
      %v632 = vadd.f32 0.0, %v631
      %v633 = vpop.f32.mrf.mxu0
      %v634 = vadd.f32 0.0, %v633
      %635 = vdwg.mxu0
      %v636 = vadd.f32 %v594, %v632
      %v637 = vadd.f32 %v595, %v634
      %s638 = scalar_lea.vmem %s3, 64
      %v639 = vld [vmem:[%s638] sm:$0xf]
      %v640 = vld [vmem:[%s638 + $0x4] sm:$0xf]
      %v641 = vrot.slane %v570, 1
      %v642 = vrot.slane %v601, 1
      %v643 = vsel %vm428, %v641, %v642
      %v646 = vunpack.c.l.b16 %v639
      %v647 = vunpack.c.l.b16 %v640
      %v648 = vpack.c.b16 %v647, %v646
      %v651 = vsel %vm385, %v643, 0
      %653 = vmatpush.bf16.msra.mxu0 0
      %654 = vmatpush.bf16.msra.mxu0 0
      %655 = vmatpush.bf16.msra.mxu0 0
      %656 = vmatpush.bf16.msra.mxu0 0
      %657 = vmatpush.bf16.msra.mxu0 0
      %658 = vmatpush.bf16.msra.mxu0 0
      %659 = vmatpush.bf16.msra.mxu0 0
      %660 = vmatpush.bf16.msra.mxu0 %v648
      %661 = vmatmul.bf16.gmra.mxu0 %v651
      %v662 = vpop.f32.mrf.mxu0
      %v663 = vadd.f32 0.0, %v662
      %v664 = vpop.f32.mrf.mxu0
      %v665 = vadd.f32 0.0, %v664
      %666 = vdwg.mxu0
      %v667 = vadd.f32 %v636, %v663
      %v668 = vadd.f32 %v637, %v665
      %v669 = vld [vmem:[%s4] sm:$0x1]
      %v671 = vperm.slane %v669, 0
      %v673 = vadd.f32 %v667, %v671
      %v674 = vadd.f32 %v668, %v671
      %v675 = vmax.f32 %v673, 0.0
      %v676 = vmax.f32 %v674, 0.0
      %v677 = vpack.c.bf16 %v675, %v675
      %v678 = vpack.c.bf16 %v676, %v676
      %vm679 = vcmask 257024
      %680 = vst.msk [vmem:[%s342] sm:$0xf] %vm679, %v677
      %681 = vst.msk [vmem:[%s342 + $0x4] sm:$0xf] %vm679, %v678
      %p682 = scmp.lt.s32.totalorder %s20, 1
      %s683 = scalar_select %p682, %s20, 1
      %p684 = scmp.lt.s32.totalorder %s21, 15
      %s685 = scalar_select %p684, %s21, 15
      %s686 = smul.addr %s685, 2
      %s687 = smul.addr %s683, 32
      %s688 = sadd.s32 %s686, %s687
      %s689 = smul.addr %s688, 4
      %s690 = scalar_lea.vmem %s5, %s689
      // Predicated region
      $region41: #{simple_segmentation_forward.5} parent=39 // pred_check
        %p691 = pneg %p178
      $region42: #{simple_segmentation_forward.5} parent=39 // pred_check_branch
        %693 = sbr.rel (%p691) target = $region44
      $region43: #{simple_segmentation_forward.5} parent=39 // pred_region
        _
      $region44: #{simple_segmentation_forward.5} parent=39 // pred_fallthru
        _
    $region40: #{simple_segmentation_forward.5} parent=5 // pred_fallthru
      _
    %p694 = scmp.le.s32.totalorder 2, %s11
    // Predicated region
    $region45: #{simple_segmentation_forward.5} parent=5 // pred_check
      %p695 = pneg %p694
    $region46: #{simple_segmentation_forward.5} parent=5 // pred_check_branch
      %697 = sbr.rel (%p695) target = $region48
    $region47: #{simple_segmentation_forward.5} parent=5 // pred_region
      %s698 = ssub.s32 %s11, 2
      // Predicated region
      $region49: #{simple_segmentation_forward.5} parent=47 // pred_check
        %p699 = pneg %p184
      $region50: #{simple_segmentation_forward.5} parent=47 // pred_check_branch
        %701 = sbr.rel (%p699) target = $region52
      $region51: #{simple_segmentation_forward.5} parent=47 // pred_region
        %p702 = scmp.lt.s32.totalorder %s22, 1
        %s703 = scalar_select %p702, %s22, 1
        %p704 = scmp.lt.s32.totalorder %s23, 15
        %s705 = scalar_select %p704, %s23, 15
        %s706 = smul.addr %s705, 2
        %s707 = smul.addr %s703, 32
        %s708 = sadd.s32 %s706, %s707
        %s709 = smul.addr %s708, 4
        %s710 = scalar_lea.vmem %s5, %s709
      $region52: #{simple_segmentation_forward.5} parent=47 // pred_fallthru
        _
    $region48: #{simple_segmentation_forward.5} parent=5 // pred_fallthru
      _
  $region6: #{simple_segmentation_forward.5} parent=0 // loop_footer
    %s15 = sadd.s32 1, %s11
  $region7: #{simple_segmentation_forward.5} parent=0 // loop_footer_branch
    %10 = sbr.rel target = $region3
  $region8: #{simple_segmentation_forward.5} parent=0 // loop_exit
    _

// kernel: simple_segmentation_forward.6
$region0: #{simple_segmentation_forward.6}
  #allocation0 [shape = 'u32[]', space=smem, size = 0x4, offset = 0x4, fixed_abs, tag = 'smem constant byte address 0x4 - core index']
  #allocation1 [shape = 'u32[72,128]{1,0:T(1,128)}', space=vmem, size = 0x9000, scoped, tag = 'internal scratch']
  #allocation2 [shape = 'f32[1,8]{1,0:T(1,128)}', space=vmem, size = 0x200, scoped, tag = 'scratch operand']
  %s0 = inlined_call_operand.vmem [shape: bf16[2,256,32], index: 0, kind: input, shape index: {}]
  %s1 = inlined_call_operand.vmem [shape: bf16[32,8], index: 1, kind: input, shape index: {}]
  %s2 = inlined_call_operand.vmem [shape: f32[1,8], index: 2, kind: input, shape index: {}]
  %s3 = inlined_call_operand.vmem [shape: f32[8,4], index: 3, kind: input, shape index: {}]
  %s4 = inlined_call_operand.vmem [shape: f32[1,4], index: 4, kind: input, shape index: {}]
  %s5 = inlined_call_operand.vmem [shape: f32[2,256,8], index: 5, kind: output, shape index: {0}]
  %s6 = inlined_call_operand.hbm [shape: f32[2,1,4], index: 6, kind: output, shape index: {1}]
  %7 = xla_tuple %s5, %s6
  %s8 = sld [smem:[#allocation0]]
  $region69: #{simple_segmentation_forward.6} parent=0
    _
  %s10 = ssub.s32 1, %s8
  %s11 = scalar_select 0, %s10, %s8
  $region1: #{simple_segmentation_forward.6} parent=0
    #allocation3 [shape = 'u8[1024]{0}', space=vmem, size = 0x400, scoped, tag = 'output window, operand 1']
    #allocation4 [shape = 's32[2]{0}', space=sflag, size = 0x8, scoped, tag = 'scoped memory for simple_segmentation_forward.6']
    %12 = vsyncpa [#allocation4], 0
    %s13 = scalar_lea.sflag [#allocation4], 1
    %14 = vsyncpa %s13, 0
    loop: start=0, step=1, limit=4
    $region2: #{simple_segmentation_forward.6} parent=1 // loop_pre_header
      _
    $region3: #{simple_segmentation_forward.6} parent=1 // loop_header
      %s16 = sphi 0, %s20
      %p17 = scmp.ge.s32.totalorder %s16, 4
      %s23 = sphi 0, %s35
      %s24 = sphi 0, %s31
      %s25 = sphi 0, %s23
      %s26 = sphi 0, %s24
      %s27 = sphi 0, %s25
      %s28 = sphi 0, %s26
      %s40 = sphi 0, %s42
      %s43 = sphi 0, %s40
      %s44 = sphi 0, %s43
      %s60 = sphi 0, %s44
      %s64 = sphi 0, %s64
      %s66 = sphi 0, %s64
      %s67 = sphi 0, %s66
      %s81 = sphi 0, %s67
      %s85 = sphi 0, %s85
      %s87 = sphi 0, %s85
      %s88 = sphi 0, %s87
      %s102 = sphi 0, %s88
      %s106 = sphi 0, %s106
      %s108 = sphi 0, %s106
      %s109 = sphi 0, %s108
      %s123 = sphi 0, %s109
      %s127 = sphi 0, %s127
      %s129 = sphi 0, %s127
      %s130 = sphi 0, %s129
      %s144 = sphi 0, %s130
      %s152 = sphi 0, %s154
      %s155 = sphi 0, %s152
      %s156 = sphi 0, %s155
      %s172 = sphi 0, %s156
      %s178 = sphi 0, %s180
      %s181 = sphi 0, %s178
      %s182 = sphi 0, %s181
      %s198 = sphi 0, %s182
    $region4: #{simple_segmentation_forward.6} parent=1 // loop_header_branch
      %19 = sbr.rel (%p17) target = $region8
    $region5: #{simple_segmentation_forward.6} parent=1 // loop_body
      %s21 = ssub.s32 %s16, 1
      %s22 = ssub.s32 %s16, 2
      %s29 = sadd.s32 1, %s24
      %p30 = scmp.ge.s32.totalorder %s29, 1
      %s31 = scalar_select %p30, 0, %s29
      %s32 = sadd.s32 1, %s23
      %s33 = scalar_select %p30, %s32, %s23
      %p34 = scmp.ge.s32.totalorder %s33, 2
      %s35 = scalar_select %p34, 0, %s33
      %s36 = ssub.s32 %s23, %s35
      %s37 = ssub.s32 %s24, %s31
      %s38 = sor.u32 %s36, %s37
      %p39 = scmp.eq.s32.totalorder %s38, 0
      %s41 = sadd.s32 %s40, 1
      %s42 = scalar_select %p39, %s40, %s41
      %p45 = pneg %p39
      %p46 = scmp.eq.s32.totalorder %s16, 1
      %p47 = por %p45, %p46
      %p48 = scmp.ne.s32.totalorder %s40, %s43
      %p49 = scmp.eq.s32.totalorder %s16, 0
      %p50 = por %p48, %p49
      %p51 = scmp.ne.s32.totalorder %s40, %s43
      %p52 = scmp.eq.s32.totalorder %s21, 1
      %p53 = por %p51, %p52
      %p54 = scmp.ne.s32.totalorder %s43, %s44
      %p55 = scmp.eq.s32.totalorder %s21, 0
      %p56 = por %p54, %p55
      %p57 = scmp.ne.s32.totalorder %s43, %s44
      %p58 = scmp.eq.s32.totalorder %s22, 1
      %p59 = por %p57, %p58
      %p61 = scmp.ne.s32.totalorder %s44, %s60
      %p62 = scmp.eq.s32.totalorder %s22, 0
      %p63 = por %p61, %p62
      %s65 = sadd.s32 %s64, 1
      %p68 = scmp.eq.s32.totalorder %s16, 1
      %p69 = scmp.ne.s32.totalorder %s64, %s66
      %p70 = scmp.eq.s32.totalorder %s16, 0
      %p71 = por %p69, %p70
      %p72 = scmp.ne.s32.totalorder %s64, %s66
      %p73 = scmp.eq.s32.totalorder %s21, 1
      %p74 = por %p72, %p73
      %p75 = scmp.ne.s32.totalorder %s66, %s67
      %p76 = scmp.eq.s32.totalorder %s21, 0
      %p77 = por %p75, %p76
      %p78 = scmp.ne.s32.totalorder %s66, %s67
      %p79 = scmp.eq.s32.totalorder %s22, 1
      %p80 = por %p78, %p79
      %p82 = scmp.ne.s32.totalorder %s67, %s81
      %p83 = scmp.eq.s32.totalorder %s22, 0
      %p84 = por %p82, %p83
      %s86 = sadd.s32 %s85, 1
      %p89 = scmp.eq.s32.totalorder %s16, 1
      %p90 = scmp.ne.s32.totalorder %s85, %s87
      %p91 = scmp.eq.s32.totalorder %s16, 0
      %p92 = por %p90, %p91
      %p93 = scmp.ne.s32.totalorder %s85, %s87
      %p94 = scmp.eq.s32.totalorder %s21, 1
      %p95 = por %p93, %p94
      %p96 = scmp.ne.s32.totalorder %s87, %s88
      %p97 = scmp.eq.s32.totalorder %s21, 0
      %p98 = por %p96, %p97
      %p99 = scmp.ne.s32.totalorder %s87, %s88
      %p100 = scmp.eq.s32.totalorder %s22, 1
      %p101 = por %p99, %p100
      %p103 = scmp.ne.s32.totalorder %s88, %s102
      %p104 = scmp.eq.s32.totalorder %s22, 0
      %p105 = por %p103, %p104
      %s107 = sadd.s32 %s106, 1
      %p110 = scmp.eq.s32.totalorder %s16, 1
      %p111 = scmp.ne.s32.totalorder %s106, %s108
      %p112 = scmp.eq.s32.totalorder %s16, 0
      %p113 = por %p111, %p112
      %p114 = scmp.ne.s32.totalorder %s106, %s108
      %p115 = scmp.eq.s32.totalorder %s21, 1
      %p116 = por %p114, %p115
      %p117 = scmp.ne.s32.totalorder %s108, %s109
      %p118 = scmp.eq.s32.totalorder %s21, 0
      %p119 = por %p117, %p118
      %p120 = scmp.ne.s32.totalorder %s108, %s109
      %p121 = scmp.eq.s32.totalorder %s22, 1
      %p122 = por %p120, %p121
      %p124 = scmp.ne.s32.totalorder %s109, %s123
      %p125 = scmp.eq.s32.totalorder %s22, 0
      %p126 = por %p124, %p125
      %s128 = sadd.s32 %s127, 1
      %p131 = scmp.eq.s32.totalorder %s16, 1
      %p132 = scmp.ne.s32.totalorder %s127, %s129
      %p133 = scmp.eq.s32.totalorder %s16, 0
      %p134 = por %p132, %p133
      %p135 = scmp.ne.s32.totalorder %s127, %s129
      %p136 = scmp.eq.s32.totalorder %s21, 1
      %p137 = por %p135, %p136
      %p138 = scmp.ne.s32.totalorder %s129, %s130
      %p139 = scmp.eq.s32.totalorder %s21, 0
      %p140 = por %p138, %p139
      %p141 = scmp.ne.s32.totalorder %s129, %s130
      %p142 = scmp.eq.s32.totalorder %s22, 1
      %p143 = por %p141, %p142
      %p145 = scmp.ne.s32.totalorder %s130, %s144
      %p146 = scmp.eq.s32.totalorder %s22, 0
      %p147 = por %p145, %p146
      %s148 = ssub.s32 %s23, %s35
      %s149 = ssub.s32 %s24, %s31
      %s150 = sor.u32 %s148, %s149
      %p151 = scmp.eq.s32.totalorder %s150, 0
      %s153 = sadd.s32 %s152, 1
      %s154 = scalar_select %p151, %s152, %s153
      %p157 = pneg %p151
      %p158 = scmp.eq.s32.totalorder %s16, 1
      %p159 = por %p157, %p158
      %p160 = scmp.ne.s32.totalorder %s152, %s155
      %p161 = scmp.eq.s32.totalorder %s16, 0
      %p162 = por %p160, %p161
      %p163 = scmp.ne.s32.totalorder %s152, %s155
      %p164 = scmp.eq.s32.totalorder %s21, 1
      %p165 = por %p163, %p164
      %p166 = scmp.ne.s32.totalorder %s155, %s156
      %p167 = scmp.eq.s32.totalorder %s21, 0
      %p168 = por %p166, %p167
      %p169 = scmp.ne.s32.totalorder %s155, %s156
      %p170 = scmp.eq.s32.totalorder %s22, 1
      %p171 = por %p169, %p170
      %p173 = scmp.ne.s32.totalorder %s156, %s172
      %p174 = scmp.eq.s32.totalorder %s22, 0
      %p175 = por %p173, %p174
      %s176 = ssub.s32 %s23, %s35
      %p177 = scmp.eq.s32.totalorder %s176, 0
      %s179 = sadd.s32 %s178, 1
      %s180 = scalar_select %p177, %s178, %s179
      %p183 = pneg %p177
      %p184 = scmp.eq.s32.totalorder %s16, 1
      %p185 = por %p183, %p184
      %p186 = scmp.ne.s32.totalorder %s178, %s181
      %p187 = scmp.eq.s32.totalorder %s16, 0
      %p188 = por %p186, %p187
      %p189 = scmp.ne.s32.totalorder %s178, %s181
      %p190 = scmp.eq.s32.totalorder %s21, 1
      %p191 = por %p189, %p190
      %p192 = scmp.ne.s32.totalorder %s181, %s182
      %p193 = scmp.eq.s32.totalorder %s21, 0
      %p194 = por %p192, %p193
      %p195 = scmp.ne.s32.totalorder %s181, %s182
      %p196 = scmp.eq.s32.totalorder %s22, 1
      %p197 = por %p195, %p196
      %p199 = scmp.ne.s32.totalorder %s182, %s198
      %p200 = scmp.eq.s32.totalorder %s22, 0
      %p201 = por %p199, %p200
      %p202 = scmp.le.s32.totalorder 1, %s16
      %p203 = scmp.lt.s32.totalorder %s16, 3
      %p204 = pnand %p202, %p203
      %p205 = pneg %p204
      // Predicated region
      $region9: #{simple_segmentation_forward.6} parent=5 // pred_check
        _
      $region10: #{simple_segmentation_forward.6} parent=5 // pred_check_branch
        %207 = sbr.rel (%p204) target = $region12
      $region11: #{simple_segmentation_forward.6} parent=5 // pred_region
        %s208 = ssub.s32 %s16, 1
        // Predicated region
        $region13: #{simple_segmentation_forward.6} parent=11 // pred_check
          %p209 = pneg %p77
        $region14: #{simple_segmentation_forward.6} parent=11 // pred_check_branch
          %211 = sbr.rel (%p209) target = $region16
        $region15: #{simple_segmentation_forward.6} parent=11 // pred_region
          _
        $region16: #{simple_segmentation_forward.6} parent=11 // pred_fallthru
          _
        // Predicated region
        $region17: #{simple_segmentation_forward.6} parent=11 // pred_check
          %p212 = pneg %p98
        $region18: #{simple_segmentation_forward.6} parent=11 // pred_check_branch
          %214 = sbr.rel (%p212) target = $region20
        $region19: #{simple_segmentation_forward.6} parent=11 // pred_region
          _
        $region20: #{simple_segmentation_forward.6} parent=11 // pred_fallthru
          _
        // Predicated region
        $region21: #{simple_segmentation_forward.6} parent=11 // pred_check
          %p215 = pneg %p119
        $region22: #{simple_segmentation_forward.6} parent=11 // pred_check_branch
          %217 = sbr.rel (%p215) target = $region24
        $region23: #{simple_segmentation_forward.6} parent=11 // pred_region
          _
        $region24: #{simple_segmentation_forward.6} parent=11 // pred_fallthru
          _
        // Predicated region
        $region25: #{simple_segmentation_forward.6} parent=11 // pred_check
          %p218 = pneg %p140
        $region26: #{simple_segmentation_forward.6} parent=11 // pred_check_branch
          %220 = sbr.rel (%p218) target = $region28
        $region27: #{simple_segmentation_forward.6} parent=11 // pred_region
          _
        $region28: #{simple_segmentation_forward.6} parent=11 // pred_fallthru
          _
      $region12: #{simple_segmentation_forward.6} parent=5 // pred_fallthru
        _
      %p221 = scmp.lt.s32.totalorder %s16, 2
      // Predicated region
      $region29: #{simple_segmentation_forward.6} parent=5 // pred_check
        %p222 = pneg %p221
      $region30: #{simple_segmentation_forward.6} parent=5 // pred_check_branch
        %224 = sbr.rel (%p222) target = $region32
      $region31: #{simple_segmentation_forward.6} parent=5 // pred_region
        // Predicated region
        $region33: #{simple_segmentation_forward.6} parent=31 // pred_check
          %p225 = pneg %p50
        $region34: #{simple_segmentation_forward.6} parent=31 // pred_check_branch
          %227 = sbr.rel (%p225) target = $region36
        $region35: #{simple_segmentation_forward.6} parent=31 // pred_region
          %s228 = smul.u32 32, %s24
          %p229 = scmp.lt.s32.totalorder %s23, 1
          %s230 = scalar_select %p229, %s23, 1
          %p231 = scmp.lt.s32.totalorder %s228, 31
          %s232 = scalar_select %p231, %s228, 31
          %s233 = smul.addr %s230, 32
          %s234 = sadd.s32 %s232, %s233
          %s235 = smul.addr %s234, 4
          %s236 = scalar_lea.vmem %s0, %s235
          %s237 = smul.u32 32, %s24
        $region36: #{simple_segmentation_forward.6} parent=31 // pred_fallthru
          _
      $region32: #{simple_segmentation_forward.6} parent=5 // pred_fallthru
        _
      %p238 = scmp.le.s32.totalorder 1, %s16
      %p239 = scmp.lt.s32.totalorder %s16, 3
      %p240 = pnand %p238, %p239
      %p241 = pneg %p240
      // Predicated region
      $region37: #{simple_segmentation_forward.6} parent=5 // pred_check
        _
      $region38: #{simple_segmentation_forward.6} parent=5 // pred_check_branch
        %243 = sbr.rel (%p240) target = $region40
      $region39: #{simple_segmentation_forward.6} parent=5 // pred_region
        %s244 = ssub.s32 %s16, 1
        %s245 = smul.u32 32, %s26
        %p246 = scmp.lt.s32.totalorder %s25, 1
        %s247 = scalar_select %p246, %s25, 1
        %p248 = scmp.lt.s32.totalorder %s245, 31
        %s249 = scalar_select %p248, %s245, 31
        %s250 = smul.addr %s247, 32
        %s251 = sadd.s32 %s249, %s250
        %s252 = smul.addr %s251, 4
        %s253 = scalar_lea.vmem %s0, %s252
        %p254 = pneg %p56
        %p255 = pneg %p53
        %p256 = pneg %p77
        %p257 = pneg %p74
        %p258 = pneg %p98
        %p259 = pneg %p95
        %p260 = pneg %p119
        %p261 = pneg %p116
        %p262 = pneg %p140
        %p263 = pneg %p137
        %p264 = pneg %p168
        %p265 = pneg %p165
        %s266 = smul.u32 32, %s26
        %p267 = scmp.lt.s32.totalorder %s25, 1
        %s268 = scalar_select %p267, %s25, 1
        %p269 = scmp.lt.s32.totalorder %s266, 31
        %s270 = scalar_select %p269, %s266, 31
        %s271 = smul.addr %s268, 32
        %s272 = sadd.s32 %s270, %s271
        %s273 = smul.addr %s272, 8
        %s274 = scalar_lea.vmem %s5, %s273
        %p275 = pneg %p194
        %p276 = pneg %p191
        %s277 = sand.u32 %s181, 1
        %s278 = scalar_lea.sflag [#allocation4], %s277
        %s279 = sand.u32 %s181, 1
        %s280 = scalar_lea.vmem [#allocation3], %s279
        %s281 = smul.u32 32, %s26
        %p282 = scmp.lt.s32.totalorder %s25, 1
        %s283 = scalar_select %p282, %s25, 1
        %p284 = scmp.lt.s32.totalorder %s281, 31
        %s285 = scalar_select %p284, %s281, 31
        %s286 = smul.addr %s283, 32
        %s287 = sadd.s32 %s285, %s286
        %s288 = smul.addr %s287, 4
        %s289 = scalar_lea.vmem %s0, %s288
        %s290 = smul.u32 32, %s26
        %s291 = smul.u32 32, %s26
        %p292 = scmp.lt.s32.totalorder %s25, 1
        %s293 = scalar_select %p292, %s25, 1
        %p294 = scmp.lt.s32.totalorder %s291, 31
        %s295 = scalar_select %p294, %s291, 31
        %s296 = smul.addr %s293, 32
        %s297 = sadd.s32 %s295, %s296
        %s298 = smul.addr %s297, 8
        %s299 = scalar_lea.vmem %s5, %s298
        %s300 = smul.u32 32, %s26
        %p302 = scmp.eq.s32.totalorder %s26, 0
        // Predicated region
        $region41: #{simple_segmentation_forward.6} parent=39 // pred_check
          %p303 = pneg %p302
        $region42: #{simple_segmentation_forward.6} parent=39 // pred_check_branch
          %305 = sbr.rel (%p303) target = $region44
        $region43: #{simple_segmentation_forward.6} parent=39 // pred_region
          %vm306 = vcmask 57344
          %307 = vst.msk [vmem:[#allocation2] sm:$0x1] %vm306, 0.0
        $region44: #{simple_segmentation_forward.6} parent=39 // pred_fallthru
          _
        %v308 = vld [vmem:[%s289] sm:$0xf]
        %v309 = vld [vmem:[%s289 + $0x4] sm:$0xf]
        %v310 = vld [vmem:[%s289 + $0x8] sm:$0xf]
        %v311 = vld [vmem:[%s289 + $0xc] sm:$0xf]
        %v312 = vld [vmem:[%s289 + $0x10] sm:$0xf]
        %v313 = vld [vmem:[%s289 + $0x14] sm:$0xf]
        %v314 = vld [vmem:[%s289 + $0x18] sm:$0xf]
        %v315 = vld [vmem:[%s289 + $0x1c] sm:$0xf]
        %v316 = vld [vmem:[%s289 + $0x20] sm:$0xf]
        %v317 = vld [vmem:[%s289 + $0x24] sm:$0xf]
        %v318 = vld [vmem:[%s289 + $0x28] sm:$0xf]
        %v319 = vld [vmem:[%s289 + $0x2c] sm:$0xf]
        %v320 = vld [vmem:[%s289 + $0x30] sm:$0xf]
        %v321 = vld [vmem:[%s289 + $0x34] sm:$0xf]
        %v322 = vld [vmem:[%s289 + $0x38] sm:$0xf]
        %v323 = vld [vmem:[%s289 + $0x3c] sm:$0xf]
        %v324 = vld [vmem:[%s289 + $0x40] sm:$0xf]
        %v325 = vld [vmem:[%s289 + $0x44] sm:$0xf]
        %v326 = vld [vmem:[%s289 + $0x48] sm:$0xf]
        %v327 = vld [vmem:[%s289 + $0x4c] sm:$0xf]
        %v328 = vld [vmem:[%s289 + $0x50] sm:$0xf]
        %v329 = vld [vmem:[%s289 + $0x54] sm:$0xf]
        %v330 = vld [vmem:[%s289 + $0x58] sm:$0xf]
        %v331 = vld [vmem:[%s289 + $0x5c] sm:$0xf]
        %v332 = vld [vmem:[%s289 + $0x60] sm:$0xf]
        %v333 = vld [vmem:[%s289 + $0x64] sm:$0xf]
        %v334 = vld [vmem:[%s289 + $0x68] sm:$0xf]
        %v335 = vld [vmem:[%s289 + $0x6c] sm:$0xf]
        %v336 = vld [vmem:[%s289 + $0x70] sm:$0xf]
        %v337 = vld [vmem:[%s289 + $0x74] sm:$0xf]
        %v338 = vld [vmem:[%s289 + $0x78] sm:$0xf]
        %v339 = vld [vmem:[%s289 + $0x7c] sm:$0xf]
        %v340 = vld [vmem:[%s1] sm:$0xf]
        %v341 = vld [vmem:[%s1 + $0x4] sm:$0xf]
        %v342 = vld [vmem:[%s1 + $0x8] sm:$0xf]
        %v343 = vld [vmem:[%s1 + $0xc] sm:$0xf]
        %v344 = vld [vmem:[%s2] sm:$0x1]
        %v346 = vperm.slane %v344, 0
        %v380 = vunpack.c.l.b16 %v308
        %v381 = vunpack.c.l.b16 %v309
        %v382 = vunpack.c.l.b16 %v310
        %v383 = vunpack.c.l.b16 %v311
        %v384 = vunpack.c.l.b16 %v312
        %v385 = vunpack.c.l.b16 %v313
        %v386 = vunpack.c.l.b16 %v314
        %v387 = vunpack.c.l.b16 %v315
        %v388 = vunpack.c.l.b16 %v316
        %v389 = vunpack.c.l.b16 %v317
        %v390 = vunpack.c.l.b16 %v318
        %v391 = vunpack.c.l.b16 %v319
        %v392 = vunpack.c.l.b16 %v320
        %v393 = vunpack.c.l.b16 %v321
        %v394 = vunpack.c.l.b16 %v322
        %v395 = vunpack.c.l.b16 %v323
        %v396 = vunpack.c.l.b16 %v324
        %v397 = vunpack.c.l.b16 %v325
        %v398 = vunpack.c.l.b16 %v326
        %v399 = vunpack.c.l.b16 %v327
        %v400 = vunpack.c.l.b16 %v328
        %v401 = vunpack.c.l.b16 %v329
        %v402 = vunpack.c.l.b16 %v330
        %v403 = vunpack.c.l.b16 %v331
        %v404 = vunpack.c.l.b16 %v332
        %v405 = vunpack.c.l.b16 %v333
        %v406 = vunpack.c.l.b16 %v334
        %v407 = vunpack.c.l.b16 %v335
        %v408 = vunpack.c.l.b16 %v336
        %v409 = vunpack.c.l.b16 %v337
        %v410 = vunpack.c.l.b16 %v338
        %v411 = vunpack.c.l.b16 %v339
        %v412 = vpack.c.b16 %v381, %v380
        %v413 = vpack.c.b16 %v383, %v382
        %v414 = vpack.c.b16 %v385, %v384
        %v415 = vpack.c.b16 %v387, %v386
        %v416 = vpack.c.b16 %v389, %v388
        %v417 = vpack.c.b16 %v391, %v390
        %v418 = vpack.c.b16 %v393, %v392
        %v419 = vpack.c.b16 %v395, %v394
        %v420 = vpack.c.b16 %v397, %v396
        %v421 = vpack.c.b16 %v399, %v398
        %v422 = vpack.c.b16 %v401, %v400
        %v423 = vpack.c.b16 %v403, %v402
        %v424 = vpack.c.b16 %v405, %v404
        %v425 = vpack.c.b16 %v407, %v406
        %v426 = vpack.c.b16 %v409, %v408
        %v427 = vpack.c.b16 %v411, %v410
        %v432 = vunpack.c.l.b16 %v340
        %v433 = vunpack.c.l.b16 %v341
        %v434 = vunpack.c.l.b16 %v342
        %v435 = vunpack.c.l.b16 %v343
        %v436 = vpack.c.b16 %v433, %v432
        %v437 = vpack.c.b16 %v435, %v434
        %vm440 = vcmask 261120
        %v442 = vsel %vm440, %v412, 0
        %v445 = vsel %vm440, %v413, 0
        %v448 = vsel %vm440, %v414, 0
        %v451 = vsel %vm440, %v415, 0
        %v454 = vsel %vm440, %v416, 0
        %v457 = vsel %vm440, %v417, 0
        %v460 = vsel %vm440, %v418, 0
        %v463 = vsel %vm440, %v419, 0
        %v466 = vsel %vm440, %v420, 0
        %v469 = vsel %vm440, %v421, 0
        %v472 = vsel %vm440, %v422, 0
        %v475 = vsel %vm440, %v423, 0
        %v478 = vsel %vm440, %v424, 0
        %v481 = vsel %vm440, %v425, 0
        %v484 = vsel %vm440, %v426, 0
        %v487 = vsel %vm440, %v427, 0
        %489 = vmatpush.bf16.msra.mxu0 0
        %490 = vmatpush.bf16.msra.mxu0 0
        %491 = vmatpush.bf16.msra.mxu0 0
        %492 = vmatpush.bf16.msra.mxu0 0
        %493 = vmatpush.bf16.msra.mxu0 0
        %494 = vmatpush.bf16.msra.mxu0 0
        %495 = vmatpush.bf16.msra.mxu0 %v437
        %496 = vmatpush.bf16.msra.mxu0 %v436
        %497 = vmatmul.bf16.gmra.mxu0 %v442
        %v498 = vpop.f32.mrf.mxu0
        %v499 = vadd.f32 %v346, %v498
        %v500 = vpop.f32.mrf.mxu0
        %v501 = vadd.f32 %v346, %v500
        %502 = vmatmul.bf16.gmra.mxu0 %v445
        %v503 = vpop.f32.mrf.mxu0
        %v504 = vadd.f32 %v346, %v503
        %v505 = vpop.f32.mrf.mxu0
        %v506 = vadd.f32 %v346, %v505
        %507 = vmatmul.bf16.gmra.mxu0 %v448
        %v508 = vpop.f32.mrf.mxu0
        %v509 = vadd.f32 %v346, %v508
        %v510 = vpop.f32.mrf.mxu0
        %v511 = vadd.f32 %v346, %v510
        %512 = vmatmul.bf16.gmra.mxu0 %v451
        %v513 = vpop.f32.mrf.mxu0
        %v514 = vadd.f32 %v346, %v513
        %v515 = vpop.f32.mrf.mxu0
        %v516 = vadd.f32 %v346, %v515
        %517 = vmatmul.bf16.gmra.mxu0 %v454
        %v518 = vpop.f32.mrf.mxu0
        %v519 = vadd.f32 %v346, %v518
        %v520 = vpop.f32.mrf.mxu0
        %v521 = vadd.f32 %v346, %v520
        %522 = vmatmul.bf16.gmra.mxu0 %v457
        %v523 = vpop.f32.mrf.mxu0
        %v524 = vadd.f32 %v346, %v523
        %v525 = vpop.f32.mrf.mxu0
        %v526 = vadd.f32 %v346, %v525
        %527 = vmatmul.bf16.gmra.mxu0 %v460
        %v528 = vpop.f32.mrf.mxu0
        %v529 = vadd.f32 %v346, %v528
        %v530 = vpop.f32.mrf.mxu0
        %v531 = vadd.f32 %v346, %v530
        %532 = vmatmul.bf16.gmra.mxu0 %v463
        %v533 = vpop.f32.mrf.mxu0
        %v534 = vadd.f32 %v346, %v533
        %v535 = vpop.f32.mrf.mxu0
        %v536 = vadd.f32 %v346, %v535
        %537 = vmatmul.bf16.gmra.mxu0 %v466
        %v538 = vpop.f32.mrf.mxu0
        %v539 = vadd.f32 %v346, %v538
        %v540 = vpop.f32.mrf.mxu0
        %v541 = vadd.f32 %v346, %v540
        %542 = vmatmul.bf16.gmra.mxu0 %v469
        %v543 = vpop.f32.mrf.mxu0
        %v544 = vadd.f32 %v346, %v543
        %v545 = vpop.f32.mrf.mxu0
        %v546 = vadd.f32 %v346, %v545
        %547 = vmatmul.bf16.gmra.mxu0 %v472
        %v548 = vpop.f32.mrf.mxu0
        %v549 = vadd.f32 %v346, %v548
        %v550 = vpop.f32.mrf.mxu0
        %v551 = vadd.f32 %v346, %v550
        %552 = vmatmul.bf16.gmra.mxu0 %v475
        %v553 = vpop.f32.mrf.mxu0
        %v554 = vadd.f32 %v346, %v553
        %v555 = vpop.f32.mrf.mxu0
        %v556 = vadd.f32 %v346, %v555
        %557 = vmatmul.bf16.gmra.mxu0 %v478
        %v558 = vpop.f32.mrf.mxu0
        %v559 = vadd.f32 %v346, %v558
        %v560 = vpop.f32.mrf.mxu0
        %v561 = vadd.f32 %v346, %v560
        %562 = vmatmul.bf16.gmra.mxu0 %v481
        %v563 = vpop.f32.mrf.mxu0
        %v564 = vadd.f32 %v346, %v563
        %v565 = vpop.f32.mrf.mxu0
        %v566 = vadd.f32 %v346, %v565
        %567 = vmatmul.bf16.gmra.mxu0 %v484
        %v568 = vpop.f32.mrf.mxu0
        %v569 = vadd.f32 %v346, %v568
        %v570 = vpop.f32.mrf.mxu0
        %v571 = vadd.f32 %v346, %v570
        %572 = vmatmul.bf16.gmra.mxu0 %v487
        %v573 = vpop.f32.mrf.mxu0
        %v574 = vadd.f32 %v346, %v573
        %v575 = vpop.f32.mrf.mxu0
        %v576 = vadd.f32 %v346, %v575
        %577 = vdwg.mxu0
        %vm578 = vcmask 64512
        %579 = vst.msk [vmem:[%s299] sm:$0xff] %vm578, %v499
        %580 = vst.msk [vmem:[%s299 + $0x8] sm:$0xff] %vm578, %v501
        %581 = vst.msk [vmem:[%s299 + $0x10] sm:$0xff] %vm578, %v504
        %582 = vst.msk [vmem:[%s299 + $0x18] sm:$0xff] %vm578, %v506
        %583 = vst.msk [vmem:[%s299 + $0x20] sm:$0xff] %vm578, %v509
        %584 = vst.msk [vmem:[%s299 + $0x28] sm:$0xff] %vm578, %v511
        %585 = vst.msk [vmem:[%s299 + $0x30] sm:$0xff] %vm578, %v514
        %586 = vst.msk [vmem:[%s299 + $0x38] sm:$0xff] %vm578, %v516
        %587 = vst.msk [vmem:[%s299 + $0x40] sm:$0xff] %vm578, %v519
        %588 = vst.msk [vmem:[%s299 + $0x48] sm:$0xff] %vm578, %v521
        %589 = vst.msk [vmem:[%s299 + $0x50] sm:$0xff] %vm578, %v524
        %590 = vst.msk [vmem:[%s299 + $0x58] sm:$0xff] %vm578, %v526
        %591 = vst.msk [vmem:[%s299 + $0x60] sm:$0xff] %vm578, %v529
        %592 = vst.msk [vmem:[%s299 + $0x68] sm:$0xff] %vm578, %v531
        %593 = vst.msk [vmem:[%s299 + $0x70] sm:$0xff] %vm578, %v534
        %594 = vst.msk [vmem:[%s299 + $0x78] sm:$0xff] %vm578, %v536
        %595 = vst.msk [vmem:[%s299 + $0x80] sm:$0xff] %vm578, %v539
        %596 = vst.msk [vmem:[%s299 + $0x88] sm:$0xff] %vm578, %v541
        %597 = vst.msk [vmem:[%s299 + $0x90] sm:$0xff] %vm578, %v544
        %598 = vst.msk [vmem:[%s299 + $0x98] sm:$0xff] %vm578, %v546
        %599 = vst.msk [vmem:[%s299 + $0xa0] sm:$0xff] %vm578, %v549
        %600 = vst.msk [vmem:[%s299 + $0xa8] sm:$0xff] %vm578, %v551
        %601 = vst.msk [vmem:[%s299 + $0xb0] sm:$0xff] %vm578, %v554
        %602 = vst.msk [vmem:[%s299 + $0xb8] sm:$0xff] %vm578, %v556
        %603 = vst.msk [vmem:[%s299 + $0xc0] sm:$0xff] %vm578, %v559
        %604 = vst.msk [vmem:[%s299 + $0xc8] sm:$0xff] %vm578, %v561
        %605 = vst.msk [vmem:[%s299 + $0xd0] sm:$0xff] %vm578, %v564
        %606 = vst.msk [vmem:[%s299 + $0xd8] sm:$0xff] %vm578, %v566
        %607 = vst.msk [vmem:[%s299 + $0xe0] sm:$0xff] %vm578, %v569
        %608 = vst.msk [vmem:[%s299 + $0xe8] sm:$0xff] %vm578, %v571
        %609 = vst.msk [vmem:[%s299 + $0xf0] sm:$0xff] %vm578, %v574
        %610 = vst.msk [vmem:[%s299 + $0xf8] sm:$0xff] %vm578, %v576
        %v611 = vsel %vm578, %v499, -inf
        %612 = vmax.xlane.f32.xlu0 %v611
        %v613 = vpop.xlane.xlu0 %612
        %v614 = vsel %vm578, %v501, -inf
        %615 = vmax.xlane.f32.xlu0 %v614
        %v616 = vpop.xlane.xlu0 %615
        %v617 = vsel %vm578, %v504, -inf
        %618 = vmax.xlane.f32.xlu0 %v617
        %v619 = vpop.xlane.xlu0 %618
        %v620 = vsel %vm578, %v506, -inf
        %621 = vmax.xlane.f32.xlu0 %v620
        %v622 = vpop.xlane.xlu0 %621
        %v623 = vsel %vm578, %v509, -inf
        %624 = vmax.xlane.f32.xlu0 %v623
        %v625 = vpop.xlane.xlu0 %624
        %v626 = vsel %vm578, %v511, -inf
        %627 = vmax.xlane.f32.xlu0 %v626
        %v628 = vpop.xlane.xlu0 %627
        %v629 = vsel %vm578, %v514, -inf
        %630 = vmax.xlane.f32.xlu0 %v629
        %v631 = vpop.xlane.xlu0 %630
        %v632 = vsel %vm578, %v516, -inf
        %633 = vmax.xlane.f32.xlu0 %v632
        %v634 = vpop.xlane.xlu0 %633
        %v635 = vsel %vm578, %v519, -inf
        %636 = vmax.xlane.f32.xlu0 %v635
        %v637 = vpop.xlane.xlu0 %636
        %v638 = vsel %vm578, %v521, -inf
        %639 = vmax.xlane.f32.xlu0 %v638
        %v640 = vpop.xlane.xlu0 %639
        %v641 = vsel %vm578, %v524, -inf
        %642 = vmax.xlane.f32.xlu0 %v641
        %v643 = vpop.xlane.xlu0 %642
        %v644 = vsel %vm578, %v526, -inf
        %645 = vmax.xlane.f32.xlu0 %v644
        %v646 = vpop.xlane.xlu0 %645
        %v647 = vsel %vm578, %v529, -inf
        %648 = vmax.xlane.f32.xlu0 %v647
        %v649 = vpop.xlane.xlu0 %648
        %v650 = vsel %vm578, %v531, -inf
        %651 = vmax.xlane.f32.xlu0 %v650
        %v652 = vpop.xlane.xlu0 %651
        %v653 = vsel %vm578, %v534, -inf
        %654 = vmax.xlane.f32.xlu0 %v653
        %v655 = vpop.xlane.xlu0 %654
        %v656 = vsel %vm578, %v536, -inf
        %657 = vmax.xlane.f32.xlu0 %v656
        %v658 = vpop.xlane.xlu0 %657
        %v659 = vsel %vm578, %v539, -inf
        %660 = vmax.xlane.f32.xlu0 %v659
        %v661 = vpop.xlane.xlu0 %660
        %v662 = vsel %vm578, %v541, -inf
        %663 = vmax.xlane.f32.xlu0 %v662
        %v664 = vpop.xlane.xlu0 %663
        %v665 = vsel %vm578, %v544, -inf
        %666 = vmax.xlane.f32.xlu0 %v665
        %v667 = vpop.xlane.xlu0 %666
        %v668 = vsel %vm578, %v546, -inf
        %669 = vmax.xlane.f32.xlu0 %v668
        %v670 = vpop.xlane.xlu0 %669
        %v671 = vsel %vm578, %v549, -inf
        %672 = vmax.xlane.f32.xlu0 %v671
        %v673 = vpop.xlane.xlu0 %672
        %v674 = vsel %vm578, %v551, -inf
        %675 = vmax.xlane.f32.xlu0 %v674
        %v676 = vpop.xlane.xlu0 %675
        %v677 = vsel %vm578, %v554, -inf
        %678 = vmax.xlane.f32.xlu0 %v677
        %v679 = vpop.xlane.xlu0 %678
        %v680 = vsel %vm578, %v556, -inf
        %681 = vmax.xlane.f32.xlu0 %v680
        %v682 = vpop.xlane.xlu0 %681
        %v683 = vsel %vm578, %v559, -inf
        %684 = vmax.xlane.f32.xlu0 %v683
        %v685 = vpop.xlane.xlu0 %684
        %v686 = vsel %vm578, %v561, -inf
        %687 = vmax.xlane.f32.xlu0 %v686
        %v688 = vpop.xlane.xlu0 %687
        %v689 = vsel %vm578, %v564, -inf
        %690 = vmax.xlane.f32.xlu0 %v689
        %v691 = vpop.xlane.xlu0 %690
        %v692 = vsel %vm578, %v566, -inf
        %693 = vmax.xlane.f32.xlu0 %v692
        %v694 = vpop.xlane.xlu0 %693
        %v695 = vsel %vm578, %v569, -inf
        %696 = vmax.xlane.f32.xlu0 %v695
        %v697 = vpop.xlane.xlu0 %696
        %v698 = vsel %vm578, %v571, -inf
        %699 = vmax.xlane.f32.xlu0 %v698
        %v700 = vpop.xlane.xlu0 %699
        %v701 = vsel %vm578, %v574, -inf
        %702 = vmax.xlane.f32.xlu0 %v701
        %v703 = vpop.xlane.xlu0 %702
        %v704 = vsel %vm578, %v576, -inf
        %705 = vmax.xlane.f32.xlu0 %v704
        %v706 = vpop.xlane.xlu0 %705
        %v707 = vsub.f32 %v499, %v613
        %v708 = vsub.f32 %v501, %v616
        %v709 = vsub.f32 %v504, %v619
        %v710 = vsub.f32 %v506, %v622
        %v711 = vsub.f32 %v509, %v625
        %v712 = vsub.f32 %v511, %v628
        %v713 = vsub.f32 %v514, %v631
        %v714 = vsub.f32 %v516, %v634
        %v715 = vsub.f32 %v519, %v637
        %v716 = vsub.f32 %v521, %v640
        %v717 = vsub.f32 %v524, %v643
        %v718 = vsub.f32 %v526, %v646
        %v719 = vsub.f32 %v529, %v649
        %v720 = vsub.f32 %v531, %v652
        %v721 = vsub.f32 %v534, %v655
        %v722 = vsub.f32 %v536, %v658
        %v723 = vsub.f32 %v539, %v661
        %v724 = vsub.f32 %v541, %v664
        %v725 = vsub.f32 %v544, %v667
        %v726 = vsub.f32 %v546, %v670
        %v727 = vsub.f32 %v549, %v673
        %v728 = vsub.f32 %v551, %v676
        %v729 = vsub.f32 %v554, %v679
        %v730 = vsub.f32 %v556, %v682
        %v731 = vsub.f32 %v559, %v685
        %v732 = vsub.f32 %v561, %v688
        %v733 = vsub.f32 %v564, %v691
        %v734 = vsub.f32 %v566, %v694
        %v735 = vsub.f32 %v569, %v697
        %v736 = vsub.f32 %v571, %v700
        %v737 = vsub.f32 %v574, %v703
        %v738 = vsub.f32 %v576, %v706
        %v739 = vmul.f32 %v707, 1.442695
        %v740 = vpow.pop %v739
        %v741 = vmul.f32 %v708, 1.442695
        %v742 = vpow.pop %v741
        %v743 = vmul.f32 %v709, 1.442695
        %v744 = vpow.pop %v743
        %v745 = vmul.f32 %v710, 1.442695
        %v746 = vpow.pop %v745
        %v747 = vmul.f32 %v711, 1.442695
        %v748 = vpow.pop %v747
        %v749 = vmul.f32 %v712, 1.442695
        %v750 = vpow.pop %v749
        %v751 = vmul.f32 %v713, 1.442695
        %v752 = vpow.pop %v751
        %v753 = vmul.f32 %v714, 1.442695
        %v754 = vpow.pop %v753
        %v755 = vmul.f32 %v715, 1.442695
        %v756 = vpow.pop %v755
        %v757 = vmul.f32 %v716, 1.442695
        %v758 = vpow.pop %v757
        %v759 = vmul.f32 %v717, 1.442695
        %v760 = vpow.pop %v759
        %v761 = vmul.f32 %v718, 1.442695
        %v762 = vpow.pop %v761
        %v763 = vmul.f32 %v719, 1.442695
        %v764 = vpow.pop %v763
        %v765 = vmul.f32 %v720, 1.442695
        %v766 = vpow.pop %v765
        %v767 = vmul.f32 %v721, 1.442695
        %v768 = vpow.pop %v767
        %v769 = vmul.f32 %v722, 1.442695
        %v770 = vpow.pop %v769
        %v771 = vmul.f32 %v723, 1.442695
        %v772 = vpow.pop %v771
        %v773 = vmul.f32 %v724, 1.442695
        %v774 = vpow.pop %v773
        %v775 = vmul.f32 %v725, 1.442695
        %v776 = vpow.pop %v775
        %v777 = vmul.f32 %v726, 1.442695
        %v778 = vpow.pop %v777
        %v779 = vmul.f32 %v727, 1.442695
        %v780 = vpow.pop %v779
        %v781 = vmul.f32 %v728, 1.442695
        %v782 = vpow.pop %v781
        %v783 = vmul.f32 %v729, 1.442695
        %v784 = vpow.pop %v783
        %v785 = vmul.f32 %v730, 1.442695
        %v786 = vpow.pop %v785
        %v787 = vmul.f32 %v731, 1.442695
        %v788 = vpow.pop %v787
        %v789 = vmul.f32 %v732, 1.442695
        %v790 = vpow.pop %v789
        %v791 = vmul.f32 %v733, 1.442695
        %v792 = vpow.pop %v791
        %v793 = vmul.f32 %v734, 1.442695
        %v794 = vpow.pop %v793
        %v795 = vmul.f32 %v735, 1.442695
        %v796 = vpow.pop %v795
        %v797 = vmul.f32 %v736, 1.442695
        %v798 = vpow.pop %v797
        %v799 = vmul.f32 %v737, 1.442695
        %v800 = vpow.pop %v799
        %v801 = vmul.f32 %v738, 1.442695
        %v802 = vpow.pop %v801
        %v803 = vsel %vm578, %v740, 0.0
        %804 = vadd.xlane.f32.xlu0 %v803
        %v805 = vpop.xlane.xlu0 %804
        %v806 = vsel %vm578, %v742, 0.0
        %807 = vadd.xlane.f32.xlu0 %v806
        %v808 = vpop.xlane.xlu0 %807
        %v809 = vsel %vm578, %v744, 0.0
        %810 = vadd.xlane.f32.xlu0 %v809
        %v811 = vpop.xlane.xlu0 %810
        %v812 = vsel %vm578, %v746, 0.0
        %813 = vadd.xlane.f32.xlu0 %v812
        %v814 = vpop.xlane.xlu0 %813
        %v815 = vsel %vm578, %v748, 0.0
        %816 = vadd.xlane.f32.xlu0 %v815
        %v817 = vpop.xlane.xlu0 %816
        %v818 = vsel %vm578, %v750, 0.0
        %819 = vadd.xlane.f32.xlu0 %v818
        %v820 = vpop.xlane.xlu0 %819
        %v821 = vsel %vm578, %v752, 0.0
        %822 = vadd.xlane.f32.xlu0 %v821
        %v823 = vpop.xlane.xlu0 %822
        %v824 = vsel %vm578, %v754, 0.0
        %825 = vadd.xlane.f32.xlu0 %v824
        %v826 = vpop.xlane.xlu0 %825
        %v827 = vsel %vm578, %v756, 0.0
        %828 = vadd.xlane.f32.xlu0 %v827
        %v829 = vpop.xlane.xlu0 %828
        %v830 = vsel %vm578, %v758, 0.0
        %831 = vadd.xlane.f32.xlu0 %v830
        %v832 = vpop.xlane.xlu0 %831
        %v833 = vsel %vm578, %v760, 0.0
        %834 = vadd.xlane.f32.xlu0 %v833
        %v835 = vpop.xlane.xlu0 %834
        %v836 = vsel %vm578, %v762, 0.0
        %837 = vadd.xlane.f32.xlu0 %v836
        %v838 = vpop.xlane.xlu0 %837
        %v839 = vsel %vm578, %v764, 0.0
        %840 = vadd.xlane.f32.xlu0 %v839
        %v841 = vpop.xlane.xlu0 %840
        %v842 = vsel %vm578, %v766, 0.0
        %843 = vadd.xlane.f32.xlu0 %v842
        %v844 = vpop.xlane.xlu0 %843
        %v845 = vsel %vm578, %v768, 0.0
        %846 = vadd.xlane.f32.xlu0 %v845
        %v847 = vpop.xlane.xlu0 %846
        %v848 = vsel %vm578, %v770, 0.0
        %849 = vadd.xlane.f32.xlu0 %v848
        %v850 = vpop.xlane.xlu0 %849
        %v851 = vsel %vm578, %v772, 0.0
        %852 = vadd.xlane.f32.xlu0 %v851
        %v853 = vpop.xlane.xlu0 %852
        %v854 = vsel %vm578, %v774, 0.0
        %855 = vadd.xlane.f32.xlu0 %v854
        %v856 = vpop.xlane.xlu0 %855
        %v857 = vsel %vm578, %v776, 0.0
        %858 = vadd.xlane.f32.xlu0 %v857
        %v859 = vpop.xlane.xlu0 %858
        %v860 = vsel %vm578, %v778, 0.0
        %861 = vadd.xlane.f32.xlu0 %v860
        %v862 = vpop.xlane.xlu0 %861
        %v863 = vsel %vm578, %v780, 0.0
        %864 = vadd.xlane.f32.xlu0 %v863
        %v865 = vpop.xlane.xlu0 %864
        %v866 = vsel %vm578, %v782, 0.0
        %867 = vadd.xlane.f32.xlu0 %v866
        %v868 = vpop.xlane.xlu0 %867
        %v869 = vsel %vm578, %v784, 0.0
        %870 = vadd.xlane.f32.xlu0 %v869
        %v871 = vpop.xlane.xlu0 %870
        %v872 = vsel %vm578, %v786, 0.0
        %873 = vadd.xlane.f32.xlu0 %v872
        %v874 = vpop.xlane.xlu0 %873
        %v875 = vsel %vm578, %v788, 0.0
        %876 = vadd.xlane.f32.xlu0 %v875
        %v877 = vpop.xlane.xlu0 %876
        %v878 = vsel %vm578, %v790, 0.0
        %879 = vadd.xlane.f32.xlu0 %v878
        %v880 = vpop.xlane.xlu0 %879
        %v881 = vsel %vm578, %v792, 0.0
        %882 = vadd.xlane.f32.xlu0 %v881
        %v883 = vpop.xlane.xlu0 %882
        %v884 = vsel %vm578, %v794, 0.0
        %885 = vadd.xlane.f32.xlu0 %v884
        %v886 = vpop.xlane.xlu0 %885
        %v887 = vsel %vm578, %v796, 0.0
        %888 = vadd.xlane.f32.xlu0 %v887
        %v889 = vpop.xlane.xlu0 %888
        %v890 = vsel %vm578, %v798, 0.0
        %891 = vadd.xlane.f32.xlu0 %v890
        %v892 = vpop.xlane.xlu0 %891
        %v893 = vsel %vm578, %v800, 0.0
        %894 = vadd.xlane.f32.xlu0 %v893
        %v895 = vpop.xlane.xlu0 %894
        %v896 = vsel %vm578, %v802, 0.0
        %897 = vadd.xlane.f32.xlu0 %v896
        %v898 = vpop.xlane.xlu0 %897
        %v899 = vrcp.pop %v805
        %v900 = vrcp.pop %v808
        %v901 = vrcp.pop %v811
        %v902 = vrcp.pop %v814
        %v903 = vrcp.pop %v817
        %v904 = vrcp.pop %v820
        %v905 = vrcp.pop %v823
        %v906 = vrcp.pop %v826
        %v907 = vrcp.pop %v829
        %v908 = vrcp.pop %v832
        %v909 = vrcp.pop %v835
        %v910 = vrcp.pop %v838
        %v911 = vrcp.pop %v841
        %v912 = vrcp.pop %v844
        %v913 = vrcp.pop %v847
        %v914 = vrcp.pop %v850
        %v915 = vrcp.pop %v853
        %v916 = vrcp.pop %v856
        %v917 = vrcp.pop %v859
        %v918 = vrcp.pop %v862
        %v919 = vrcp.pop %v865
        %v920 = vrcp.pop %v868
        %v921 = vrcp.pop %v871
        %v922 = vrcp.pop %v874
        %v923 = vrcp.pop %v877
        %v924 = vrcp.pop %v880
        %v925 = vrcp.pop %v883
        %v926 = vrcp.pop %v886
        %v927 = vrcp.pop %v889
        %v928 = vrcp.pop %v892
        %v929 = vrcp.pop %v895
        %v930 = vrcp.pop %v898
        %v931 = vmul.f32 %v740, %v899
        %v932 = vmul.f32 %v742, %v900
        %v933 = vmul.f32 %v744, %v901
        %v934 = vmul.f32 %v746, %v902
        %v935 = vmul.f32 %v748, %v903
        %v936 = vmul.f32 %v750, %v904
        %v937 = vmul.f32 %v752, %v905
        %v938 = vmul.f32 %v754, %v906
        %v939 = vmul.f32 %v756, %v907
        %v940 = vmul.f32 %v758, %v908
        %v941 = vmul.f32 %v760, %v909
        %v942 = vmul.f32 %v762, %v910
        %v943 = vmul.f32 %v764, %v911
        %v944 = vmul.f32 %v766, %v912
        %v945 = vmul.f32 %v768, %v913
        %v946 = vmul.f32 %v770, %v914
        %v947 = vmul.f32 %v772, %v915
        %v948 = vmul.f32 %v774, %v916
        %v949 = vmul.f32 %v776, %v917
        %v950 = vmul.f32 %v778, %v918
        %v951 = vmul.f32 %v780, %v919
        %v952 = vmul.f32 %v782, %v920
        %v953 = vmul.f32 %v784, %v921
        %v954 = vmul.f32 %v786, %v922
        %v955 = vmul.f32 %v788, %v923
        %v956 = vmul.f32 %v790, %v924
        %v957 = vmul.f32 %v792, %v925
        %v958 = vmul.f32 %v794, %v926
        %v959 = vmul.f32 %v796, %v927
        %v960 = vmul.f32 %v798, %v928
        %v961 = vmul.f32 %v800, %v929
        %v962 = vmul.f32 %v802, %v930
        %v963 = vld [vmem:[#allocation2] sm:$0x1]
        %v964 = vsel %vm578, %v931, 0.0
        %v965 = vsel %vm578, %v932, 0.0
        %v966 = vadd.f32 %v964, %v965
        %v967 = vsel %vm578, %v933, 0.0
        %v968 = vadd.f32 %v966, %v967
        %v969 = vsel %vm578, %v934, 0.0
        %v970 = vadd.f32 %v968, %v969
        %v971 = vsel %vm578, %v935, 0.0
        %v972 = vadd.f32 %v970, %v971
        %v973 = vsel %vm578, %v936, 0.0
        %v974 = vadd.f32 %v972, %v973
        %v975 = vsel %vm578, %v937, 0.0
        %v976 = vadd.f32 %v974, %v975
        %v977 = vsel %vm578, %v938, 0.0
        %v978 = vadd.f32 %v976, %v977
        %v979 = vsel %vm578, %v939, 0.0
        %v980 = vadd.f32 %v978, %v979
        %v981 = vsel %vm578, %v940, 0.0
        %v982 = vadd.f32 %v980, %v981
        %v983 = vsel %vm578, %v941, 0.0
        %v984 = vadd.f32 %v982, %v983
        %v985 = vsel %vm578, %v942, 0.0
        %v986 = vadd.f32 %v984, %v985
        %v987 = vsel %vm578, %v943, 0.0
        %v988 = vadd.f32 %v986, %v987
        %v989 = vsel %vm578, %v944, 0.0
        %v990 = vadd.f32 %v988, %v989
        %v991 = vsel %vm578, %v945, 0.0
        %v992 = vadd.f32 %v990, %v991
        %v993 = vsel %vm578, %v946, 0.0
        %v994 = vadd.f32 %v992, %v993
        %v995 = vsel %vm578, %v947, 0.0
        %v996 = vadd.f32 %v994, %v995
        %v997 = vsel %vm578, %v948, 0.0
        %v998 = vadd.f32 %v996, %v997
        %v999 = vsel %vm578, %v949, 0.0
        %v1000 = vadd.f32 %v998, %v999
        %v1001 = vsel %vm578, %v950, 0.0
        %v1002 = vadd.f32 %v1000, %v1001
        %v1003 = vsel %vm578, %v951, 0.0
        %v1004 = vadd.f32 %v1002, %v1003
        %v1005 = vsel %vm578, %v952, 0.0
        %v1006 = vadd.f32 %v1004, %v1005
        %v1007 = vsel %vm578, %v953, 0.0
        %v1008 = vadd.f32 %v1006, %v1007
        %v1009 = vsel %vm578, %v954, 0.0
        %v1010 = vadd.f32 %v1008, %v1009
        %v1011 = vsel %vm578, %v955, 0.0
        %v1012 = vadd.f32 %v1010, %v1011
        %v1013 = vsel %vm578, %v956, 0.0
        %v1014 = vadd.f32 %v1012, %v1013
        %v1015 = vsel %vm578, %v957, 0.0
        %v1016 = vadd.f32 %v1014, %v1015
        %v1017 = vsel %vm578, %v958, 0.0
        %v1018 = vadd.f32 %v1016, %v1017
        %v1019 = vsel %vm578, %v959, 0.0
        %v1020 = vadd.f32 %v1018, %v1019
        %v1021 = vsel %vm578, %v960, 0.0
        %v1022 = vadd.f32 %v1020, %v1021
        %v1023 = vsel %vm578, %v961, 0.0
        %v1024 = vadd.f32 %v1022, %v1023
        %v1025 = vsel %vm578, %v962, 0.0
        %v1026 = vadd.f32 %v1024, %v1025
        %v1027 = vrot.slane %v1026, 4
        %v1028 = vadd.f32 %v1026, %v1027
        %v1029 = vrot.slane %v1028, 2
        %v1030 = vadd.f32 %v1028, %v1029
        %v1031 = vrot.slane %v1030, 1
        %v1032 = vadd.f32 %v1030, %v1031
        %v1033 = vadd.f32 %v963, %v1032
        %vm1034 = vcmask 57344
        %1035 = vst.msk [vmem:[#allocation2] sm:$0x1] %vm1034, %v1033
        // Predicated region
        $region45: #{simple_segmentation_forward.6} parent=39 // pred_check
          %p1036 = pneg %p302
        $region46: #{simple_segmentation_forward.6} parent=39 // pred_check_branch
          %1038 = sbr.rel (%p1036) target = $region48
        $region47: #{simple_segmentation_forward.6} parent=39 // pred_region
          %v1039 = vld [vmem:[#allocation2] sm:$0x1]
          %v1040 = vmul.f32 %v1039, 0.00390625
          %v1041 = vld [vmem:[%s3] sm:$0xff]
          %v1042 = vld [vmem:[%s4] sm:$0x1]
          %v1044 = vsel %vm578, %v1040, 0
          %1046 = vmatpush.msra.mxu0 0.0
          %1047 = vmatpush.msra.mxu0 0.0
          %1048 = vmatpush.msra.mxu0 0.0
          %1049 = vmatpush.msra.mxu0 0.0
          %1050 = vmatpush.msra.mxu0 0.0
          %1051 = vmatpush.msra.mxu0 0.0
          %1052 = vmatpush.msra.mxu0 0.0
          %1053 = vmatpush.msra.mxu0 0.0
          %1054 = vmatpush.msra.mxu0 0.0
          %1055 = vmatpush.msra.mxu0 0.0
          %1056 = vmatpush.msra.mxu0 0.0
          %1057 = vmatpush.msra.mxu0 0.0
          %1058 = vmatpush.msra.mxu0 0.0
          %1059 = vmatpush.msra.mxu0 0.0
          %1060 = vmatpush.msra.mxu0 0.0
          %1061 = vmatpush.msra.mxu0 %v1041
          %1062 = vmatmul.f32.gmra.mxu0 %v1044
          %v1063 = vpop.f32.mrf.mxu0
          %v1064 = vadd.f32 %v1042, %v1063
          %1065 = vdwg.mxu0
          %vm1066 = vcmask 24576
          %1067 = vst.msk [vmem:[%s280] sm:$0x1] %vm1066, %v1064
        $region48: #{simple_segmentation_forward.6} parent=39 // pred_fallthru
          _
        %s1068 = smul.u32 32, %s26
        %p1069 = scmp.lt.s32.totalorder %s25, 1
        %s1070 = scalar_select %p1069, %s25, 1
        %p1071 = scmp.lt.s32.totalorder %s1068, 31
        %s1072 = scalar_select %p1071, %s1068, 31
        %s1073 = smul.addr %s1070, 32
        %s1074 = sadd.s32 %s1072, %s1073
        %s1075 = smul.addr %s1074, 8
        %s1076 = scalar_lea.vmem %s5, %s1075
        %s1077 = sand.u32 %s181, 1
        %s1078 = scalar_lea.sflag [#allocation4], %s1077
        %s1079 = sand.u32 %s181, 1
        %s1080 = scalar_lea.vmem [#allocation3], %s1079
        // Predicated region
        $region49: #{simple_segmentation_forward.6} parent=39 // pred_check
          %p1081 = pneg %p165
        $region50: #{simple_segmentation_forward.6} parent=39 // pred_check_branch
          %1083 = sbr.rel (%p1081) target = $region52
        $region51: #{simple_segmentation_forward.6} parent=39 // pred_region
          %s1084 = smul.u32 32, %s26
        $region52: #{simple_segmentation_forward.6} parent=39 // pred_fallthru
          _
        // Predicated region
        $region53: #{simple_segmentation_forward.6} parent=39 // pred_check
          %p1085 = pneg %p191
        $region54: #{simple_segmentation_forward.6} parent=39 // pred_check_branch
          %1087 = sbr.rel (%p1085) target = $region56
        $region55: #{simple_segmentation_forward.6} parent=39 // pred_region
          %1089 = vsyncadd %s1078, 0
          %s1090 = scalar_lea.hbm %s6, %s25
          %s1092 = sshll.u32 %s1080, 4
          %s1093 = int_to_ptr.vmem [resolvable:$true] %s1092
          %s1094 = sshll.u32 %s1090, 4
          %s1095 = int_to_ptr.hbm [resolvable:$true] %s1094
          %1097 = dma.vmem_to_hbm [thread:$0]  %s1093, 16, %s1095, %s1078
        $region56: #{simple_segmentation_forward.6} parent=39 // pred_fallthru
          _
      $region40: #{simple_segmentation_forward.6} parent=5 // pred_fallthru
        _
      %p1098 = scmp.le.s32.totalorder 2, %s16
      // Predicated region
      $region57: #{simple_segmentation_forward.6} parent=5 // pred_check
        %p1099 = pneg %p1098
      $region58: #{simple_segmentation_forward.6} parent=5 // pred_check_branch
        %1101 = sbr.rel (%p1099) target = $region60
      $region59: #{simple_segmentation_forward.6} parent=5 // pred_region
        %s1102 = ssub.s32 %s16, 2
        // Predicated region
        $region61: #{simple_segmentation_forward.6} parent=59 // pred_check
          %p1103 = pneg %p171
        $region62: #{simple_segmentation_forward.6} parent=59 // pred_check_branch
          %1105 = sbr.rel (%p1103) target = $region64
        $region63: #{simple_segmentation_forward.6} parent=59 // pred_region
          %s1106 = smul.u32 32, %s28
          %p1107 = scmp.lt.s32.totalorder %s27, 1
          %s1108 = scalar_select %p1107, %s27, 1
          %p1109 = scmp.lt.s32.totalorder %s1106, 31
          %s1110 = scalar_select %p1109, %s1106, 31
          %s1111 = smul.addr %s1108, 32
          %s1112 = sadd.s32 %s1110, %s1111
          %s1113 = smul.addr %s1112, 8
          %s1114 = scalar_lea.vmem %s5, %s1113
        $region64: #{simple_segmentation_forward.6} parent=59 // pred_fallthru
          _
        // Predicated region
        $region65: #{simple_segmentation_forward.6} parent=59 // pred_check
          %p1115 = pneg %p197
        $region66: #{simple_segmentation_forward.6} parent=59 // pred_check_branch
          %1117 = sbr.rel (%p1115) target = $region68
        $region67: #{simple_segmentation_forward.6} parent=59 // pred_region
          %s1118 = sand.u32 %s182, 1
          %s1119 = scalar_lea.sflag [#allocation4], %s1118
          %s1120 = sand.u32 %s182, 1
          %s1121 = scalar_lea.vmem [#allocation3], %s1120
          %1123 = dma.done %s1119, 16
        $region68: #{simple_segmentation_forward.6} parent=59 // pred_fallthru
          _
      $region60: #{simple_segmentation_forward.6} parent=5 // pred_fallthru
        _
    $region6: #{simple_segmentation_forward.6} parent=1 // loop_footer
      %s20 = sadd.s32 1, %s16
    $region7: #{simple_segmentation_forward.6} parent=1 // loop_footer_branch
      %15 = sbr.rel target = $region3
    $region8: #{simple_segmentation_forward.6} parent=1 // loop_exit
      _
    %1124 = vsyncpa [#allocation4], 1
    %s1125 = scalar_lea.sflag [#allocation4], 1
    %1126 = vsyncpa %s1125, 1

// kernel: simple_segmentation_forward.7
$region0: #{simple_segmentation_forward.7}
  #allocation0 [shape = 'u32[]', space=smem, size = 0x4, offset = 0x4, fixed_abs, tag = 'smem constant byte address 0x4 - core index']
  #allocation1 [shape = 'u32[72,128]{1,0:T(1,128)}', space=vmem, size = 0x9000, scoped, tag = 'internal scratch']
  %s0 = inlined_call_operand.vmem [shape: bf16[512,16], index: 0, kind: input, shape index: {}]
  %s1 = inlined_call_operand.vmem [shape: bf16[16,8], index: 1, kind: input, shape index: {}]
  %s2 = inlined_call_operand.vmem [shape: f32[1,8], index: 2, kind: input, shape index: {}]
  %s3 = inlined_call_operand.vmem [shape: f32[512,8], index: 3, kind: output, shape index: {}]
  %s4 = sld [smem:[#allocation0]]
  $region22: #{simple_segmentation_forward.7} parent=0
    _
  %s6 = ssub.s32 1, %s4
  %s7 = scalar_select 0, %s6, %s4
  // Predicated region
  $region2: #{simple_segmentation_forward.7} parent=0 // pred_check
    _
  $region3: #{simple_segmentation_forward.7} parent=0 // pred_check_branch
    %9 = sbr.rel (0) target = $region5
  $region4: #{simple_segmentation_forward.7} parent=0 // pred_region
    _
  $region5: #{simple_segmentation_forward.7} parent=0 // pred_fallthru
    _
  // Predicated region
  $region6: #{simple_segmentation_forward.7} parent=0 // pred_check
    _
  $region7: #{simple_segmentation_forward.7} parent=0 // pred_check_branch
    %11 = sbr.rel (0) target = $region9
  $region8: #{simple_segmentation_forward.7} parent=0 // pred_region
    _
  $region9: #{simple_segmentation_forward.7} parent=0 // pred_fallthru
    _
  // Predicated region
  $region10: #{simple_segmentation_forward.7} parent=0 // pred_check
    _
  $region11: #{simple_segmentation_forward.7} parent=0 // pred_check_branch
    %13 = sbr.rel (0) target = $region13
  $region12: #{simple_segmentation_forward.7} parent=0 // pred_region
    _
  $region13: #{simple_segmentation_forward.7} parent=0 // pred_fallthru
    _
  %v15 = vld [vmem:[%s0] sm:$0xf]
  %v16 = vld [vmem:[%s0 + $0x4] sm:$0xf]
  %v17 = vld [vmem:[%s0 + $0x8] sm:$0xf]
  %v18 = vld [vmem:[%s0 + $0xc] sm:$0xf]
  %v19 = vld [vmem:[%s0 + $0x10] sm:$0xf]
  %v20 = vld [vmem:[%s0 + $0x14] sm:$0xf]
  %v21 = vld [vmem:[%s0 + $0x18] sm:$0xf]
  %v22 = vld [vmem:[%s0 + $0x1c] sm:$0xf]
  %v23 = vld [vmem:[%s0 + $0x20] sm:$0xf]
  %v24 = vld [vmem:[%s0 + $0x24] sm:$0xf]
  %v25 = vld [vmem:[%s0 + $0x28] sm:$0xf]
  %v26 = vld [vmem:[%s0 + $0x2c] sm:$0xf]
  %v27 = vld [vmem:[%s0 + $0x30] sm:$0xf]
  %v28 = vld [vmem:[%s0 + $0x34] sm:$0xf]
  %v29 = vld [vmem:[%s0 + $0x38] sm:$0xf]
  %v30 = vld [vmem:[%s0 + $0x3c] sm:$0xf]
  %v31 = vld [vmem:[%s0 + $0x40] sm:$0xf]
  %v32 = vld [vmem:[%s0 + $0x44] sm:$0xf]
  %v33 = vld [vmem:[%s0 + $0x48] sm:$0xf]
  %v34 = vld [vmem:[%s0 + $0x4c] sm:$0xf]
  %v35 = vld [vmem:[%s0 + $0x50] sm:$0xf]
  %v36 = vld [vmem:[%s0 + $0x54] sm:$0xf]
  %v37 = vld [vmem:[%s0 + $0x58] sm:$0xf]
  %v38 = vld [vmem:[%s0 + $0x5c] sm:$0xf]
  %v39 = vld [vmem:[%s0 + $0x60] sm:$0xf]
  %v40 = vld [vmem:[%s0 + $0x64] sm:$0xf]
  %v41 = vld [vmem:[%s0 + $0x68] sm:$0xf]
  %v42 = vld [vmem:[%s0 + $0x6c] sm:$0xf]
  %v43 = vld [vmem:[%s0 + $0x70] sm:$0xf]
  %v44 = vld [vmem:[%s0 + $0x74] sm:$0xf]
  %v45 = vld [vmem:[%s0 + $0x78] sm:$0xf]
  %v46 = vld [vmem:[%s0 + $0x7c] sm:$0xf]
  %v47 = vld [vmem:[%s0 + $0x80] sm:$0xf]
  %v48 = vld [vmem:[%s0 + $0x84] sm:$0xf]
  %v49 = vld [vmem:[%s0 + $0x88] sm:$0xf]
  %v50 = vld [vmem:[%s0 + $0x8c] sm:$0xf]
  %v51 = vld [vmem:[%s0 + $0x90] sm:$0xf]
  %v52 = vld [vmem:[%s0 + $0x94] sm:$0xf]
  %v53 = vld [vmem:[%s0 + $0x98] sm:$0xf]
  %v54 = vld [vmem:[%s0 + $0x9c] sm:$0xf]
  %v55 = vld [vmem:[%s0 + $0xa0] sm:$0xf]
  %v56 = vld [vmem:[%s0 + $0xa4] sm:$0xf]
  %v57 = vld [vmem:[%s0 + $0xa8] sm:$0xf]
  %v58 = vld [vmem:[%s0 + $0xac] sm:$0xf]
  %v59 = vld [vmem:[%s0 + $0xb0] sm:$0xf]
  %v60 = vld [vmem:[%s0 + $0xb4] sm:$0xf]
  %v61 = vld [vmem:[%s0 + $0xb8] sm:$0xf]
  %v62 = vld [vmem:[%s0 + $0xbc] sm:$0xf]
  %v63 = vld [vmem:[%s0 + $0xc0] sm:$0xf]
  %v64 = vld [vmem:[%s0 + $0xc4] sm:$0xf]
  %v65 = vld [vmem:[%s0 + $0xc8] sm:$0xf]
  %v66 = vld [vmem:[%s0 + $0xcc] sm:$0xf]
  %v67 = vld [vmem:[%s0 + $0xd0] sm:$0xf]
  %v68 = vld [vmem:[%s0 + $0xd4] sm:$0xf]
  %v69 = vld [vmem:[%s0 + $0xd8] sm:$0xf]
  %v70 = vld [vmem:[%s0 + $0xdc] sm:$0xf]
  %v71 = vld [vmem:[%s0 + $0xe0] sm:$0xf]
  %v72 = vld [vmem:[%s0 + $0xe4] sm:$0xf]
  %v73 = vld [vmem:[%s0 + $0xe8] sm:$0xf]
  %v74 = vld [vmem:[%s0 + $0xec] sm:$0xf]
  %v75 = vld [vmem:[%s0 + $0xf0] sm:$0xf]
  %v76 = vld [vmem:[%s0 + $0xf4] sm:$0xf]
  %v77 = vld [vmem:[%s0 + $0xf8] sm:$0xf]
  %v78 = vld [vmem:[%s0 + $0xfc] sm:$0xf]
  %v79 = vld [vmem:[%s1] sm:$0xf]
  %v80 = vld [vmem:[%s1 + $0x4] sm:$0xf]
  %v81 = vld [vmem:[%s2] sm:$0x1]
  %v83 = vperm.slane %v81, 0
  %v149 = vunpack.c.l.b16 %v15
  %v150 = vunpack.c.l.b16 %v16
  %v151 = vunpack.c.l.b16 %v17
  %v152 = vunpack.c.l.b16 %v18
  %v153 = vunpack.c.l.b16 %v19
  %v154 = vunpack.c.l.b16 %v20
  %v155 = vunpack.c.l.b16 %v21
  %v156 = vunpack.c.l.b16 %v22
  %v157 = vunpack.c.l.b16 %v23
  %v158 = vunpack.c.l.b16 %v24
  %v159 = vunpack.c.l.b16 %v25
  %v160 = vunpack.c.l.b16 %v26
  %v161 = vunpack.c.l.b16 %v27
  %v162 = vunpack.c.l.b16 %v28
  %v163 = vunpack.c.l.b16 %v29
  %v164 = vunpack.c.l.b16 %v30
  %v165 = vunpack.c.l.b16 %v31
  %v166 = vunpack.c.l.b16 %v32
  %v167 = vunpack.c.l.b16 %v33
  %v168 = vunpack.c.l.b16 %v34
  %v169 = vunpack.c.l.b16 %v35
  %v170 = vunpack.c.l.b16 %v36
  %v171 = vunpack.c.l.b16 %v37
  %v172 = vunpack.c.l.b16 %v38
  %v173 = vunpack.c.l.b16 %v39
  %v174 = vunpack.c.l.b16 %v40
  %v175 = vunpack.c.l.b16 %v41
  %v176 = vunpack.c.l.b16 %v42
  %v177 = vunpack.c.l.b16 %v43
  %v178 = vunpack.c.l.b16 %v44
  %v179 = vunpack.c.l.b16 %v45
  %v180 = vunpack.c.l.b16 %v46
  %v181 = vunpack.c.l.b16 %v47
  %v182 = vunpack.c.l.b16 %v48
  %v183 = vunpack.c.l.b16 %v49
  %v184 = vunpack.c.l.b16 %v50
  %v185 = vunpack.c.l.b16 %v51
  %v186 = vunpack.c.l.b16 %v52
  %v187 = vunpack.c.l.b16 %v53
  %v188 = vunpack.c.l.b16 %v54
  %v189 = vunpack.c.l.b16 %v55
  %v190 = vunpack.c.l.b16 %v56
  %v191 = vunpack.c.l.b16 %v57
  %v192 = vunpack.c.l.b16 %v58
  %v193 = vunpack.c.l.b16 %v59
  %v194 = vunpack.c.l.b16 %v60
  %v195 = vunpack.c.l.b16 %v61
  %v196 = vunpack.c.l.b16 %v62
  %v197 = vunpack.c.l.b16 %v63
  %v198 = vunpack.c.l.b16 %v64
  %v199 = vunpack.c.l.b16 %v65
  %v200 = vunpack.c.l.b16 %v66
  %v201 = vunpack.c.l.b16 %v67
  %v202 = vunpack.c.l.b16 %v68
  %v203 = vunpack.c.l.b16 %v69
  %v204 = vunpack.c.l.b16 %v70
  %v205 = vunpack.c.l.b16 %v71
  %v206 = vunpack.c.l.b16 %v72
  %v207 = vunpack.c.l.b16 %v73
  %v208 = vunpack.c.l.b16 %v74
  %v209 = vunpack.c.l.b16 %v75
  %v210 = vunpack.c.l.b16 %v76
  %v211 = vunpack.c.l.b16 %v77
  %v212 = vunpack.c.l.b16 %v78
  %v213 = vpack.c.b16 %v150, %v149
  %v214 = vpack.c.b16 %v152, %v151
  %v215 = vpack.c.b16 %v154, %v153
  %v216 = vpack.c.b16 %v156, %v155
  %v217 = vpack.c.b16 %v158, %v157
  %v218 = vpack.c.b16 %v160, %v159
  %v219 = vpack.c.b16 %v162, %v161
  %v220 = vpack.c.b16 %v164, %v163
  %v221 = vpack.c.b16 %v166, %v165
  %v222 = vpack.c.b16 %v168, %v167
  %v223 = vpack.c.b16 %v170, %v169
  %v224 = vpack.c.b16 %v172, %v171
  %v225 = vpack.c.b16 %v174, %v173
  %v226 = vpack.c.b16 %v176, %v175
  %v227 = vpack.c.b16 %v178, %v177
  %v228 = vpack.c.b16 %v180, %v179
  %v229 = vpack.c.b16 %v182, %v181
  %v230 = vpack.c.b16 %v184, %v183
  %v231 = vpack.c.b16 %v186, %v185
  %v232 = vpack.c.b16 %v188, %v187
  %v233 = vpack.c.b16 %v190, %v189
  %v234 = vpack.c.b16 %v192, %v191
  %v235 = vpack.c.b16 %v194, %v193
  %v236 = vpack.c.b16 %v196, %v195
  %v237 = vpack.c.b16 %v198, %v197
  %v238 = vpack.c.b16 %v200, %v199
  %v239 = vpack.c.b16 %v202, %v201
  %v240 = vpack.c.b16 %v204, %v203
  %v241 = vpack.c.b16 %v206, %v205
  %v242 = vpack.c.b16 %v208, %v207
  %v243 = vpack.c.b16 %v210, %v209
  %v244 = vpack.c.b16 %v212, %v211
  %v247 = vunpack.c.l.b16 %v79
  %v248 = vunpack.c.l.b16 %v80
  %v249 = vpack.c.b16 %v248, %v247
  %vm251 = vcmask 130048
  %v253 = vsel %vm251, %v213, 0
  %v256 = vsel %vm251, %v214, 0
  %v259 = vsel %vm251, %v215, 0
  %v262 = vsel %vm251, %v216, 0
  %v265 = vsel %vm251, %v217, 0
  %v268 = vsel %vm251, %v218, 0
  %v271 = vsel %vm251, %v219, 0
  %v274 = vsel %vm251, %v220, 0
  %v277 = vsel %vm251, %v221, 0
  %v280 = vsel %vm251, %v222, 0
  %v283 = vsel %vm251, %v223, 0
  %v286 = vsel %vm251, %v224, 0
  %v289 = vsel %vm251, %v225, 0
  %v292 = vsel %vm251, %v226, 0
  %v295 = vsel %vm251, %v227, 0
  %v298 = vsel %vm251, %v228, 0
  %v301 = vsel %vm251, %v229, 0
  %v304 = vsel %vm251, %v230, 0
  %v307 = vsel %vm251, %v231, 0
  %v310 = vsel %vm251, %v232, 0
  %v313 = vsel %vm251, %v233, 0
  %v316 = vsel %vm251, %v234, 0
  %v319 = vsel %vm251, %v235, 0
  %v322 = vsel %vm251, %v236, 0
  %v325 = vsel %vm251, %v237, 0
  %v328 = vsel %vm251, %v238, 0
  %v331 = vsel %vm251, %v239, 0
  %v334 = vsel %vm251, %v240, 0
  %v337 = vsel %vm251, %v241, 0
  %v340 = vsel %vm251, %v242, 0
  %v343 = vsel %vm251, %v243, 0
  %v346 = vsel %vm251, %v244, 0
  %348 = vmatpush.bf16.msra.mxu0 0
  %349 = vmatpush.bf16.msra.mxu0 0
  %350 = vmatpush.bf16.msra.mxu0 0
  %351 = vmatpush.bf16.msra.mxu0 0
  %352 = vmatpush.bf16.msra.mxu0 0
  %353 = vmatpush.bf16.msra.mxu0 0
  %354 = vmatpush.bf16.msra.mxu0 0
  %355 = vmatpush.bf16.msra.mxu0 %v249
  %356 = vmatmul.bf16.gmra.mxu0 %v253
  %v357 = vpop.f32.mrf.mxu0
  %v358 = vadd.f32 %v83, %v357
  %v359 = vpop.f32.mrf.mxu0
  %v360 = vadd.f32 %v83, %v359
  %361 = vmatmul.bf16.gmra.mxu0 %v256
  %v362 = vpop.f32.mrf.mxu0
  %v363 = vadd.f32 %v83, %v362
  %v364 = vpop.f32.mrf.mxu0
  %v365 = vadd.f32 %v83, %v364
  %366 = vmatmul.bf16.gmra.mxu0 %v259
  %v367 = vpop.f32.mrf.mxu0
  %v368 = vadd.f32 %v83, %v367
  %v369 = vpop.f32.mrf.mxu0
  %v370 = vadd.f32 %v83, %v369
  %371 = vmatmul.bf16.gmra.mxu0 %v262
  %v372 = vpop.f32.mrf.mxu0
  %v373 = vadd.f32 %v83, %v372
  %v374 = vpop.f32.mrf.mxu0
  %v375 = vadd.f32 %v83, %v374
  %376 = vmatmul.bf16.gmra.mxu0 %v265
  %v377 = vpop.f32.mrf.mxu0
  %v378 = vadd.f32 %v83, %v377
  %v379 = vpop.f32.mrf.mxu0
  %v380 = vadd.f32 %v83, %v379
  %381 = vmatmul.bf16.gmra.mxu0 %v268
  %v382 = vpop.f32.mrf.mxu0
  %v383 = vadd.f32 %v83, %v382
  %v384 = vpop.f32.mrf.mxu0
  %v385 = vadd.f32 %v83, %v384
  %386 = vmatmul.bf16.gmra.mxu0 %v271
  %v387 = vpop.f32.mrf.mxu0
  %v388 = vadd.f32 %v83, %v387
  %v389 = vpop.f32.mrf.mxu0
  %v390 = vadd.f32 %v83, %v389
  %391 = vmatmul.bf16.gmra.mxu0 %v274
  %v392 = vpop.f32.mrf.mxu0
  %v393 = vadd.f32 %v83, %v392
  %v394 = vpop.f32.mrf.mxu0
  %v395 = vadd.f32 %v83, %v394
  %396 = vmatmul.bf16.gmra.mxu0 %v277
  %v397 = vpop.f32.mrf.mxu0
  %v398 = vadd.f32 %v83, %v397
  %v399 = vpop.f32.mrf.mxu0
  %v400 = vadd.f32 %v83, %v399
  %401 = vmatmul.bf16.gmra.mxu0 %v280
  %v402 = vpop.f32.mrf.mxu0
  %v403 = vadd.f32 %v83, %v402
  %v404 = vpop.f32.mrf.mxu0
  %v405 = vadd.f32 %v83, %v404
  %406 = vmatmul.bf16.gmra.mxu0 %v283
  %v407 = vpop.f32.mrf.mxu0
  %v408 = vadd.f32 %v83, %v407
  %v409 = vpop.f32.mrf.mxu0
  %v410 = vadd.f32 %v83, %v409
  %411 = vmatmul.bf16.gmra.mxu0 %v286
  %v412 = vpop.f32.mrf.mxu0
  %v413 = vadd.f32 %v83, %v412
  %v414 = vpop.f32.mrf.mxu0
  %v415 = vadd.f32 %v83, %v414
  %416 = vmatmul.bf16.gmra.mxu0 %v289
  %v417 = vpop.f32.mrf.mxu0
  %v418 = vadd.f32 %v83, %v417
  %v419 = vpop.f32.mrf.mxu0
  %v420 = vadd.f32 %v83, %v419
  %421 = vmatmul.bf16.gmra.mxu0 %v292
  %v422 = vpop.f32.mrf.mxu0
  %v423 = vadd.f32 %v83, %v422
  %v424 = vpop.f32.mrf.mxu0
  %v425 = vadd.f32 %v83, %v424
  %426 = vmatmul.bf16.gmra.mxu0 %v295
  %v427 = vpop.f32.mrf.mxu0
  %v428 = vadd.f32 %v83, %v427
  %v429 = vpop.f32.mrf.mxu0
  %v430 = vadd.f32 %v83, %v429
  %431 = vmatmul.bf16.gmra.mxu0 %v298
  %v432 = vpop.f32.mrf.mxu0
  %v433 = vadd.f32 %v83, %v432
  %v434 = vpop.f32.mrf.mxu0
  %v435 = vadd.f32 %v83, %v434
  %436 = vmatmul.bf16.gmra.mxu0 %v301
  %v437 = vpop.f32.mrf.mxu0
  %v438 = vadd.f32 %v83, %v437
  %v439 = vpop.f32.mrf.mxu0
  %v440 = vadd.f32 %v83, %v439
  %441 = vmatmul.bf16.gmra.mxu0 %v304
  %v442 = vpop.f32.mrf.mxu0
  %v443 = vadd.f32 %v83, %v442
  %v444 = vpop.f32.mrf.mxu0
  %v445 = vadd.f32 %v83, %v444
  %446 = vmatmul.bf16.gmra.mxu0 %v307
  %v447 = vpop.f32.mrf.mxu0
  %v448 = vadd.f32 %v83, %v447
  %v449 = vpop.f32.mrf.mxu0
  %v450 = vadd.f32 %v83, %v449
  %451 = vmatmul.bf16.gmra.mxu0 %v310
  %v452 = vpop.f32.mrf.mxu0
  %v453 = vadd.f32 %v83, %v452
  %v454 = vpop.f32.mrf.mxu0
  %v455 = vadd.f32 %v83, %v454
  %456 = vmatmul.bf16.gmra.mxu0 %v313
  %v457 = vpop.f32.mrf.mxu0
  %v458 = vadd.f32 %v83, %v457
  %v459 = vpop.f32.mrf.mxu0
  %v460 = vadd.f32 %v83, %v459
  %461 = vmatmul.bf16.gmra.mxu0 %v316
  %v462 = vpop.f32.mrf.mxu0
  %v463 = vadd.f32 %v83, %v462
  %v464 = vpop.f32.mrf.mxu0
  %v465 = vadd.f32 %v83, %v464
  %466 = vmatmul.bf16.gmra.mxu0 %v319
  %v467 = vpop.f32.mrf.mxu0
  %v468 = vadd.f32 %v83, %v467
  %v469 = vpop.f32.mrf.mxu0
  %v470 = vadd.f32 %v83, %v469
  %471 = vmatmul.bf16.gmra.mxu0 %v322
  %v472 = vpop.f32.mrf.mxu0
  %v473 = vadd.f32 %v83, %v472
  %v474 = vpop.f32.mrf.mxu0
  %v475 = vadd.f32 %v83, %v474
  %476 = vmatmul.bf16.gmra.mxu0 %v325
  %v477 = vpop.f32.mrf.mxu0
  %v478 = vadd.f32 %v83, %v477
  %v479 = vpop.f32.mrf.mxu0
  %v480 = vadd.f32 %v83, %v479
  %481 = vmatmul.bf16.gmra.mxu0 %v328
  %v482 = vpop.f32.mrf.mxu0
  %v483 = vadd.f32 %v83, %v482
  %v484 = vpop.f32.mrf.mxu0
  %v485 = vadd.f32 %v83, %v484
  %486 = vmatmul.bf16.gmra.mxu0 %v331
  %v487 = vpop.f32.mrf.mxu0
  %v488 = vadd.f32 %v83, %v487
  %v489 = vpop.f32.mrf.mxu0
  %v490 = vadd.f32 %v83, %v489
  %491 = vmatmul.bf16.gmra.mxu0 %v334
  %v492 = vpop.f32.mrf.mxu0
  %v493 = vadd.f32 %v83, %v492
  %v494 = vpop.f32.mrf.mxu0
  %v495 = vadd.f32 %v83, %v494
  %496 = vmatmul.bf16.gmra.mxu0 %v337
  %v497 = vpop.f32.mrf.mxu0
  %v498 = vadd.f32 %v83, %v497
  %v499 = vpop.f32.mrf.mxu0
  %v500 = vadd.f32 %v83, %v499
  %501 = vmatmul.bf16.gmra.mxu0 %v340
  %v502 = vpop.f32.mrf.mxu0
  %v503 = vadd.f32 %v83, %v502
  %v504 = vpop.f32.mrf.mxu0
  %v505 = vadd.f32 %v83, %v504
  %506 = vmatmul.bf16.gmra.mxu0 %v343
  %v507 = vpop.f32.mrf.mxu0
  %v508 = vadd.f32 %v83, %v507
  %v509 = vpop.f32.mrf.mxu0
  %v510 = vadd.f32 %v83, %v509
  %511 = vmatmul.bf16.gmra.mxu0 %v346
  %v512 = vpop.f32.mrf.mxu0
  %v513 = vadd.f32 %v83, %v512
  %v514 = vpop.f32.mrf.mxu0
  %v515 = vadd.f32 %v83, %v514
  %516 = vdwg.mxu0
  %vm517 = vcmask 64512
  %518 = vst.msk [vmem:[%s3] sm:$0xff] %vm517, %v358
  %519 = vst.msk [vmem:[%s3 + $0x8] sm:$0xff] %vm517, %v360
  %520 = vst.msk [vmem:[%s3 + $0x10] sm:$0xff] %vm517, %v363
  %521 = vst.msk [vmem:[%s3 + $0x18] sm:$0xff] %vm517, %v365
  %522 = vst.msk [vmem:[%s3 + $0x20] sm:$0xff] %vm517, %v368
  %523 = vst.msk [vmem:[%s3 + $0x28] sm:$0xff] %vm517, %v370
  %524 = vst.msk [vmem:[%s3 + $0x30] sm:$0xff] %vm517, %v373
  %525 = vst.msk [vmem:[%s3 + $0x38] sm:$0xff] %vm517, %v375
  %526 = vst.msk [vmem:[%s3 + $0x40] sm:$0xff] %vm517, %v378
  %527 = vst.msk [vmem:[%s3 + $0x48] sm:$0xff] %vm517, %v380
  %528 = vst.msk [vmem:[%s3 + $0x50] sm:$0xff] %vm517, %v383
  %529 = vst.msk [vmem:[%s3 + $0x58] sm:$0xff] %vm517, %v385
  %530 = vst.msk [vmem:[%s3 + $0x60] sm:$0xff] %vm517, %v388
  %531 = vst.msk [vmem:[%s3 + $0x68] sm:$0xff] %vm517, %v390
  %532 = vst.msk [vmem:[%s3 + $0x70] sm:$0xff] %vm517, %v393
  %533 = vst.msk [vmem:[%s3 + $0x78] sm:$0xff] %vm517, %v395
  %534 = vst.msk [vmem:[%s3 + $0x80] sm:$0xff] %vm517, %v398
  %535 = vst.msk [vmem:[%s3 + $0x88] sm:$0xff] %vm517, %v400
  %536 = vst.msk [vmem:[%s3 + $0x90] sm:$0xff] %vm517, %v403
  %537 = vst.msk [vmem:[%s3 + $0x98] sm:$0xff] %vm517, %v405
  %538 = vst.msk [vmem:[%s3 + $0xa0] sm:$0xff] %vm517, %v408
  %539 = vst.msk [vmem:[%s3 + $0xa8] sm:$0xff] %vm517, %v410
  %540 = vst.msk [vmem:[%s3 + $0xb0] sm:$0xff] %vm517, %v413
  %541 = vst.msk [vmem:[%s3 + $0xb8] sm:$0xff] %vm517, %v415
  %542 = vst.msk [vmem:[%s3 + $0xc0] sm:$0xff] %vm517, %v418
  %543 = vst.msk [vmem:[%s3 + $0xc8] sm:$0xff] %vm517, %v420
  %544 = vst.msk [vmem:[%s3 + $0xd0] sm:$0xff] %vm517, %v423
  %545 = vst.msk [vmem:[%s3 + $0xd8] sm:$0xff] %vm517, %v425
  %546 = vst.msk [vmem:[%s3 + $0xe0] sm:$0xff] %vm517, %v428
  %547 = vst.msk [vmem:[%s3 + $0xe8] sm:$0xff] %vm517, %v430
  %548 = vst.msk [vmem:[%s3 + $0xf0] sm:$0xff] %vm517, %v433
  %549 = vst.msk [vmem:[%s3 + $0xf8] sm:$0xff] %vm517, %v435
  %550 = vst.msk [vmem:[%s3 + $0x100] sm:$0xff] %vm517, %v438
  %551 = vst.msk [vmem:[%s3 + $0x108] sm:$0xff] %vm517, %v440
  %552 = vst.msk [vmem:[%s3 + $0x110] sm:$0xff] %vm517, %v443
  %553 = vst.msk [vmem:[%s3 + $0x118] sm:$0xff] %vm517, %v445
  %554 = vst.msk [vmem:[%s3 + $0x120] sm:$0xff] %vm517, %v448
  %555 = vst.msk [vmem:[%s3 + $0x128] sm:$0xff] %vm517, %v450
  %556 = vst.msk [vmem:[%s3 + $0x130] sm:$0xff] %vm517, %v453
  %557 = vst.msk [vmem:[%s3 + $0x138] sm:$0xff] %vm517, %v455
  %558 = vst.msk [vmem:[%s3 + $0x140] sm:$0xff] %vm517, %v458
  %559 = vst.msk [vmem:[%s3 + $0x148] sm:$0xff] %vm517, %v460
  %560 = vst.msk [vmem:[%s3 + $0x150] sm:$0xff] %vm517, %v463
  %561 = vst.msk [vmem:[%s3 + $0x158] sm:$0xff] %vm517, %v465
  %562 = vst.msk [vmem:[%s3 + $0x160] sm:$0xff] %vm517, %v468
  %563 = vst.msk [vmem:[%s3 + $0x168] sm:$0xff] %vm517, %v470
  %564 = vst.msk [vmem:[%s3 + $0x170] sm:$0xff] %vm517, %v473
  %565 = vst.msk [vmem:[%s3 + $0x178] sm:$0xff] %vm517, %v475
  %566 = vst.msk [vmem:[%s3 + $0x180] sm:$0xff] %vm517, %v478
  %567 = vst.msk [vmem:[%s3 + $0x188] sm:$0xff] %vm517, %v480
  %568 = vst.msk [vmem:[%s3 + $0x190] sm:$0xff] %vm517, %v483
  %569 = vst.msk [vmem:[%s3 + $0x198] sm:$0xff] %vm517, %v485
  %570 = vst.msk [vmem:[%s3 + $0x1a0] sm:$0xff] %vm517, %v488
  %571 = vst.msk [vmem:[%s3 + $0x1a8] sm:$0xff] %vm517, %v490
  %572 = vst.msk [vmem:[%s3 + $0x1b0] sm:$0xff] %vm517, %v493
  %573 = vst.msk [vmem:[%s3 + $0x1b8] sm:$0xff] %vm517, %v495
  %574 = vst.msk [vmem:[%s3 + $0x1c0] sm:$0xff] %vm517, %v498
  %575 = vst.msk [vmem:[%s3 + $0x1c8] sm:$0xff] %vm517, %v500
  %576 = vst.msk [vmem:[%s3 + $0x1d0] sm:$0xff] %vm517, %v503
  %577 = vst.msk [vmem:[%s3 + $0x1d8] sm:$0xff] %vm517, %v505
  %578 = vst.msk [vmem:[%s3 + $0x1e0] sm:$0xff] %vm517, %v508
  %579 = vst.msk [vmem:[%s3 + $0x1e8] sm:$0xff] %vm517, %v510
  %580 = vst.msk [vmem:[%s3 + $0x1f0] sm:$0xff] %vm517, %v513
  %581 = vst.msk [vmem:[%s3 + $0x1f8] sm:$0xff] %vm517, %v515
  // Predicated region
  $region14: #{simple_segmentation_forward.7} parent=0 // pred_check
    _
  $region15: #{simple_segmentation_forward.7} parent=0 // pred_check_branch
    %583 = sbr.rel (0) target = $region17
  $region16: #{simple_segmentation_forward.7} parent=0 // pred_region
    _
  $region17: #{simple_segmentation_forward.7} parent=0 // pred_fallthru
    _
  // Predicated region
  $region18: #{simple_segmentation_forward.7} parent=0 // pred_check
    _
  $region19: #{simple_segmentation_forward.7} parent=0 // pred_check_branch
    %585 = sbr.rel (0) target = $region21
  $region20: #{simple_segmentation_forward.7} parent=0 // pred_region
    _
  $region21: #{simple_segmentation_forward.7} parent=0 // pred_fallthru
    _

</llo_original>
